<compile_context>
chip_gen: v7x
topology: tpu7x:2x2x1
jax: 0.10.0
libtpu: 0.0.40
codegen_flags: <defaults>
</compile_context>

<pallas_src>
import functools

import jax
import jax.numpy as jnp
from jax.experimental import pallas as pl
from jax.experimental.pallas import tpu as pltpu


# ---------------------------------------------------------------------------
# Kernel
# ---------------------------------------------------------------------------
def _encoder_gru_kernel(T, B, V, H,
                        tok_ref, len_ref, emb_ref, h0_ref,
                        wi_ref, wh_ref, bi_ref, bhn_ref,
                        out_ref, hid_ref,
                        xp_ref, outs_ref):
    TB = T * B
    H2 = 2 * H

    # ---- embedding lookup as one-hot @ table (MXU); fine at toy V ----------
    tok = tok_ref[...]                                             # (TB, 1) int32
    vocab_iota = jax.lax.broadcasted_iota(jnp.int32, (TB, V), 1)   # (TB, V)
    onehot = (tok == vocab_iota).astype(jnp.float32)               # (TB, V)
    x = jnp.dot(onehot, emb_ref[...],
                preferred_element_type=jnp.float32)                # (TB, H)

    # ---- batched input projections: one (TB,H)@(H,3H) matmul per direction -
    # Gate order along lanes: [r | z | n]. bi already folds b_hh_r / b_hh_z.
    for d in range(2):
        xp = (jnp.dot(x, wi_ref[d], preferred_element_type=jnp.float32)
              + bi_ref[d])                                         # (TB, 3H)
        for t in range(T):                   # one-time static split into
            xp_ref[d, t] = xp[t * B:(t + 1) * B, :]   # per-step (B,3H) tiles

    lengths = len_ref[...]                   # (B, 1) int32, assumes 1 <= len <= T

    # hoist loop-invariant weight/bias reads out of the recurrence
    wh_f = wh_ref[0]                         # (H, 3H)
    wh_b = wh_ref[1]
    bhn_f = bhn_ref[0]                       # (1, H)
    bhn_b = bhn_ref[1]

    def gru_step(xp_t, wh_d, bhn_d, h_prev):
        # single fused hidden projection for all three gates
        hp = jnp.dot(h_prev, wh_d, preferred_element_type=jnp.float32)  # (B,3H)
        r = jax.nn.sigmoid(xp_t[:, :H] + hp[:, :H])
        z = jax.nn.sigmoid(xp_t[:, H:H2] + hp[:, H:H2])
        n = jnp.tanh(xp_t[:, H2:] + r * (hp[:, H2:] + bhn_d))
        return (1.0 - z) * n + z * h_prev

    # ---- both directions interleaved in one unrolled loop, h in the carry --
    def body(i, carry):
        h_f, h_b = carry
        t_b = T - 1 - i
        # forward direction, timestep i
        mask_f = i < lengths
        h_f = jnp.where(mask_f, gru_step(xp_ref[0, i], wh_f, bhn_f, h_f), h_f)
        outs_ref[0, i] = jnp.where(mask_f, h_f, 0.0)
        # backward direction, timestep T-1-i
        mask_b = t_b < lengths
        h_b = jnp.where(mask_b, gru_step(xp_ref[1, t_b], wh_b, bhn_b, h_b), h_b)
        outs_ref[1, t_b] = jnp.where(mask_b, h_b, 0.0)
        return h_f, h_b

    h_f, h_b = jax.lax.fori_loop(0, T, body, (h0_ref[0], h0_ref[1]),
                                 unroll=True)

    hid_ref[0] = h_f
    hid_ref[1] = h_b
    out_ref[...] = outs_ref[0] + outs_ref[1]   # one dense add + store


# ---------------------------------------------------------------------------
# Wrapper (parameter layout plumbing done once, outside the kernel)
# ---------------------------------------------------------------------------
def _fuse_direction(w_ih, w_hh, b_ih, b_hh, H):
    """Pre-transpose + fuse gates along the output axis; fold b_hh_{r,z}."""
    # PyTorch GRU packs gates as [r; z; n] along the first axis of (3H, H).
    wi = w_ih.T.astype(jnp.float32)                      # (H, 3H), lanes [r|z|n]
    wh = w_hh.T.astype(jnp.float32)                      # (H, 3H)
    bi = jnp.concatenate([b_ih[:H] + b_hh[:H],           # r: fold b_hh_r
                          b_ih[H:2 * H] + b_hh[H:2 * H],  # z: fold b_hh_z
                          b_ih[2 * H:]]                  # n: input bias only
                         ).astype(jnp.float32).reshape(1, 3 * H)
    bhn = b_hh[2 * H:].astype(jnp.float32).reshape(1, H)  # applied before r*
    return wi, wh, bi, bhn


def _vmem_limit_bytes(T, B, V, H):
    """Rough (8,128)-padded f32 footprint of everything resident, with headroom."""
    def tile(r, c):
        return ((r + 7) // 8 * 8) * ((c + 127) // 128 * 128) * 4
    resident = (
        tile(T * B, 1) + tile(B, 1) + tile(V, H) + 2 * tile(B, H)     # inputs
        + 4 * tile(H, 3 * H) + 2 * tile(1, 3 * H) + 2 * tile(1, H)    # weights
        + T * tile(B, H) + 2 * tile(B, H)                             # outputs
        + 2 * T * tile(B, 3 * H) + 2 * T * tile(B, H)                 # scratch
        + tile(T * B, V) + tile(T * B, H) + 2 * tile(T * B, 3 * H)    # temporaries
    )
    return int(min(max(2 * resident, 4 << 20), 128 << 20))


def encoder_rnn_forward(input_seq, input_lengths, params, hidden=None):
    """Pallas EncoderRNN forward. Returns (outputs (T,B,H), hidden (2,B,H))."""
    T, B = input_seq.shape
    V, H = params["embedding"].shape

    wi_f, wh_f, bi_f, bhn_f = _fuse_direction(params["w_ih_f"], params["w_hh_f"],
                                              params["b_ih_f"], params["b_hh_f"], H)
    wi_b, wh_b, bi_b, bhn_b = _fuse_direction(params["w_ih_b"], params["w_hh_b"],
                                              params["b_ih_b"], params["b_hh_b"], H)
    wi = jnp.stack([wi_f, wi_b])          # (2, H, 3H)
    wh = jnp.stack([wh_f, wh_b])          # (2, H, 3H)
    bi = jnp.stack([bi_f, bi_b])          # (2, 1, 3H)
    bhn = jnp.stack([bhn_f, bhn_b])       # (2, 1, H)

    tok2d = input_seq.reshape(T * B, 1).astype(jnp.int32)
    len2d = jnp.asarray(input_lengths, jnp.int32).reshape(B, 1)
    if hidden is None:
        h0 = jnp.zeros((2, B, H), jnp.float32)
    else:
        h0 = hidden.astype(jnp.float32).reshape(2, B, H)
    emb = params["embedding"].astype(jnp.float32)

    kernel = functools.partial(_encoder_gru_kernel, T, B, V, H)
    vmem = pl.BlockSpec(memory_space=pltpu.MemorySpace.VMEM)

    out, hid = pl.pallas_call(
        kernel,
        out_shape=(
            jax.ShapeDtypeStruct((T, B, H), jnp.float32),   # summed fwd+bwd outputs
            jax.ShapeDtypeStruct((2, B, H), jnp.float32),   # final hidden (fwd, bwd)
        ),
        in_specs=[vmem] * 8,
        out_specs=(vmem, vmem),
        scratch_shapes=[
            pltpu.VMEM((2, T, B, 3 * H), jnp.float32),      # fused input projections
            pltpu.VMEM((2, T, B, H), jnp.float32),          # per-direction outputs
        ],
        compiler_params=pltpu.CompilerParams(
            vmem_limit_bytes=_vmem_limit_bytes(T, B, V, H)),
    )(tok2d, len2d, emb, h0, wi, wh, bi, bhn)

    return out, hid


# ---------------------------------------------------------------------------
# Pure-JAX reference (mirrors the PyTorch packed bidirectional GRU semantics)
# ---------------------------------------------------------------------------
def _ref_encoder_rnn(input_seq, input_lengths, params, hidden=None):
    T, B = input_seq.shape
    V, H = params["embedding"].shape
    emb = params["embedding"][input_seq]                      # (T, B, H)
    lengths = jnp.asarray(input_lengths, jnp.int32).reshape(B, 1)
    h0 = jnp.zeros((2, B, H), jnp.float32) if hidden is None else hidden

    def cell(x_t, h, w_ih, w_hh, b_ih, b_hh):
        gi = x_t @ w_ih.T + b_ih
        gh = h @ w_hh.T + b_hh
        i_r, i_z, i_n = jnp.split(gi, 3, axis=-1)
        h_r, h_z, h_n = jnp.split(gh, 3, axis=-1)
        r = jax.nn.sigmoid(i_r + h_r)
        z = jax.nn.sigmoid(i_z + h_z)
        n = jnp.tanh(i_n + r * h_n)
        return (1.0 - z) * n + z * h

    def fwd_step(h, inp):
        x_t, t = inp
        hn = cell(x_t, h, params["w_ih_f"], params["w_hh_f"],
                  params["b_ih_f"], params["b_hh_f"])
        mask = t < lengths
        h = jnp.where(mask, hn, h)
        return h, jnp.where(mask, h, 0.0)

    hf, out_f = jax.lax.scan(fwd_step, h0[0], (emb, jnp.arange(T)))

    def bwd_step(h, inp):
        x_t, t = inp
        hn = cell(x_t, h, params["w_ih_b"], params["w_hh_b"],
                  params["b_ih_b"], params["b_hh_b"])
        mask = t < lengths
        h = jnp.where(mask, hn, h)
        return h, jnp.where(mask, h, 0.0)

    hb, out_b_rev = jax.lax.scan(bwd_step, h0[1], (emb[::-1], jnp.arange(T)[::-1]))
    out_b = out_b_rev[::-1]
    return out_f + out_b, jnp.stack([hf, hb])


# ---------------------------------------------------------------------------
# Deterministic demo
# ---------------------------------------------------------------------------
def _init_params(key, V, H):
    ks = jax.random.split(key, 9)
    bound = 1.0 / (H ** 0.5)

    def u(k, shape):
        return jax.random.uniform(k, shape, jnp.float32, -bound, bound)

    return dict(
        embedding=jax.random.normal(ks[0], (V, H), dtype=jnp.float32),
        w_ih_f=u(ks[1], (3 * H, H)), w_hh_f=u(ks[2], (3 * H, H)),
        b_ih_f=u(ks[3], (3 * H,)),  b_hh_f=u(ks[4], (3 * H,)),
        w_ih_b=u(ks[5], (3 * H, H)), w_hh_b=u(ks[6], (3 * H, H)),
        b_ih_b=u(ks[7], (3 * H,)),  b_hh_b=u(ks[8], (3 * H,)),
    )


if __name__ == "__main__":
    T, B, V, H = 8, 2, 32, 32
    key = jax.random.PRNGKey(0)
    k_tok, k_par = jax.random.split(key)

    input_seq = jax.random.randint(k_tok, (T, B), 0, V, dtype=jnp.int32)   # (max_length, batch)
    input_lengths = jnp.array([T, 5], dtype=jnp.int32)                     # sorted descending
    params = _init_params(k_par, V, H)

    out, hid = encoder_rnn_forward(input_seq, input_lengths, params)
    out = jax.block_until_ready(out)
    hid = jax.block_until_ready(hid)

    ref_out, ref_hid = _ref_encoder_rnn(input_seq, input_lengths, params)
    assert out.shape == (T, B, H) and hid.shape == (2, B, H)
    assert jnp.allclose(out, ref_out, atol=1e-4, rtol=1e-4), \
        float(jnp.max(jnp.abs(out - ref_out)))
    assert jnp.allclose(hid, ref_hid, atol=1e-4, rtol=1e-4), \
        float(jnp.max(jnp.abs(hid - ref_hid)))

    print("KERNEL_OK")
</pallas_src>

<mosaic_0001>
module attributes {stable_mosaic.version = 11 : i64} {
  func.func @_encoder_gru_kernel(%arg0: memref<16x1xi32, #tpu.memory_space<vmem>>, %arg1: memref<2x1xi32, #tpu.memory_space<vmem>>, %arg2: memref<32x32xf32, #tpu.memory_space<vmem>>, %arg3: memref<2x2x32xf32, #tpu.memory_space<vmem>>, %arg4: memref<2x32x96xf32, #tpu.memory_space<vmem>>, %arg5: memref<2x32x96xf32, #tpu.memory_space<vmem>>, %arg6: memref<2x1x96xf32, #tpu.memory_space<vmem>>, %arg7: memref<2x1x32xf32, #tpu.memory_space<vmem>>, %arg8: memref<8x2x32xf32, #tpu.memory_space<vmem>>, %arg9: memref<2x2x32xf32, #tpu.memory_space<vmem>>, %arg10: memref<2x8x2x96xf32, #tpu.memory_space<vmem>>, %arg11: memref<2x8x2x32xf32, #tpu.memory_space<vmem>>) attributes {dimension_semantics = [], scalar_prefetch = 0 : i64, scratch_operands = 2 : i64, tpu.core_type = #tpu.core_type<tc>} {
    %c0 = arith.constant 0 : index
    %c0_0 = arith.constant 0 : index
    %0 = vector.load %arg0[%c0, %c0_0] : memref<16x1xi32, #tpu.memory_space<vmem>>, vector<16x1xi32>
    %1 = tpu.iota {dimensions = array<i32: 1>} : vector<16x32xi32>
    %2 = vector.broadcast %0 : vector<16x1xi32> to vector<16x32xi32>
    %3 = arith.cmpi eq, %2, %1 : vector<16x32xi32>
    %4 = arith.extui %3 : vector<16x32xi1> to vector<16x32xi32>
    %5 = arith.sitofp %4 : vector<16x32xi32> to vector<16x32xf32>
    %c0_1 = arith.constant 0 : index
    %c0_2 = arith.constant 0 : index
    %6 = vector.load %arg2[%c0_1, %c0_2] : memref<32x32xf32, #tpu.memory_space<vmem>>, vector<32x32xf32>
    %cst = arith.constant dense<0.000000e+00> : vector<16x32xf32>
    %7 = tpu.matmul %5, %6, %cst {dimension_numbers = #tpu.dot_dimension_numbers<[1], [0], [0], [1], [0, 0, 1, 1], [], []>} : vector<16x32xf32>, vector<32x32xf32>, vector<16x32xf32> -> vector<16x32xf32>
    %c0_3 = arith.constant 0 : index
    %c0_4 = arith.constant 0 : index
    %c0_5 = arith.constant 0 : index
    %8 = vector.load %arg4[%c0_3, %c0_4, %c0_5] : memref<2x32x96xf32, #tpu.memory_space<vmem>>, vector<1x32x96xf32>
    %9 = vector.shape_cast %8 : vector<1x32x96xf32> to vector<32x96xf32>
    %cst_6 = arith.constant dense<0.000000e+00> : vector<16x96xf32>
    %10 = tpu.matmul %7, %9, %cst_6 {dimension_numbers = #tpu.dot_dimension_numbers<[1], [0], [0], [1], [0, 0, 1, 1], [], []>} : vector<16x32xf32>, vector<32x96xf32>, vector<16x96xf32> -> vector<16x96xf32>
    %c0_7 = arith.constant 0 : index
    %c0_8 = arith.constant 0 : index
    %c0_9 = arith.constant 0 : index
    %11 = vector.load %arg6[%c0_7, %c0_8, %c0_9] : memref<2x1x96xf32, #tpu.memory_space<vmem>>, vector<1x1x96xf32>
    %12 = vector.shape_cast %11 : vector<1x1x96xf32> to vector<1x96xf32>
    %13 = vector.broadcast %12 : vector<1x96xf32> to vector<16x96xf32>
    %14 = arith.addf %10, %13 : vector<16x96xf32>
    %15 = vector.extract_strided_slice %14 {offsets = [0, 0], sizes = [2, 96], strides = [1, 1]} : vector<16x96xf32> to vector<2x96xf32>
    %c0_10 = arith.constant 0 : index
    %c0_11 = arith.constant 0 : index
    %c0_12 = arith.constant 0 : index
    %c0_13 = arith.constant 0 : index
    %16 = vector.load %arg10[%c0_10, %c0_11, %c0_12, %c0_13] : memref<2x8x2x96xf32, #tpu.memory_space<vmem>>, vector<1x1x2x96xf32>
    %17 = vector.shape_cast %16 : vector<1x1x2x96xf32> to vector<2x96xf32>
    %18 = vector.shape_cast %15 : vector<2x96xf32> to vector<1x1x2x96xf32>
    tpu.vector_store %arg10[%c0_10, %c0_11, %c0_12, %c0_13], %18 {strides = array<i32>} : memref<2x8x2x96xf32, #tpu.memory_space<vmem>>, vector<1x1x2x96xf32>,
    %19 = vector.extract_strided_slice %14 {offsets = [2, 0], sizes = [2, 96], strides = [1, 1]} : vector<16x96xf32> to vector<2x96xf32>
    %c0_14 = arith.constant 0 : index
    %c1 = arith.constant 1 : index
    %c0_15 = arith.constant 0 : index
    %c0_16 = arith.constant 0 : index
    %20 = vector.load %arg10[%c0_14, %c1, %c0_15, %c0_16] : memref<2x8x2x96xf32, #tpu.memory_space<vmem>>, vector<1x1x2x96xf32>
    %21 = vector.shape_cast %20 : vector<1x1x2x96xf32> to vector<2x96xf32>
    %22 = vector.shape_cast %19 : vector<2x96xf32> to vector<1x1x2x96xf32>
    tpu.vector_store %arg10[%c0_14, %c1, %c0_15, %c0_16], %22 {strides = array<i32>} : memref<2x8x2x96xf32, #tpu.memory_space<vmem>>, vector<1x1x2x96xf32>,
    %23 = vector.extract_strided_slice %14 {offsets = [4, 0], sizes = [2, 96], strides = [1, 1]} : vector<16x96xf32> to vector<2x96xf32>
    %c0_17 = arith.constant 0 : index
    %c2 = arith.constant 2 : index
    %c0_18 = arith.constant 0 : index
    %c0_19 = arith.constant 0 : index
    %24 = vector.load %arg10[%c0_17, %c2, %c0_18, %c0_19] : memref<2x8x2x96xf32, #tpu.memory_space<vmem>>, vector<1x1x2x96xf32>
    %25 = vector.shape_cast %24 : vector<1x1x2x96xf32> to vector<2x96xf32>
    %26 = vector.shape_cast %23 : vector<2x96xf32> to vector<1x1x2x96xf32>
    tpu.vector_store %arg10[%c0_17, %c2, %c0_18, %c0_19], %26 {strides = array<i32>} : memref<2x8x2x96xf32, #tpu.memory_space<vmem>>, vector<1x1x2x96xf32>,
    %27 = vector.extract_strided_slice %14 {offsets = [6, 0], sizes = [2, 96], strides = [1, 1]} : vector<16x96xf32> to vector<2x96xf32>
    %c0_20 = arith.constant 0 : index
    %c3 = arith.constant 3 : index
    %c0_21 = arith.constant 0 : index
    %c0_22 = arith.constant 0 : index
    %28 = vector.load %arg10[%c0_20, %c3, %c0_21, %c0_22] : memref<2x8x2x96xf32, #tpu.memory_space<vmem>>, vector<1x1x2x96xf32>
    %29 = vector.shape_cast %28 : vector<1x1x2x96xf32> to vector<2x96xf32>
    %30 = vector.shape_cast %27 : vector<2x96xf32> to vector<1x1x2x96xf32>
    tpu.vector_store %arg10[%c0_20, %c3, %c0_21, %c0_22], %30 {strides = array<i32>} : memref<2x8x2x96xf32, #tpu.memory_space<vmem>>, vector<1x1x2x96xf32>,
    %31 = vector.extract_strided_slice %14 {offsets = [8, 0], sizes = [2, 96], strides = [1, 1]} : vector<16x96xf32> to vector<2x96xf32>
    %c0_23 = arith.constant 0 : index
    %c4 = arith.constant 4 : index
    %c0_24 = arith.constant 0 : index
    %c0_25 = arith.constant 0 : index
    %32 = vector.load %arg10[%c0_23, %c4, %c0_24, %c0_25] : memref<2x8x2x96xf32, #tpu.memory_space<vmem>>, vector<1x1x2x96xf32>
    %33 = vector.shape_cast %32 : vector<1x1x2x96xf32> to vector<2x96xf32>
    %34 = vector.shape_cast %31 : vector<2x96xf32> to vector<1x1x2x96xf32>
    tpu.vector_store %arg10[%c0_23, %c4, %c0_24, %c0_25], %34 {strides = array<i32>} : memref<2x8x2x96xf32, #tpu.memory_space<vmem>>, vector<1x1x2x96xf32>,
    %35 = vector.extract_strided_slice %14 {offsets = [10, 0], sizes = [2, 96], strides = [1, 1]} : vector<16x96xf32> to vector<2x96xf32>
    %c0_26 = arith.constant 0 : index
    %c5 = arith.constant 5 : index
    %c0_27 = arith.constant 0 : index
    %c0_28 = arith.constant 0 : index
    %36 = vector.load %arg10[%c0_26, %c5, %c0_27, %c0_28] : memref<2x8x2x96xf32, #tpu.memory_space<vmem>>, vector<1x1x2x96xf32>
    %37 = vector.shape_cast %36 : vector<1x1x2x96xf32> to vector<2x96xf32>
    %38 = vector.shape_cast %35 : vector<2x96xf32> to vector<1x1x2x96xf32>
    tpu.vector_store %arg10[%c0_26, %c5, %c0_27, %c0_28], %38 {strides = array<i32>} : memref<2x8x2x96xf32, #tpu.memory_space<vmem>>, vector<1x1x2x96xf32>,
    %39 = vector.extract_strided_slice %14 {offsets = [12, 0], sizes = [2, 96], strides = [1, 1]} : vector<16x96xf32> to vector<2x96xf32>
    %c0_29 = arith.constant 0 : index
    %c6 = arith.constant 6 : index
    %c0_30 = arith.constant 0 : index
    %c0_31 = arith.constant 0 : index
    %40 = vector.load %arg10[%c0_29, %c6, %c0_30, %c0_31] : memref<2x8x2x96xf32, #tpu.memory_space<vmem>>, vector<1x1x2x96xf32>
    %41 = vector.shape_cast %40 : vector<1x1x2x96xf32> to vector<2x96xf32>
    %42 = vector.shape_cast %39 : vector<2x96xf32> to vector<1x1x2x96xf32>
    tpu.vector_store %arg10[%c0_29, %c6, %c0_30, %c0_31], %42 {strides = array<i32>} : memref<2x8x2x96xf32, #tpu.memory_space<vmem>>, vector<1x1x2x96xf32>,
    %43 = vector.extract_strided_slice %14 {offsets = [14, 0], sizes = [2, 96], strides = [1, 1]} : vector<16x96xf32> to vector<2x96xf32>
    %c0_32 = arith.constant 0 : index
    %c7 = arith.constant 7 : index
    %c0_33 = arith.constant 0 : index
    %c0_34 = arith.constant 0 : index
    %44 = vector.load %arg10[%c0_32, %c7, %c0_33, %c0_34] : memref<2x8x2x96xf32, #tpu.memory_space<vmem>>, vector<1x1x2x96xf32>
    %45 = vector.shape_cast %44 : vector<1x1x2x96xf32> to vector<2x96xf32>
    %46 = vector.shape_cast %43 : vector<2x96xf32> to vector<1x1x2x96xf32>
    tpu.vector_store %arg10[%c0_32, %c7, %c0_33, %c0_34], %46 {strides = array<i32>} : memref<2x8x2x96xf32, #tpu.memory_space<vmem>>, vector<1x1x2x96xf32>,
    %c1_35 = arith.constant 1 : index
    %c0_36 = arith.constant 0 : index
    %c0_37 = arith.constant 0 : index
    %47 = vector.load %arg4[%c1_35, %c0_36, %c0_37] : memref<2x32x96xf32, #tpu.memory_space<vmem>>, vector<1x32x96xf32>
    %48 = vector.shape_cast %47 : vector<1x32x96xf32> to vector<32x96xf32>
    %cst_38 = arith.constant dense<0.000000e+00> : vector<16x96xf32>
    %49 = tpu.matmul %7, %48, %cst_38 {dimension_numbers = #tpu.dot_dimension_numbers<[1], [0], [0], [1], [0, 0, 1, 1], [], []>} : vector<16x32xf32>, vector<32x96xf32>, vector<16x96xf32> -> vector<16x96xf32>
    %c1_39 = arith.constant 1 : index
    %c0_40 = arith.constant 0 : index
    %c0_41 = arith.constant 0 : index
    %50 = vector.load %arg6[%c1_39, %c0_40, %c0_41] : memref<2x1x96xf32, #tpu.memory_space<vmem>>, vector<1x1x96xf32>
    %51 = vector.shape_cast %50 : vector<1x1x96xf32> to vector<1x96xf32>
    %52 = vector.broadcast %51 : vector<1x96xf32> to vector<16x96xf32>
    %53 = arith.addf %49, %52 : vector<16x96xf32>
    %54 = vector.extract_strided_slice %53 {offsets = [0, 0], sizes = [2, 96], strides = [1, 1]} : vector<16x96xf32> to vector<2x96xf32>
    %c1_42 = arith.constant 1 : index
    %c0_43 = arith.constant 0 : index
    %c0_44 = arith.constant 0 : index
    %c0_45 = arith.constant 0 : index
    %55 = vector.load %arg10[%c1_42, %c0_43, %c0_44, %c0_45] : memref<2x8x2x96xf32, #tpu.memory_space<vmem>>, vector<1x1x2x96xf32>
    %56 = vector.shape_cast %55 : vector<1x1x2x96xf32> to vector<2x96xf32>
    %57 = vector.shape_cast %54 : vector<2x96xf32> to vector<1x1x2x96xf32>
    tpu.vector_store %arg10[%c1_42, %c0_43, %c0_44, %c0_45], %57 {strides = array<i32>} : memref<2x8x2x96xf32, #tpu.memory_space<vmem>>, vector<1x1x2x96xf32>,
    %58 = vector.extract_strided_slice %53 {offsets = [2, 0], sizes = [2, 96], strides = [1, 1]} : vector<16x96xf32> to vector<2x96xf32>
    %c1_46 = arith.constant 1 : index
    %c1_47 = arith.constant 1 : index
    %c0_48 = arith.constant 0 : index
    %c0_49 = arith.constant 0 : index
    %59 = vector.load %arg10[%c1_46, %c1_47, %c0_48, %c0_49] : memref<2x8x2x96xf32, #tpu.memory_space<vmem>>, vector<1x1x2x96xf32>
    %60 = vector.shape_cast %59 : vector<1x1x2x96xf32> to vector<2x96xf32>
    %61 = vector.shape_cast %58 : vector<2x96xf32> to vector<1x1x2x96xf32>
    tpu.vector_store %arg10[%c1_46, %c1_47, %c0_48, %c0_49], %61 {strides = array<i32>} : memref<2x8x2x96xf32, #tpu.memory_space<vmem>>, vector<1x1x2x96xf32>,
    %62 = vector.extract_strided_slice %53 {offsets = [4, 0], sizes = [2, 96], strides = [1, 1]} : vector<16x96xf32> to vector<2x96xf32>
    %c1_50 = arith.constant 1 : index
    %c2_51 = arith.constant 2 : index
    %c0_52 = arith.constant 0 : index
    %c0_53 = arith.constant 0 : index
    %63 = vector.load %arg10[%c1_50, %c2_51, %c0_52, %c0_53] : memref<2x8x2x96xf32, #tpu.memory_space<vmem>>, vector<1x1x2x96xf32>
    %64 = vector.shape_cast %63 : vector<1x1x2x96xf32> to vector<2x96xf32>
    %65 = vector.shape_cast %62 : vector<2x96xf32> to vector<1x1x2x96xf32>
    tpu.vector_store %arg10[%c1_50, %c2_51, %c0_52, %c0_53], %65 {strides = array<i32>} : memref<2x8x2x96xf32, #tpu.memory_space<vmem>>, vector<1x1x2x96xf32>,
    %66 = vector.extract_strided_slice %53 {offsets = [6, 0], sizes = [2, 96], strides = [1, 1]} : vector<16x96xf32> to vector<2x96xf32>
    %c1_54 = arith.constant 1 : index
    %c3_55 = arith.constant 3 : index
    %c0_56 = arith.constant 0 : index
    %c0_57 = arith.constant 0 : index
    %67 = vector.load %arg10[%c1_54, %c3_55, %c0_56, %c0_57] : memref<2x8x2x96xf32, #tpu.memory_space<vmem>>, vector<1x1x2x96xf32>
    %68 = vector.shape_cast %67 : vector<1x1x2x96xf32> to vector<2x96xf32>
    %69 = vector.shape_cast %66 : vector<2x96xf32> to vector<1x1x2x96xf32>
    tpu.vector_store %arg10[%c1_54, %c3_55, %c0_56, %c0_57], %69 {strides = array<i32>} : memref<2x8x2x96xf32, #tpu.memory_space<vmem>>, vector<1x1x2x96xf32>,
    %70 = vector.extract_strided_slice %53 {offsets = [8, 0], sizes = [2, 96], strides = [1, 1]} : vector<16x96xf32> to vector<2x96xf32>
    %c1_58 = arith.constant 1 : index
    %c4_59 = arith.constant 4 : index
    %c0_60 = arith.constant 0 : index
    %c0_61 = arith.constant 0 : index
    %71 = vector.load %arg10[%c1_58, %c4_59, %c0_60, %c0_61] : memref<2x8x2x96xf32, #tpu.memory_space<vmem>>, vector<1x1x2x96xf32>
    %72 = vector.shape_cast %71 : vector<1x1x2x96xf32> to vector<2x96xf32>
    %73 = vector.shape_cast %70 : vector<2x96xf32> to vector<1x1x2x96xf32>
    tpu.vector_store %arg10[%c1_58, %c4_59, %c0_60, %c0_61], %73 {strides = array<i32>} : memref<2x8x2x96xf32, #tpu.memory_space<vmem>>, vector<1x1x2x96xf32>,
    %74 = vector.extract_strided_slice %53 {offsets = [10, 0], sizes = [2, 96], strides = [1, 1]} : vector<16x96xf32> to vector<2x96xf32>
    %c1_62 = arith.constant 1 : index
    %c5_63 = arith.constant 5 : index
    %c0_64 = arith.constant 0 : index
    %c0_65 = arith.constant 0 : index
    %75 = vector.load %arg10[%c1_62, %c5_63, %c0_64, %c0_65] : memref<2x8x2x96xf32, #tpu.memory_space<vmem>>, vector<1x1x2x96xf32>
    %76 = vector.shape_cast %75 : vector<1x1x2x96xf32> to vector<2x96xf32>
    %77 = vector.shape_cast %74 : vector<2x96xf32> to vector<1x1x2x96xf32>
    tpu.vector_store %arg10[%c1_62, %c5_63, %c0_64, %c0_65], %77 {strides = array<i32>} : memref<2x8x2x96xf32, #tpu.memory_space<vmem>>, vector<1x1x2x96xf32>,
    %78 = vector.extract_strided_slice %53 {offsets = [12, 0], sizes = [2, 96], strides = [1, 1]} : vector<16x96xf32> to vector<2x96xf32>
    %c1_66 = arith.constant 1 : index
    %c6_67 = arith.constant 6 : index
    %c0_68 = arith.constant 0 : index
    %c0_69 = arith.constant 0 : index
    %79 = vector.load %arg10[%c1_66, %c6_67, %c0_68, %c0_69] : memref<2x8x2x96xf32, #tpu.memory_space<vmem>>, vector<1x1x2x96xf32>
    %80 = vector.shape_cast %79 : vector<1x1x2x96xf32> to vector<2x96xf32>
    %81 = vector.shape_cast %78 : vector<2x96xf32> to vector<1x1x2x96xf32>
    tpu.vector_store %arg10[%c1_66, %c6_67, %c0_68, %c0_69], %81 {strides = array<i32>} : memref<2x8x2x96xf32, #tpu.memory_space<vmem>>, vector<1x1x2x96xf32>,
    %82 = vector.extract_strided_slice %53 {offsets = [14, 0], sizes = [2, 96], strides = [1, 1]} : vector<16x96xf32> to vector<2x96xf32>
    %c1_70 = arith.constant 1 : index
    %c7_71 = arith.constant 7 : index
    %c0_72 = arith.constant 0 : index
    %c0_73 = arith.constant 0 : index
    %83 = vector.load %arg10[%c1_70, %c7_71, %c0_72, %c0_73] : memref<2x8x2x96xf32, #tpu.memory_space<vmem>>, vector<1x1x2x96xf32>
    %84 = vector.shape_cast %83 : vector<1x1x2x96xf32> to vector<2x96xf32>
    %85 = vector.shape_cast %82 : vector<2x96xf32> to vector<1x1x2x96xf32>
    tpu.vector_store %arg10[%c1_70, %c7_71, %c0_72, %c0_73], %85 {strides = array<i32>} : memref<2x8x2x96xf32, #tpu.memory_space<vmem>>, vector<1x1x2x96xf32>,
    %c0_74 = arith.constant 0 : index
    %c0_75 = arith.constant 0 : index
    %86 = vector.load %arg1[%c0_74, %c0_75] : memref<2x1xi32, #tpu.memory_space<vmem>>, vector<2x1xi32>
    %c0_76 = arith.constant 0 : index
    %c0_77 = arith.constant 0 : index
    %c0_78 = arith.constant 0 : index
    %87 = vector.load %arg5[%c0_76, %c0_77, %c0_78] : memref<2x32x96xf32, #tpu.memory_space<vmem>>, vector<1x32x96xf32>
    %88 = vector.shape_cast %87 : vector<1x32x96xf32> to vector<32x96xf32>
    %c1_79 = arith.constant 1 : index
    %c0_80 = arith.constant 0 : index
    %c0_81 = arith.constant 0 : index
    %89 = vector.load %arg5[%c1_79, %c0_80, %c0_81] : memref<2x32x96xf32, #tpu.memory_space<vmem>>, vector<1x32x96xf32>
    %90 = vector.shape_cast %89 : vector<1x32x96xf32> to vector<32x96xf32>
    %c0_82 = arith.constant 0 : index
    %c0_83 = arith.constant 0 : index
    %c0_84 = arith.constant 0 : index
    %91 = vector.load %arg7[%c0_82, %c0_83, %c0_84] : memref<2x1x32xf32, #tpu.memory_space<vmem>>, vector<1x1x32xf32>
    %92 = vector.shape_cast %91 : vector<1x1x32xf32> to vector<1x32xf32>
    %c1_85 = arith.constant 1 : index
    %c0_86 = arith.constant 0 : index
    %c0_87 = arith.constant 0 : index
    %93 = vector.load %arg7[%c1_85, %c0_86, %c0_87] : memref<2x1x32xf32, #tpu.memory_space<vmem>>, vector<1x1x32xf32>
    %94 = vector.shape_cast %93 : vector<1x1x32xf32> to vector<1x32xf32>
    %c0_88 = arith.constant 0 : index
    %c0_89 = arith.constant 0 : index
    %c0_90 = arith.constant 0 : index
    %95 = vector.load %arg3[%c0_88, %c0_89, %c0_90] : memref<2x2x32xf32, #tpu.memory_space<vmem>>, vector<1x2x32xf32>
    %96 = vector.shape_cast %95 : vector<1x2x32xf32> to vector<2x32xf32>
    %c1_91 = arith.constant 1 : index
    %c0_92 = arith.constant 0 : index
    %c0_93 = arith.constant 0 : index
    %97 = vector.load %arg3[%c1_91, %c0_92, %c0_93] : memref<2x2x32xf32, #tpu.memory_space<vmem>>, vector<1x2x32xf32>
    %98 = vector.shape_cast %97 : vector<1x2x32xf32> to vector<2x32xf32>
    %c0_i32 = arith.constant 0 : i32
    %c7_i32 = arith.constant 7 : i32
    %99 = arith.subi %c7_i32, %c0_i32 : i32
    %100 = vector.broadcast %c0_i32 : i32 to vector<2x1xi32>
    %101 = arith.cmpi slt, %100, %86 : vector<2x1xi32>
    %c0_94 = arith.constant 0 : index
    %102 = arith.index_cast %c0_i32 : i32 to index
    %c0_95 = arith.constant 0 : index
    %c0_96 = arith.constant 0 : index
    %103 = vector.load %arg10[%c0_94, %102, %c0_95, %c0_96] : memref<2x8x2x96xf32, #tpu.memory_space<vmem>>, vector<1x1x2x96xf32>
    %104 = vector.shape_cast %103 : vector<1x1x2x96xf32> to vector<2x96xf32>
    %cst_97 = arith.constant dense<0.000000e+00> : vector<2x96xf32>
    %105 = tpu.matmul %96, %88, %cst_97 {dimension_numbers = #tpu.dot_dimension_numbers<[1], [0], [0], [1], [0, 0, 1, 1], [], []>} : vector<2x32xf32>, vector<32x96xf32>, vector<2x96xf32> -> vector<2x96xf32>
    %106 = vector.extract_strided_slice %104 {offsets = [0, 0], sizes = [2, 32], strides = [1, 1]} : vector<2x96xf32> to vector<2x32xf32>
    %107 = vector.extract_strided_slice %105 {offsets = [0, 0], sizes = [2, 32], strides = [1, 1]} : vector<2x96xf32> to vector<2x32xf32>
    %108 = arith.addf %106, %107 : vector<2x32xf32>
    %109 = arith.negf %108 : vector<2x32xf32>
    %110 = math.exp %109 : vector<2x32xf32>
    %cst_98 = arith.constant 1.000000e+00 : f32
    %111 = vector.broadcast %cst_98 : f32 to vector<2x32xf32>
    %112 = arith.addf %111, %110 : vector<2x32xf32>
    %113 = arith.divf %111, %112 : vector<2x32xf32>
    %114 = vector.extract_strided_slice %104 {offsets = [0, 32], sizes = [2, 32], strides = [1, 1]} : vector<2x96xf32> to vector<2x32xf32>
    %115 = vector.extract_strided_slice %105 {offsets = [0, 32], sizes = [2, 32], strides = [1, 1]} : vector<2x96xf32> to vector<2x32xf32>
    %116 = arith.addf %114, %115 : vector<2x32xf32>
    %117 = arith.negf %116 : vector<2x32xf32>
    %118 = math.exp %117 : vector<2x32xf32>
    %cst_99 = arith.constant 1.000000e+00 : f32
    %119 = vector.broadcast %cst_99 : f32 to vector<2x32xf32>
    %120 = arith.addf %119, %118 : vector<2x32xf32>
    %121 = arith.divf %119, %120 : vector<2x32xf32>
    %122 = vector.extract_strided_slice %104 {offsets = [0, 64], sizes = [2, 32], strides = [1, 1]} : vector<2x96xf32> to vector<2x32xf32>
    %123 = vector.extract_strided_slice %105 {offsets = [0, 64], sizes = [2, 32], strides = [1, 1]} : vector<2x96xf32> to vector<2x32xf32>
    %124 = vector.broadcast %92 : vector<1x32xf32> to vector<2x32xf32>
    %125 = arith.addf %123, %124 : vector<2x32xf32>
    %126 = arith.mulf %113, %125 : vector<2x32xf32>
    %127 = arith.addf %122, %126 : vector<2x32xf32>
    %128 = math.tanh %127 : vector<2x32xf32>
    %cst_100 = arith.constant 1.000000e+00 : f32
    %129 = vector.broadcast %cst_100 : f32 to vector<2x32xf32>
    %130 = arith.subf %129, %121 : vector<2x32xf32>
    %131 = arith.mulf %130, %128 : vector<2x32xf32>
    %132 = arith.mulf %121, %96 : vector<2x32xf32>
    %133 = arith.addf %131, %132 : vector<2x32xf32>
    %134 = vector.shape_cast %101 : vector<2x1xi1> to vector<2x1xi1>
    %135 = vector.broadcast %134 : vector<2x1xi1> to vector<2x32xi1>
    %136 = arith.select %135, %133, %96 : vector<2x32xi1>, vector<2x32xf32>
    %cst_101 = arith.constant 0.000000e+00 : f32
    %137 = vector.shape_cast %101 : vector<2x1xi1> to vector<2x1xi1>
    %138 = vector.broadcast %137 : vector<2x1xi1> to vector<2x32xi1>
    %139 = vector.broadcast %cst_101 : f32 to vector<2x32xf32>
    %140 = arith.select %138, %136, %139 : vector<2x32xi1>, vector<2x32xf32>
    %c0_102 = arith.constant 0 : index
    %141 = arith.index_cast %c0_i32 : i32 to index
    %c0_103 = arith.constant 0 : index
    %c0_104 = arith.constant 0 : index
    %142 = vector.load %arg11[%c0_102, %141, %c0_103, %c0_104] : memref<2x8x2x32xf32, #tpu.memory_space<vmem>>, vector<1x1x2x32xf32>
    %143 = vector.shape_cast %142 : vector<1x1x2x32xf32> to vector<2x32xf32>
    %144 = vector.shape_cast %140 : vector<2x32xf32> to vector<1x1x2x32xf32>
    tpu.vector_store %arg11[%c0_102, %141, %c0_103, %c0_104], %144 {strides = array<i32>} : memref<2x8x2x32xf32, #tpu.memory_space<vmem>>, vector<1x1x2x32xf32>,
    %145 = vector.broadcast %99 : i32 to vector<2x1xi32>
    %146 = arith.cmpi slt, %145, %86 : vector<2x1xi32>
    %c1_105 = arith.constant 1 : index
    %147 = arith.index_cast %99 : i32 to index
    %c0_106 = arith.constant 0 : index
    %c0_107 = arith.constant 0 : index
    %148 = vector.load %arg10[%c1_105, %147, %c0_106, %c0_107] : memref<2x8x2x96xf32, #tpu.memory_space<vmem>>, vector<1x1x2x96xf32>
    %149 = vector.shape_cast %148 : vector<1x1x2x96xf32> to vector<2x96xf32>
    %cst_108 = arith.constant dense<0.000000e+00> : vector<2x96xf32>
    %150 = tpu.matmul %98, %90, %cst_108 {dimension_numbers = #tpu.dot_dimension_numbers<[1], [0], [0], [1], [0, 0, 1, 1], [], []>} : vector<2x32xf32>, vector<32x96xf32>, vector<2x96xf32> -> vector<2x96xf32>
    %151 = vector.extract_strided_slice %149 {offsets = [0, 0], sizes = [2, 32], strides = [1, 1]} : vector<2x96xf32> to vector<2x32xf32>
    %152 = vector.extract_strided_slice %150 {offsets = [0, 0], sizes = [2, 32], strides = [1, 1]} : vector<2x96xf32> to vector<2x32xf32>
    %153 = arith.addf %151, %152 : vector<2x32xf32>
    %154 = arith.negf %153 : vector<2x32xf32>
    %155 = math.exp %154 : vector<2x32xf32>
    %cst_109 = arith.constant 1.000000e+00 : f32
    %156 = vector.broadcast %cst_109 : f32 to vector<2x32xf32>
    %157 = arith.addf %156, %155 : vector<2x32xf32>
    %158 = arith.divf %156, %157 : vector<2x32xf32>
    %159 = vector.extract_strided_slice %149 {offsets = [0, 32], sizes = [2, 32], strides = [1, 1]} : vector<2x96xf32> to vector<2x32xf32>
    %160 = vector.extract_strided_slice %150 {offsets = [0, 32], sizes = [2, 32], strides = [1, 1]} : vector<2x96xf32> to vector<2x32xf32>
    %161 = arith.addf %159, %160 : vector<2x32xf32>
    %162 = arith.negf %161 : vector<2x32xf32>
    %163 = math.exp %162 : vector<2x32xf32>
    %cst_110 = arith.constant 1.000000e+00 : f32
    %164 = vector.broadcast %cst_110 : f32 to vector<2x32xf32>
    %165 = arith.addf %164, %163 : vector<2x32xf32>
    %166 = arith.divf %164, %165 : vector<2x32xf32>
    %167 = vector.extract_strided_slice %149 {offsets = [0, 64], sizes = [2, 32], strides = [1, 1]} : vector<2x96xf32> to vector<2x32xf32>
    %168 = vector.extract_strided_slice %150 {offsets = [0, 64], sizes = [2, 32], strides = [1, 1]} : vector<2x96xf32> to vector<2x32xf32>
    %169 = vector.broadcast %94 : vector<1x32xf32> to vector<2x32xf32>
    %170 = arith.addf %168, %169 : vector<2x32xf32>
    %171 = arith.mulf %158, %170 : vector<2x32xf32>
    %172 = arith.addf %167, %171 : vector<2x32xf32>
    %173 = math.tanh %172 : vector<2x32xf32>
    %cst_111 = arith.constant 1.000000e+00 : f32
    %174 = vector.broadcast %cst_111 : f32 to vector<2x32xf32>
    %175 = arith.subf %174, %166 : vector<2x32xf32>
    %176 = arith.mulf %175, %173 : vector<2x32xf32>
    %177 = arith.mulf %166, %98 : vector<2x32xf32>
    %178 = arith.addf %176, %177 : vector<2x32xf32>
    %179 = vector.shape_cast %146 : vector<2x1xi1> to vector<2x1xi1>
    %180 = vector.broadcast %179 : vector<2x1xi1> to vector<2x32xi1>
    %181 = arith.select %180, %178, %98 : vector<2x32xi1>, vector<2x32xf32>
    %cst_112 = arith.constant 0.000000e+00 : f32
    %182 = vector.shape_cast %146 : vector<2x1xi1> to vector<2x1xi1>
    %183 = vector.broadcast %182 : vector<2x1xi1> to vector<2x32xi1>
    %184 = vector.broadcast %cst_112 : f32 to vector<2x32xf32>
    %185 = arith.select %183, %181, %184 : vector<2x32xi1>, vector<2x32xf32>
    %c1_113 = arith.constant 1 : index
    %186 = arith.index_cast %99 : i32 to index
    %c0_114 = arith.constant 0 : index
    %c0_115 = arith.constant 0 : index
    %187 = vector.load %arg11[%c1_113, %186, %c0_114, %c0_115] : memref<2x8x2x32xf32, #tpu.memory_space<vmem>>, vector<1x1x2x32xf32>
    %188 = vector.shape_cast %187 : vector<1x1x2x32xf32> to vector<2x32xf32>
    %189 = vector.shape_cast %185 : vector<2x32xf32> to vector<1x1x2x32xf32>
    tpu.vector_store %arg11[%c1_113, %186, %c0_114, %c0_115], %189 {strides = array<i32>} : memref<2x8x2x32xf32, #tpu.memory_space<vmem>>, vector<1x1x2x32xf32>,
    %c1_i32 = arith.constant 1 : i32
    %c7_i32_116 = arith.constant 7 : i32
    %190 = arith.subi %c7_i32_116, %c1_i32 : i32
    %191 = vector.broadcast %c1_i32 : i32 to vector<2x1xi32>
    %192 = arith.cmpi slt, %191, %86 : vector<2x1xi32>
    %c0_117 = arith.constant 0 : index
    %193 = arith.index_cast %c1_i32 : i32 to index
    %c0_118 = arith.constant 0 : index
    %c0_119 = arith.constant 0 : index
    %194 = vector.load %arg10[%c0_117, %193, %c0_118, %c0_119] : memref<2x8x2x96xf32, #tpu.memory_space<vmem>>, vector<1x1x2x96xf32>
    %195 = vector.shape_cast %194 : vector<1x1x2x96xf32> to vector<2x96xf32>
    %cst_120 = arith.constant dense<0.000000e+00> : vector<2x96xf32>
    %196 = tpu.matmul %136, %88, %cst_120 {dimension_numbers = #tpu.dot_dimension_numbers<[1], [0], [0], [1], [0, 0, 1, 1], [], []>} : vector<2x32xf32>, vector<32x96xf32>, vector<2x96xf32> -> vector<2x96xf32>
    %197 = vector.extract_strided_slice %195 {offsets = [0, 0], sizes = [2, 32], strides = [1, 1]} : vector<2x96xf32> to vector<2x32xf32>
    %198 = vector.extract_strided_slice %196 {offsets = [0, 0], sizes = [2, 32], strides = [1, 1]} : vector<2x96xf32> to vector<2x32xf32>
    %199 = arith.addf %197, %198 : vector<2x32xf32>
    %200 = arith.negf %199 : vector<2x32xf32>
    %201 = math.exp %200 : vector<2x32xf32>
    %cst_121 = arith.constant 1.000000e+00 : f32
    %202 = vector.broadcast %cst_121 : f32 to vector<2x32xf32>
    %203 = arith.addf %202, %201 : vector<2x32xf32>
    %204 = arith.divf %202, %203 : vector<2x32xf32>
    %205 = vector.extract_strided_slice %195 {offsets = [0, 32], sizes = [2, 32], strides = [1, 1]} : vector<2x96xf32> to vector<2x32xf32>
    %206 = vector.extract_strided_slice %196 {offsets = [0, 32], sizes = [2, 32], strides = [1, 1]} : vector<2x96xf32> to vector<2x32xf32>
    %207 = arith.addf %205, %206 : vector<2x32xf32>
    %208 = arith.negf %207 : vector<2x32xf32>
    %209 = math.exp %208 : vector<2x32xf32>
    %cst_122 = arith.constant 1.000000e+00 : f32
    %210 = vector.broadcast %cst_122 : f32 to vector<2x32xf32>
    %211 = arith.addf %210, %209 : vector<2x32xf32>
    %212 = arith.divf %210, %211 : vector<2x32xf32>
    %213 = vector.extract_strided_slice %195 {offsets = [0, 64], sizes = [2, 32], strides = [1, 1]} : vector<2x96xf32> to vector<2x32xf32>
    %214 = vector.extract_strided_slice %196 {offsets = [0, 64], sizes = [2, 32], strides = [1, 1]} : vector<2x96xf32> to vector<2x32xf32>
    %215 = vector.broadcast %92 : vector<1x32xf32> to vector<2x32xf32>
    %216 = arith.addf %214, %215 : vector<2x32xf32>
    %217 = arith.mulf %204, %216 : vector<2x32xf32>
    %218 = arith.addf %213, %217 : vector<2x32xf32>
    %219 = math.tanh %218 : vector<2x32xf32>
    %cst_123 = arith.constant 1.000000e+00 : f32
    %220 = vector.broadcast %cst_123 : f32 to vector<2x32xf32>
    %221 = arith.subf %220, %212 : vector<2x32xf32>
    %222 = arith.mulf %221, %219 : vector<2x32xf32>
    %223 = arith.mulf %212, %136 : vector<2x32xf32>
    %224 = arith.addf %222, %223 : vector<2x32xf32>
    %225 = vector.shape_cast %192 : vector<2x1xi1> to vector<2x1xi1>
    %226 = vector.broadcast %225 : vector<2x1xi1> to vector<2x32xi1>
    %227 = arith.select %226, %224, %136 : vector<2x32xi1>, vector<2x32xf32>
    %cst_124 = arith.constant 0.000000e+00 : f32
    %228 = vector.shape_cast %192 : vector<2x1xi1> to vector<2x1xi1>
    %229 = vector.broadcast %228 : vector<2x1xi1> to vector<2x32xi1>
    %230 = vector.broadcast %cst_124 : f32 to vector<2x32xf32>
    %231 = arith.select %229, %227, %230 : vector<2x32xi1>, vector<2x32xf32>
    %c0_125 = arith.constant 0 : index
    %232 = arith.index_cast %c1_i32 : i32 to index
    %c0_126 = arith.constant 0 : index
    %c0_127 = arith.constant 0 : index
    %233 = vector.load %arg11[%c0_125, %232, %c0_126, %c0_127] : memref<2x8x2x32xf32, #tpu.memory_space<vmem>>, vector<1x1x2x32xf32>
    %234 = vector.shape_cast %233 : vector<1x1x2x32xf32> to vector<2x32xf32>
    %235 = vector.shape_cast %231 : vector<2x32xf32> to vector<1x1x2x32xf32>
    tpu.vector_store %arg11[%c0_125, %232, %c0_126, %c0_127], %235 {strides = array<i32>} : memref<2x8x2x32xf32, #tpu.memory_space<vmem>>, vector<1x1x2x32xf32>,
    %236 = vector.broadcast %190 : i32 to vector<2x1xi32>
    %237 = arith.cmpi slt, %236, %86 : vector<2x1xi32>
    %c1_128 = arith.constant 1 : index
    %238 = arith.index_cast %190 : i32 to index
    %c0_129 = arith.constant 0 : index
    %c0_130 = arith.constant 0 : index
    %239 = vector.load %arg10[%c1_128, %238, %c0_129, %c0_130] : memref<2x8x2x96xf32, #tpu.memory_space<vmem>>, vector<1x1x2x96xf32>
    %240 = vector.shape_cast %239 : vector<1x1x2x96xf32> to vector<2x96xf32>
    %cst_131 = arith.constant dense<0.000000e+00> : vector<2x96xf32>
    %241 = tpu.matmul %181, %90, %cst_131 {dimension_numbers = #tpu.dot_dimension_numbers<[1], [0], [0], [1], [0, 0, 1, 1], [], []>} : vector<2x32xf32>, vector<32x96xf32>, vector<2x96xf32> -> vector<2x96xf32>
    %242 = vector.extract_strided_slice %240 {offsets = [0, 0], sizes = [2, 32], strides = [1, 1]} : vector<2x96xf32> to vector<2x32xf32>
    %243 = vector.extract_strided_slice %241 {offsets = [0, 0], sizes = [2, 32], strides = [1, 1]} : vector<2x96xf32> to vector<2x32xf32>
    %244 = arith.addf %242, %243 : vector<2x32xf32>
    %245 = arith.negf %244 : vector<2x32xf32>
    %246 = math.exp %245 : vector<2x32xf32>
    %cst_132 = arith.constant 1.000000e+00 : f32
    %247 = vector.broadcast %cst_132 : f32 to vector<2x32xf32>
    %248 = arith.addf %247, %246 : vector<2x32xf32>
    %249 = arith.divf %247, %248 : vector<2x32xf32>
    %250 = vector.extract_strided_slice %240 {offsets = [0, 32], sizes = [2, 32], strides = [1, 1]} : vector<2x96xf32> to vector<2x32xf32>
    %251 = vector.extract_strided_slice %241 {offsets = [0, 32], sizes = [2, 32], strides = [1, 1]} : vector<2x96xf32> to vector<2x32xf32>
    %252 = arith.addf %250, %251 : vector<2x32xf32>
    %253 = arith.negf %252 : vector<2x32xf32>
    %254 = math.exp %253 : vector<2x32xf32>
    %cst_133 = arith.constant 1.000000e+00 : f32
    %255 = vector.broadcast %cst_133 : f32 to vector<2x32xf32>
    %256 = arith.addf %255, %254 : vector<2x32xf32>
    %257 = arith.divf %255, %256 : vector<2x32xf32>
    %258 = vector.extract_strided_slice %240 {offsets = [0, 64], sizes = [2, 32], strides = [1, 1]} : vector<2x96xf32> to vector<2x32xf32>
    %259 = vector.extract_strided_slice %241 {offsets = [0, 64], sizes = [2, 32], strides = [1, 1]} : vector<2x96xf32> to vector<2x32xf32>
    %260 = vector.broadcast %94 : vector<1x32xf32> to vector<2x32xf32>
    %261 = arith.addf %259, %260 : vector<2x32xf32>
    %262 = arith.mulf %249, %261 : vector<2x32xf32>
    %263 = arith.addf %258, %262 : vector<2x32xf32>
    %264 = math.tanh %263 : vector<2x32xf32>
    %cst_134 = arith.constant 1.000000e+00 : f32
    %265 = vector.broadcast %cst_134 : f32 to vector<2x32xf32>
    %266 = arith.subf %265, %257 : vector<2x32xf32>
    %267 = arith.mulf %266, %264 : vector<2x32xf32>
    %268 = arith.mulf %257, %181 : vector<2x32xf32>
    %269 = arith.addf %267, %268 : vector<2x32xf32>
    %270 = vector.shape_cast %237 : vector<2x1xi1> to vector<2x1xi1>
    %271 = vector.broadcast %270 : vector<2x1xi1> to vector<2x32xi1>
    %272 = arith.select %271, %269, %181 : vector<2x32xi1>, vector<2x32xf32>
    %cst_135 = arith.constant 0.000000e+00 : f32
    %273 = vector.shape_cast %237 : vector<2x1xi1> to vector<2x1xi1>
    %274 = vector.broadcast %273 : vector<2x1xi1> to vector<2x32xi1>
    %275 = vector.broadcast %cst_135 : f32 to vector<2x32xf32>
    %276 = arith.select %274, %272, %275 : vector<2x32xi1>, vector<2x32xf32>
    %c1_136 = arith.constant 1 : index
    %277 = arith.index_cast %190 : i32 to index
    %c0_137 = arith.constant 0 : index
    %c0_138 = arith.constant 0 : index
    %278 = vector.load %arg11[%c1_136, %277, %c0_137, %c0_138] : memref<2x8x2x32xf32, #tpu.memory_space<vmem>>, vector<1x1x2x32xf32>
    %279 = vector.shape_cast %278 : vector<1x1x2x32xf32> to vector<2x32xf32>
    %280 = vector.shape_cast %276 : vector<2x32xf32> to vector<1x1x2x32xf32>
    tpu.vector_store %arg11[%c1_136, %277, %c0_137, %c0_138], %280 {strides = array<i32>} : memref<2x8x2x32xf32, #tpu.memory_space<vmem>>, vector<1x1x2x32xf32>,
    %c2_i32 = arith.constant 2 : i32
    %c7_i32_139 = arith.constant 7 : i32
    %281 = arith.subi %c7_i32_139, %c2_i32 : i32
    %282 = vector.broadcast %c2_i32 : i32 to vector<2x1xi32>
    %283 = arith.cmpi slt, %282, %86 : vector<2x1xi32>
    %c0_140 = arith.constant 0 : index
    %284 = arith.index_cast %c2_i32 : i32 to index
    %c0_141 = arith.constant 0 : index
    %c0_142 = arith.constant 0 : index
    %285 = vector.load %arg10[%c0_140, %284, %c0_141, %c0_142] : memref<2x8x2x96xf32, #tpu.memory_space<vmem>>, vector<1x1x2x96xf32>
    %286 = vector.shape_cast %285 : vector<1x1x2x96xf32> to vector<2x96xf32>
    %cst_143 = arith.constant dense<0.000000e+00> : vector<2x96xf32>
    %287 = tpu.matmul %227, %88, %cst_143 {dimension_numbers = #tpu.dot_dimension_numbers<[1], [0], [0], [1], [0, 0, 1, 1], [], []>} : vector<2x32xf32>, vector<32x96xf32>, vector<2x96xf32> -> vector<2x96xf32>
    %288 = vector.extract_strided_slice %286 {offsets = [0, 0], sizes = [2, 32], strides = [1, 1]} : vector<2x96xf32> to vector<2x32xf32>
    %289 = vector.extract_strided_slice %287 {offsets = [0, 0], sizes = [2, 32], strides = [1, 1]} : vector<2x96xf32> to vector<2x32xf32>
    %290 = arith.addf %288, %289 : vector<2x32xf32>
    %291 = arith.negf %290 : vector<2x32xf32>
    %292 = math.exp %291 : vector<2x32xf32>
    %cst_144 = arith.constant 1.000000e+00 : f32
    %293 = vector.broadcast %cst_144 : f32 to vector<2x32xf32>
    %294 = arith.addf %293, %292 : vector<2x32xf32>
    %295 = arith.divf %293, %294 : vector<2x32xf32>
    %296 = vector.extract_strided_slice %286 {offsets = [0, 32], sizes = [2, 32], strides = [1, 1]} : vector<2x96xf32> to vector<2x32xf32>
    %297 = vector.extract_strided_slice %287 {offsets = [0, 32], sizes = [2, 32], strides = [1, 1]} : vector<2x96xf32> to vector<2x32xf32>
    %298 = arith.addf %296, %297 : vector<2x32xf32>
    %299 = arith.negf %298 : vector<2x32xf32>
    %300 = math.exp %299 : vector<2x32xf32>
    %cst_145 = arith.constant 1.000000e+00 : f32
    %301 = vector.broadcast %cst_145 : f32 to vector<2x32xf32>
    %302 = arith.addf %301, %300 : vector<2x32xf32>
    %303 = arith.divf %301, %302 : vector<2x32xf32>
    %304 = vector.extract_strided_slice %286 {offsets = [0, 64], sizes = [2, 32], strides = [1, 1]} : vector<2x96xf32> to vector<2x32xf32>
    %305 = vector.extract_strided_slice %287 {offsets = [0, 64], sizes = [2, 32], strides = [1, 1]} : vector<2x96xf32> to vector<2x32xf32>
    %306 = vector.broadcast %92 : vector<1x32xf32> to vector<2x32xf32>
    %307 = arith.addf %305, %306 : vector<2x32xf32>
    %308 = arith.mulf %295, %307 : vector<2x32xf32>
    %309 = arith.addf %304, %308 : vector<2x32xf32>
    %310 = math.tanh %309 : vector<2x32xf32>
    %cst_146 = arith.constant 1.000000e+00 : f32
    %311 = vector.broadcast %cst_146 : f32 to vector<2x32xf32>
    %312 = arith.subf %311, %303 : vector<2x32xf32>
    %313 = arith.mulf %312, %310 : vector<2x32xf32>
    %314 = arith.mulf %303, %227 : vector<2x32xf32>
    %315 = arith.addf %313, %314 : vector<2x32xf32>
    %316 = vector.shape_cast %283 : vector<2x1xi1> to vector<2x1xi1>
    %317 = vector.broadcast %316 : vector<2x1xi1> to vector<2x32xi1>
    %318 = arith.select %317, %315, %227 : vector<2x32xi1>, vector<2x32xf32>
    %cst_147 = arith.constant 0.000000e+00 : f32
    %319 = vector.shape_cast %283 : vector<2x1xi1> to vector<2x1xi1>
    %320 = vector.broadcast %319 : vector<2x1xi1> to vector<2x32xi1>
    %321 = vector.broadcast %cst_147 : f32 to vector<2x32xf32>
    %322 = arith.select %320, %318, %321 : vector<2x32xi1>, vector<2x32xf32>
    %c0_148 = arith.constant 0 : index
    %323 = arith.index_cast %c2_i32 : i32 to index
    %c0_149 = arith.constant 0 : index
    %c0_150 = arith.constant 0 : index
    %324 = vector.load %arg11[%c0_148, %323, %c0_149, %c0_150] : memref<2x8x2x32xf32, #tpu.memory_space<vmem>>, vector<1x1x2x32xf32>
    %325 = vector.shape_cast %324 : vector<1x1x2x32xf32> to vector<2x32xf32>
    %326 = vector.shape_cast %322 : vector<2x32xf32> to vector<1x1x2x32xf32>
    tpu.vector_store %arg11[%c0_148, %323, %c0_149, %c0_150], %326 {strides = array<i32>} : memref<2x8x2x32xf32, #tpu.memory_space<vmem>>, vector<1x1x2x32xf32>,
    %327 = vector.broadcast %281 : i32 to vector<2x1xi32>
    %328 = arith.cmpi slt, %327, %86 : vector<2x1xi32>
    %c1_151 = arith.constant 1 : index
    %329 = arith.index_cast %281 : i32 to index
    %c0_152 = arith.constant 0 : index
    %c0_153 = arith.constant 0 : index
    %330 = vector.load %arg10[%c1_151, %329, %c0_152, %c0_153] : memref<2x8x2x96xf32, #tpu.memory_space<vmem>>, vector<1x1x2x96xf32>
    %331 = vector.shape_cast %330 : vector<1x1x2x96xf32> to vector<2x96xf32>
    %cst_154 = arith.constant dense<0.000000e+00> : vector<2x96xf32>
    %332 = tpu.matmul %272, %90, %cst_154 {dimension_numbers = #tpu.dot_dimension_numbers<[1], [0], [0], [1], [0, 0, 1, 1], [], []>} : vector<2x32xf32>, vector<32x96xf32>, vector<2x96xf32> -> vector<2x96xf32>
    %333 = vector.extract_strided_slice %331 {offsets = [0, 0], sizes = [2, 32], strides = [1, 1]} : vector<2x96xf32> to vector<2x32xf32>
    %334 = vector.extract_strided_slice %332 {offsets = [0, 0], sizes = [2, 32], strides = [1, 1]} : vector<2x96xf32> to vector<2x32xf32>
    %335 = arith.addf %333, %334 : vector<2x32xf32>
    %336 = arith.negf %335 : vector<2x32xf32>
    %337 = math.exp %336 : vector<2x32xf32>
    %cst_155 = arith.constant 1.000000e+00 : f32
    %338 = vector.broadcast %cst_155 : f32 to vector<2x32xf32>
    %339 = arith.addf %338, %337 : vector<2x32xf32>
    %340 = arith.divf %338, %339 : vector<2x32xf32>
    %341 = vector.extract_strided_slice %331 {offsets = [0, 32], sizes = [2, 32], strides = [1, 1]} : vector<2x96xf32> to vector<2x32xf32>
    %342 = vector.extract_strided_slice %332 {offsets = [0, 32], sizes = [2, 32], strides = [1, 1]} : vector<2x96xf32> to vector<2x32xf32>
    %343 = arith.addf %341, %342 : vector<2x32xf32>
    %344 = arith.negf %343 : vector<2x32xf32>
    %345 = math.exp %344 : vector<2x32xf32>
    %cst_156 = arith.constant 1.000000e+00 : f32
    %346 = vector.broadcast %cst_156 : f32 to vector<2x32xf32>
    %347 = arith.addf %346, %345 : vector<2x32xf32>
    %348 = arith.divf %346, %347 : vector<2x32xf32>
    %349 = vector.extract_strided_slice %331 {offsets = [0, 64], sizes = [2, 32], strides = [1, 1]} : vector<2x96xf32> to vector<2x32xf32>
    %350 = vector.extract_strided_slice %332 {offsets = [0, 64], sizes = [2, 32], strides = [1, 1]} : vector<2x96xf32> to vector<2x32xf32>
    %351 = vector.broadcast %94 : vector<1x32xf32> to vector<2x32xf32>
    %352 = arith.addf %350, %351 : vector<2x32xf32>
    %353 = arith.mulf %340, %352 : vector<2x32xf32>
    %354 = arith.addf %349, %353 : vector<2x32xf32>
    %355 = math.tanh %354 : vector<2x32xf32>
    %cst_157 = arith.constant 1.000000e+00 : f32
    %356 = vector.broadcast %cst_157 : f32 to vector<2x32xf32>
    %357 = arith.subf %356, %348 : vector<2x32xf32>
    %358 = arith.mulf %357, %355 : vector<2x32xf32>
    %359 = arith.mulf %348, %272 : vector<2x32xf32>
    %360 = arith.addf %358, %359 : vector<2x32xf32>
    %361 = vector.shape_cast %328 : vector<2x1xi1> to vector<2x1xi1>
    %362 = vector.broadcast %361 : vector<2x1xi1> to vector<2x32xi1>
    %363 = arith.select %362, %360, %272 : vector<2x32xi1>, vector<2x32xf32>
    %cst_158 = arith.constant 0.000000e+00 : f32
    %364 = vector.shape_cast %328 : vector<2x1xi1> to vector<2x1xi1>
    %365 = vector.broadcast %364 : vector<2x1xi1> to vector<2x32xi1>
    %366 = vector.broadcast %cst_158 : f32 to vector<2x32xf32>
    %367 = arith.select %365, %363, %366 : vector<2x32xi1>, vector<2x32xf32>
    %c1_159 = arith.constant 1 : index
    %368 = arith.index_cast %281 : i32 to index
    %c0_160 = arith.constant 0 : index
    %c0_161 = arith.constant 0 : index
    %369 = vector.load %arg11[%c1_159, %368, %c0_160, %c0_161] : memref<2x8x2x32xf32, #tpu.memory_space<vmem>>, vector<1x1x2x32xf32>
    %370 = vector.shape_cast %369 : vector<1x1x2x32xf32> to vector<2x32xf32>
    %371 = vector.shape_cast %367 : vector<2x32xf32> to vector<1x1x2x32xf32>
    tpu.vector_store %arg11[%c1_159, %368, %c0_160, %c0_161], %371 {strides = array<i32>} : memref<2x8x2x32xf32, #tpu.memory_space<vmem>>, vector<1x1x2x32xf32>,
    %c3_i32 = arith.constant 3 : i32
    %c7_i32_162 = arith.constant 7 : i32
    %372 = arith.subi %c7_i32_162, %c3_i32 : i32
    %373 = vector.broadcast %c3_i32 : i32 to vector<2x1xi32>
    %374 = arith.cmpi slt, %373, %86 : vector<2x1xi32>
    %c0_163 = arith.constant 0 : index
    %375 = arith.index_cast %c3_i32 : i32 to index
    %c0_164 = arith.constant 0 : index
    %c0_165 = arith.constant 0 : index
    %376 = vector.load %arg10[%c0_163, %375, %c0_164, %c0_165] : memref<2x8x2x96xf32, #tpu.memory_space<vmem>>, vector<1x1x2x96xf32>
    %377 = vector.shape_cast %376 : vector<1x1x2x96xf32> to vector<2x96xf32>
    %cst_166 = arith.constant dense<0.000000e+00> : vector<2x96xf32>
    %378 = tpu.matmul %318, %88, %cst_166 {dimension_numbers = #tpu.dot_dimension_numbers<[1], [0], [0], [1], [0, 0, 1, 1], [], []>} : vector<2x32xf32>, vector<32x96xf32>, vector<2x96xf32> -> vector<2x96xf32>
    %379 = vector.extract_strided_slice %377 {offsets = [0, 0], sizes = [2, 32], strides = [1, 1]} : vector<2x96xf32> to vector<2x32xf32>
    %380 = vector.extract_strided_slice %378 {offsets = [0, 0], sizes = [2, 32], strides = [1, 1]} : vector<2x96xf32> to vector<2x32xf32>
    %381 = arith.addf %379, %380 : vector<2x32xf32>
    %382 = arith.negf %381 : vector<2x32xf32>
    %383 = math.exp %382 : vector<2x32xf32>
    %cst_167 = arith.constant 1.000000e+00 : f32
    %384 = vector.broadcast %cst_167 : f32 to vector<2x32xf32>
    %385 = arith.addf %384, %383 : vector<2x32xf32>
    %386 = arith.divf %384, %385 : vector<2x32xf32>
    %387 = vector.extract_strided_slice %377 {offsets = [0, 32], sizes = [2, 32], strides = [1, 1]} : vector<2x96xf32> to vector<2x32xf32>
    %388 = vector.extract_strided_slice %378 {offsets = [0, 32], sizes = [2, 32], strides = [1, 1]} : vector<2x96xf32> to vector<2x32xf32>
    %389 = arith.addf %387, %388 : vector<2x32xf32>
    %390 = arith.negf %389 : vector<2x32xf32>
    %391 = math.exp %390 : vector<2x32xf32>
    %cst_168 = arith.constant 1.000000e+00 : f32
    %392 = vector.broadcast %cst_168 : f32 to vector<2x32xf32>
    %393 = arith.addf %392, %391 : vector<2x32xf32>
    %394 = arith.divf %392, %393 : vector<2x32xf32>
    %395 = vector.extract_strided_slice %377 {offsets = [0, 64], sizes = [2, 32], strides = [1, 1]} : vector<2x96xf32> to vector<2x32xf32>
    %396 = vector.extract_strided_slice %378 {offsets = [0, 64], sizes = [2, 32], strides = [1, 1]} : vector<2x96xf32> to vector<2x32xf32>
    %397 = vector.broadcast %92 : vector<1x32xf32> to vector<2x32xf32>
    %398 = arith.addf %396, %397 : vector<2x32xf32>
    %399 = arith.mulf %386, %398 : vector<2x32xf32>
    %400 = arith.addf %395, %399 : vector<2x32xf32>
    %401 = math.tanh %400 : vector<2x32xf32>
    %cst_169 = arith.constant 1.000000e+00 : f32
    %402 = vector.broadcast %cst_169 : f32 to vector<2x32xf32>
    %403 = arith.subf %402, %394 : vector<2x32xf32>
    %404 = arith.mulf %403, %401 : vector<2x32xf32>
    %405 = arith.mulf %394, %318 : vector<2x32xf32>
    %406 = arith.addf %404, %405 : vector<2x32xf32>
    %407 = vector.shape_cast %374 : vector<2x1xi1> to vector<2x1xi1>
    %408 = vector.broadcast %407 : vector<2x1xi1> to vector<2x32xi1>
    %409 = arith.select %408, %406, %318 : vector<2x32xi1>, vector<2x32xf32>
    %cst_170 = arith.constant 0.000000e+00 : f32
    %410 = vector.shape_cast %374 : vector<2x1xi1> to vector<2x1xi1>
    %411 = vector.broadcast %410 : vector<2x1xi1> to vector<2x32xi1>
    %412 = vector.broadcast %cst_170 : f32 to vector<2x32xf32>
    %413 = arith.select %411, %409, %412 : vector<2x32xi1>, vector<2x32xf32>
    %c0_171 = arith.constant 0 : index
    %414 = arith.index_cast %c3_i32 : i32 to index
    %c0_172 = arith.constant 0 : index
    %c0_173 = arith.constant 0 : index
    %415 = vector.load %arg11[%c0_171, %414, %c0_172, %c0_173] : memref<2x8x2x32xf32, #tpu.memory_space<vmem>>, vector<1x1x2x32xf32>
    %416 = vector.shape_cast %415 : vector<1x1x2x32xf32> to vector<2x32xf32>
    %417 = vector.shape_cast %413 : vector<2x32xf32> to vector<1x1x2x32xf32>
    tpu.vector_store %arg11[%c0_171, %414, %c0_172, %c0_173], %417 {strides = array<i32>} : memref<2x8x2x32xf32, #tpu.memory_space<vmem>>, vector<1x1x2x32xf32>,
    %418 = vector.broadcast %372 : i32 to vector<2x1xi32>
    %419 = arith.cmpi slt, %418, %86 : vector<2x1xi32>
    %c1_174 = arith.constant 1 : index
    %420 = arith.index_cast %372 : i32 to index
    %c0_175 = arith.constant 0 : index
    %c0_176 = arith.constant 0 : index
    %421 = vector.load %arg10[%c1_174, %420, %c0_175, %c0_176] : memref<2x8x2x96xf32, #tpu.memory_space<vmem>>, vector<1x1x2x96xf32>
    %422 = vector.shape_cast %421 : vector<1x1x2x96xf32> to vector<2x96xf32>
    %cst_177 = arith.constant dense<0.000000e+00> : vector<2x96xf32>
    %423 = tpu.matmul %363, %90, %cst_177 {dimension_numbers = #tpu.dot_dimension_numbers<[1], [0], [0], [1], [0, 0, 1, 1], [], []>} : vector<2x32xf32>, vector<32x96xf32>, vector<2x96xf32> -> vector<2x96xf32>
    %424 = vector.extract_strided_slice %422 {offsets = [0, 0], sizes = [2, 32], strides = [1, 1]} : vector<2x96xf32> to vector<2x32xf32>
    %425 = vector.extract_strided_slice %423 {offsets = [0, 0], sizes = [2, 32], strides = [1, 1]} : vector<2x96xf32> to vector<2x32xf32>
    %426 = arith.addf %424, %425 : vector<2x32xf32>
    %427 = arith.negf %426 : vector<2x32xf32>
    %428 = math.exp %427 : vector<2x32xf32>
    %cst_178 = arith.constant 1.000000e+00 : f32
    %429 = vector.broadcast %cst_178 : f32 to vector<2x32xf32>
    %430 = arith.addf %429, %428 : vector<2x32xf32>
    %431 = arith.divf %429, %430 : vector<2x32xf32>
    %432 = vector.extract_strided_slice %422 {offsets = [0, 32], sizes = [2, 32], strides = [1, 1]} : vector<2x96xf32> to vector<2x32xf32>
    %433 = vector.extract_strided_slice %423 {offsets = [0, 32], sizes = [2, 32], strides = [1, 1]} : vector<2x96xf32> to vector<2x32xf32>
    %434 = arith.addf %432, %433 : vector<2x32xf32>
    %435 = arith.negf %434 : vector<2x32xf32>
    %436 = math.exp %435 : vector<2x32xf32>
    %cst_179 = arith.constant 1.000000e+00 : f32
    %437 = vector.broadcast %cst_179 : f32 to vector<2x32xf32>
    %438 = arith.addf %437, %436 : vector<2x32xf32>
    %439 = arith.divf %437, %438 : vector<2x32xf32>
    %440 = vector.extract_strided_slice %422 {offsets = [0, 64], sizes = [2, 32], strides = [1, 1]} : vector<2x96xf32> to vector<2x32xf32>
    %441 = vector.extract_strided_slice %423 {offsets = [0, 64], sizes = [2, 32], strides = [1, 1]} : vector<2x96xf32> to vector<2x32xf32>
    %442 = vector.broadcast %94 : vector<1x32xf32> to vector<2x32xf32>
    %443 = arith.addf %441, %442 : vector<2x32xf32>
    %444 = arith.mulf %431, %443 : vector<2x32xf32>
    %445 = arith.addf %440, %444 : vector<2x32xf32>
    %446 = math.tanh %445 : vector<2x32xf32>
    %cst_180 = arith.constant 1.000000e+00 : f32
    %447 = vector.broadcast %cst_180 : f32 to vector<2x32xf32>
    %448 = arith.subf %447, %439 : vector<2x32xf32>
    %449 = arith.mulf %448, %446 : vector<2x32xf32>
    %450 = arith.mulf %439, %363 : vector<2x32xf32>
    %451 = arith.addf %449, %450 : vector<2x32xf32>
    %452 = vector.shape_cast %419 : vector<2x1xi1> to vector<2x1xi1>
    %453 = vector.broadcast %452 : vector<2x1xi1> to vector<2x32xi1>
    %454 = arith.select %453, %451, %363 : vector<2x32xi1>, vector<2x32xf32>
    %cst_181 = arith.constant 0.000000e+00 : f32
    %455 = vector.shape_cast %419 : vector<2x1xi1> to vector<2x1xi1>
    %456 = vector.broadcast %455 : vector<2x1xi1> to vector<2x32xi1>
    %457 = vector.broadcast %cst_181 : f32 to vector<2x32xf32>
    %458 = arith.select %456, %454, %457 : vector<2x32xi1>, vector<2x32xf32>
    %c1_182 = arith.constant 1 : index
    %459 = arith.index_cast %372 : i32 to index
    %c0_183 = arith.constant 0 : index
    %c0_184 = arith.constant 0 : index
    %460 = vector.load %arg11[%c1_182, %459, %c0_183, %c0_184] : memref<2x8x2x32xf32, #tpu.memory_space<vmem>>, vector<1x1x2x32xf32>
    %461 = vector.shape_cast %460 : vector<1x1x2x32xf32> to vector<2x32xf32>
    %462 = vector.shape_cast %458 : vector<2x32xf32> to vector<1x1x2x32xf32>
    tpu.vector_store %arg11[%c1_182, %459, %c0_183, %c0_184], %462 {strides = array<i32>} : memref<2x8x2x32xf32, #tpu.memory_space<vmem>>, vector<1x1x2x32xf32>,
    %c4_i32 = arith.constant 4 : i32
    %c7_i32_185 = arith.constant 7 : i32
    %463 = arith.subi %c7_i32_185, %c4_i32 : i32
    %464 = vector.broadcast %c4_i32 : i32 to vector<2x1xi32>
    %465 = arith.cmpi slt, %464, %86 : vector<2x1xi32>
    %c0_186 = arith.constant 0 : index
    %466 = arith.index_cast %c4_i32 : i32 to index
    %c0_187 = arith.constant 0 : index
    %c0_188 = arith.constant 0 : index
    %467 = vector.load %arg10[%c0_186, %466, %c0_187, %c0_188] : memref<2x8x2x96xf32, #tpu.memory_space<vmem>>, vector<1x1x2x96xf32>
    %468 = vector.shape_cast %467 : vector<1x1x2x96xf32> to vector<2x96xf32>
    %cst_189 = arith.constant dense<0.000000e+00> : vector<2x96xf32>
    %469 = tpu.matmul %409, %88, %cst_189 {dimension_numbers = #tpu.dot_dimension_numbers<[1], [0], [0], [1], [0, 0, 1, 1], [], []>} : vector<2x32xf32>, vector<32x96xf32>, vector<2x96xf32> -> vector<2x96xf32>
    %470 = vector.extract_strided_slice %468 {offsets = [0, 0], sizes = [2, 32], strides = [1, 1]} : vector<2x96xf32> to vector<2x32xf32>
    %471 = vector.extract_strided_slice %469 {offsets = [0, 0], sizes = [2, 32], strides = [1, 1]} : vector<2x96xf32> to vector<2x32xf32>
    %472 = arith.addf %470, %471 : vector<2x32xf32>
    %473 = arith.negf %472 : vector<2x32xf32>
    %474 = math.exp %473 : vector<2x32xf32>
    %cst_190 = arith.constant 1.000000e+00 : f32
    %475 = vector.broadcast %cst_190 : f32 to vector<2x32xf32>
    %476 = arith.addf %475, %474 : vector<2x32xf32>
    %477 = arith.divf %475, %476 : vector<2x32xf32>
    %478 = vector.extract_strided_slice %468 {offsets = [0, 32], sizes = [2, 32], strides = [1, 1]} : vector<2x96xf32> to vector<2x32xf32>
    %479 = vector.extract_strided_slice %469 {offsets = [0, 32], sizes = [2, 32], strides = [1, 1]} : vector<2x96xf32> to vector<2x32xf32>
    %480 = arith.addf %478, %479 : vector<2x32xf32>
    %481 = arith.negf %480 : vector<2x32xf32>
    %482 = math.exp %481 : vector<2x32xf32>
    %cst_191 = arith.constant 1.000000e+00 : f32
    %483 = vector.broadcast %cst_191 : f32 to vector<2x32xf32>
    %484 = arith.addf %483, %482 : vector<2x32xf32>
    %485 = arith.divf %483, %484 : vector<2x32xf32>
    %486 = vector.extract_strided_slice %468 {offsets = [0, 64], sizes = [2, 32], strides = [1, 1]} : vector<2x96xf32> to vector<2x32xf32>
    %487 = vector.extract_strided_slice %469 {offsets = [0, 64], sizes = [2, 32], strides = [1, 1]} : vector<2x96xf32> to vector<2x32xf32>
    %488 = vector.broadcast %92 : vector<1x32xf32> to vector<2x32xf32>
    %489 = arith.addf %487, %488 : vector<2x32xf32>
    %490 = arith.mulf %477, %489 : vector<2x32xf32>
    %491 = arith.addf %486, %490 : vector<2x32xf32>
    %492 = math.tanh %491 : vector<2x32xf32>
    %cst_192 = arith.constant 1.000000e+00 : f32
    %493 = vector.broadcast %cst_192 : f32 to vector<2x32xf32>
    %494 = arith.subf %493, %485 : vector<2x32xf32>
    %495 = arith.mulf %494, %492 : vector<2x32xf32>
    %496 = arith.mulf %485, %409 : vector<2x32xf32>
    %497 = arith.addf %495, %496 : vector<2x32xf32>
    %498 = vector.shape_cast %465 : vector<2x1xi1> to vector<2x1xi1>
    %499 = vector.broadcast %498 : vector<2x1xi1> to vector<2x32xi1>
    %500 = arith.select %499, %497, %409 : vector<2x32xi1>, vector<2x32xf32>
    %cst_193 = arith.constant 0.000000e+00 : f32
    %501 = vector.shape_cast %465 : vector<2x1xi1> to vector<2x1xi1>
    %502 = vector.broadcast %501 : vector<2x1xi1> to vector<2x32xi1>
    %503 = vector.broadcast %cst_193 : f32 to vector<2x32xf32>
    %504 = arith.select %502, %500, %503 : vector<2x32xi1>, vector<2x32xf32>
    %c0_194 = arith.constant 0 : index
    %505 = arith.index_cast %c4_i32 : i32 to index
    %c0_195 = arith.constant 0 : index
    %c0_196 = arith.constant 0 : index
    %506 = vector.load %arg11[%c0_194, %505, %c0_195, %c0_196] : memref<2x8x2x32xf32, #tpu.memory_space<vmem>>, vector<1x1x2x32xf32>
    %507 = vector.shape_cast %506 : vector<1x1x2x32xf32> to vector<2x32xf32>
    %508 = vector.shape_cast %504 : vector<2x32xf32> to vector<1x1x2x32xf32>
    tpu.vector_store %arg11[%c0_194, %505, %c0_195, %c0_196], %508 {strides = array<i32>} : memref<2x8x2x32xf32, #tpu.memory_space<vmem>>, vector<1x1x2x32xf32>,
    %509 = vector.broadcast %463 : i32 to vector<2x1xi32>
    %510 = arith.cmpi slt, %509, %86 : vector<2x1xi32>
    %c1_197 = arith.constant 1 : index
    %511 = arith.index_cast %463 : i32 to index
    %c0_198 = arith.constant 0 : index
    %c0_199 = arith.constant 0 : index
    %512 = vector.load %arg10[%c1_197, %511, %c0_198, %c0_199] : memref<2x8x2x96xf32, #tpu.memory_space<vmem>>, vector<1x1x2x96xf32>
    %513 = vector.shape_cast %512 : vector<1x1x2x96xf32> to vector<2x96xf32>
    %cst_200 = arith.constant dense<0.000000e+00> : vector<2x96xf32>
    %514 = tpu.matmul %454, %90, %cst_200 {dimension_numbers = #tpu.dot_dimension_numbers<[1], [0], [0], [1], [0, 0, 1, 1], [], []>} : vector<2x32xf32>, vector<32x96xf32>, vector<2x96xf32> -> vector<2x96xf32>
    %515 = vector.extract_strided_slice %513 {offsets = [0, 0], sizes = [2, 32], strides = [1, 1]} : vector<2x96xf32> to vector<2x32xf32>
    %516 = vector.extract_strided_slice %514 {offsets = [0, 0], sizes = [2, 32], strides = [1, 1]} : vector<2x96xf32> to vector<2x32xf32>
    %517 = arith.addf %515, %516 : vector<2x32xf32>
    %518 = arith.negf %517 : vector<2x32xf32>
    %519 = math.exp %518 : vector<2x32xf32>
    %cst_201 = arith.constant 1.000000e+00 : f32
    %520 = vector.broadcast %cst_201 : f32 to vector<2x32xf32>
    %521 = arith.addf %520, %519 : vector<2x32xf32>
    %522 = arith.divf %520, %521 : vector<2x32xf32>
    %523 = vector.extract_strided_slice %513 {offsets = [0, 32], sizes = [2, 32], strides = [1, 1]} : vector<2x96xf32> to vector<2x32xf32>
    %524 = vector.extract_strided_slice %514 {offsets = [0, 32], sizes = [2, 32], strides = [1, 1]} : vector<2x96xf32> to vector<2x32xf32>
    %525 = arith.addf %523, %524 : vector<2x32xf32>
    %526 = arith.negf %525 : vector<2x32xf32>
    %527 = math.exp %526 : vector<2x32xf32>
    %cst_202 = arith.constant 1.000000e+00 : f32
    %528 = vector.broadcast %cst_202 : f32 to vector<2x32xf32>
    %529 = arith.addf %528, %527 : vector<2x32xf32>
    %530 = arith.divf %528, %529 : vector<2x32xf32>
    %531 = vector.extract_strided_slice %513 {offsets = [0, 64], sizes = [2, 32], strides = [1, 1]} : vector<2x96xf32> to vector<2x32xf32>
    %532 = vector.extract_strided_slice %514 {offsets = [0, 64], sizes = [2, 32], strides = [1, 1]} : vector<2x96xf32> to vector<2x32xf32>
    %533 = vector.broadcast %94 : vector<1x32xf32> to vector<2x32xf32>
    %534 = arith.addf %532, %533 : vector<2x32xf32>
    %535 = arith.mulf %522, %534 : vector<2x32xf32>
    %536 = arith.addf %531, %535 : vector<2x32xf32>
    %537 = math.tanh %536 : vector<2x32xf32>
    %cst_203 = arith.constant 1.000000e+00 : f32
    %538 = vector.broadcast %cst_203 : f32 to vector<2x32xf32>
    %539 = arith.subf %538, %530 : vector<2x32xf32>
    %540 = arith.mulf %539, %537 : vector<2x32xf32>
    %541 = arith.mulf %530, %454 : vector<2x32xf32>
    %542 = arith.addf %540, %541 : vector<2x32xf32>
    %543 = vector.shape_cast %510 : vector<2x1xi1> to vector<2x1xi1>
    %544 = vector.broadcast %543 : vector<2x1xi1> to vector<2x32xi1>
    %545 = arith.select %544, %542, %454 : vector<2x32xi1>, vector<2x32xf32>
    %cst_204 = arith.constant 0.000000e+00 : f32
    %546 = vector.shape_cast %510 : vector<2x1xi1> to vector<2x1xi1>
    %547 = vector.broadcast %546 : vector<2x1xi1> to vector<2x32xi1>
    %548 = vector.broadcast %cst_204 : f32 to vector<2x32xf32>
    %549 = arith.select %547, %545, %548 : vector<2x32xi1>, vector<2x32xf32>
    %c1_205 = arith.constant 1 : index
    %550 = arith.index_cast %463 : i32 to index
    %c0_206 = arith.constant 0 : index
    %c0_207 = arith.constant 0 : index
    %551 = vector.load %arg11[%c1_205, %550, %c0_206, %c0_207] : memref<2x8x2x32xf32, #tpu.memory_space<vmem>>, vector<1x1x2x32xf32>
    %552 = vector.shape_cast %551 : vector<1x1x2x32xf32> to vector<2x32xf32>
    %553 = vector.shape_cast %549 : vector<2x32xf32> to vector<1x1x2x32xf32>
    tpu.vector_store %arg11[%c1_205, %550, %c0_206, %c0_207], %553 {strides = array<i32>} : memref<2x8x2x32xf32, #tpu.memory_space<vmem>>, vector<1x1x2x32xf32>,
    %c5_i32 = arith.constant 5 : i32
    %c7_i32_208 = arith.constant 7 : i32
    %554 = arith.subi %c7_i32_208, %c5_i32 : i32
    %555 = vector.broadcast %c5_i32 : i32 to vector<2x1xi32>
    %556 = arith.cmpi slt, %555, %86 : vector<2x1xi32>
    %c0_209 = arith.constant 0 : index
    %557 = arith.index_cast %c5_i32 : i32 to index
    %c0_210 = arith.constant 0 : index
    %c0_211 = arith.constant 0 : index
    %558 = vector.load %arg10[%c0_209, %557, %c0_210, %c0_211] : memref<2x8x2x96xf32, #tpu.memory_space<vmem>>, vector<1x1x2x96xf32>
    %559 = vector.shape_cast %558 : vector<1x1x2x96xf32> to vector<2x96xf32>
    %cst_212 = arith.constant dense<0.000000e+00> : vector<2x96xf32>
    %560 = tpu.matmul %500, %88, %cst_212 {dimension_numbers = #tpu.dot_dimension_numbers<[1], [0], [0], [1], [0, 0, 1, 1], [], []>} : vector<2x32xf32>, vector<32x96xf32>, vector<2x96xf32> -> vector<2x96xf32>
    %561 = vector.extract_strided_slice %559 {offsets = [0, 0], sizes = [2, 32], strides = [1, 1]} : vector<2x96xf32> to vector<2x32xf32>
    %562 = vector.extract_strided_slice %560 {offsets = [0, 0], sizes = [2, 32], strides = [1, 1]} : vector<2x96xf32> to vector<2x32xf32>
    %563 = arith.addf %561, %562 : vector<2x32xf32>
    %564 = arith.negf %563 : vector<2x32xf32>
    %565 = math.exp %564 : vector<2x32xf32>
    %cst_213 = arith.constant 1.000000e+00 : f32
    %566 = vector.broadcast %cst_213 : f32 to vector<2x32xf32>
    %567 = arith.addf %566, %565 : vector<2x32xf32>
    %568 = arith.divf %566, %567 : vector<2x32xf32>
    %569 = vector.extract_strided_slice %559 {offsets = [0, 32], sizes = [2, 32], strides = [1, 1]} : vector<2x96xf32> to vector<2x32xf32>
    %570 = vector.extract_strided_slice %560 {offsets = [0, 32], sizes = [2, 32], strides = [1, 1]} : vector<2x96xf32> to vector<2x32xf32>
    %571 = arith.addf %569, %570 : vector<2x32xf32>
    %572 = arith.negf %571 : vector<2x32xf32>
    %573 = math.exp %572 : vector<2x32xf32>
    %cst_214 = arith.constant 1.000000e+00 : f32
    %574 = vector.broadcast %cst_214 : f32 to vector<2x32xf32>
    %575 = arith.addf %574, %573 : vector<2x32xf32>
    %576 = arith.divf %574, %575 : vector<2x32xf32>
    %577 = vector.extract_strided_slice %559 {offsets = [0, 64], sizes = [2, 32], strides = [1, 1]} : vector<2x96xf32> to vector<2x32xf32>
    %578 = vector.extract_strided_slice %560 {offsets = [0, 64], sizes = [2, 32], strides = [1, 1]} : vector<2x96xf32> to vector<2x32xf32>
    %579 = vector.broadcast %92 : vector<1x32xf32> to vector<2x32xf32>
    %580 = arith.addf %578, %579 : vector<2x32xf32>
    %581 = arith.mulf %568, %580 : vector<2x32xf32>
    %582 = arith.addf %577, %581 : vector<2x32xf32>
    %583 = math.tanh %582 : vector<2x32xf32>
    %cst_215 = arith.constant 1.000000e+00 : f32
    %584 = vector.broadcast %cst_215 : f32 to vector<2x32xf32>
    %585 = arith.subf %584, %576 : vector<2x32xf32>
    %586 = arith.mulf %585, %583 : vector<2x32xf32>
    %587 = arith.mulf %576, %500 : vector<2x32xf32>
    %588 = arith.addf %586, %587 : vector<2x32xf32>
    %589 = vector.shape_cast %556 : vector<2x1xi1> to vector<2x1xi1>
    %590 = vector.broadcast %589 : vector<2x1xi1> to vector<2x32xi1>
    %591 = arith.select %590, %588, %500 : vector<2x32xi1>, vector<2x32xf32>
    %cst_216 = arith.constant 0.000000e+00 : f32
    %592 = vector.shape_cast %556 : vector<2x1xi1> to vector<2x1xi1>
    %593 = vector.broadcast %592 : vector<2x1xi1> to vector<2x32xi1>
    %594 = vector.broadcast %cst_216 : f32 to vector<2x32xf32>
    %595 = arith.select %593, %591, %594 : vector<2x32xi1>, vector<2x32xf32>
    %c0_217 = arith.constant 0 : index
    %596 = arith.index_cast %c5_i32 : i32 to index
    %c0_218 = arith.constant 0 : index
    %c0_219 = arith.constant 0 : index
    %597 = vector.load %arg11[%c0_217, %596, %c0_218, %c0_219] : memref<2x8x2x32xf32, #tpu.memory_space<vmem>>, vector<1x1x2x32xf32>
    %598 = vector.shape_cast %597 : vector<1x1x2x32xf32> to vector<2x32xf32>
    %599 = vector.shape_cast %595 : vector<2x32xf32> to vector<1x1x2x32xf32>
    tpu.vector_store %arg11[%c0_217, %596, %c0_218, %c0_219], %599 {strides = array<i32>} : memref<2x8x2x32xf32, #tpu.memory_space<vmem>>, vector<1x1x2x32xf32>,
    %600 = vector.broadcast %554 : i32 to vector<2x1xi32>
    %601 = arith.cmpi slt, %600, %86 : vector<2x1xi32>
    %c1_220 = arith.constant 1 : index
    %602 = arith.index_cast %554 : i32 to index
    %c0_221 = arith.constant 0 : index
    %c0_222 = arith.constant 0 : index
    %603 = vector.load %arg10[%c1_220, %602, %c0_221, %c0_222] : memref<2x8x2x96xf32, #tpu.memory_space<vmem>>, vector<1x1x2x96xf32>
    %604 = vector.shape_cast %603 : vector<1x1x2x96xf32> to vector<2x96xf32>
    %cst_223 = arith.constant dense<0.000000e+00> : vector<2x96xf32>
    %605 = tpu.matmul %545, %90, %cst_223 {dimension_numbers = #tpu.dot_dimension_numbers<[1], [0], [0], [1], [0, 0, 1, 1], [], []>} : vector<2x32xf32>, vector<32x96xf32>, vector<2x96xf32> -> vector<2x96xf32>
    %606 = vector.extract_strided_slice %604 {offsets = [0, 0], sizes = [2, 32], strides = [1, 1]} : vector<2x96xf32> to vector<2x32xf32>
    %607 = vector.extract_strided_slice %605 {offsets = [0, 0], sizes = [2, 32], strides = [1, 1]} : vector<2x96xf32> to vector<2x32xf32>
    %608 = arith.addf %606, %607 : vector<2x32xf32>
    %609 = arith.negf %608 : vector<2x32xf32>
    %610 = math.exp %609 : vector<2x32xf32>
    %cst_224 = arith.constant 1.000000e+00 : f32
    %611 = vector.broadcast %cst_224 : f32 to vector<2x32xf32>
    %612 = arith.addf %611, %610 : vector<2x32xf32>
    %613 = arith.divf %611, %612 : vector<2x32xf32>
    %614 = vector.extract_strided_slice %604 {offsets = [0, 32], sizes = [2, 32], strides = [1, 1]} : vector<2x96xf32> to vector<2x32xf32>
    %615 = vector.extract_strided_slice %605 {offsets = [0, 32], sizes = [2, 32], strides = [1, 1]} : vector<2x96xf32> to vector<2x32xf32>
    %616 = arith.addf %614, %615 : vector<2x32xf32>
    %617 = arith.negf %616 : vector<2x32xf32>
    %618 = math.exp %617 : vector<2x32xf32>
    %cst_225 = arith.constant 1.000000e+00 : f32
    %619 = vector.broadcast %cst_225 : f32 to vector<2x32xf32>
    %620 = arith.addf %619, %618 : vector<2x32xf32>
    %621 = arith.divf %619, %620 : vector<2x32xf32>
    %622 = vector.extract_strided_slice %604 {offsets = [0, 64], sizes = [2, 32], strides = [1, 1]} : vector<2x96xf32> to vector<2x32xf32>
    %623 = vector.extract_strided_slice %605 {offsets = [0, 64], sizes = [2, 32], strides = [1, 1]} : vector<2x96xf32> to vector<2x32xf32>
    %624 = vector.broadcast %94 : vector<1x32xf32> to vector<2x32xf32>
    %625 = arith.addf %623, %624 : vector<2x32xf32>
    %626 = arith.mulf %613, %625 : vector<2x32xf32>
    %627 = arith.addf %622, %626 : vector<2x32xf32>
    %628 = math.tanh %627 : vector<2x32xf32>
    %cst_226 = arith.constant 1.000000e+00 : f32
    %629 = vector.broadcast %cst_226 : f32 to vector<2x32xf32>
    %630 = arith.subf %629, %621 : vector<2x32xf32>
    %631 = arith.mulf %630, %628 : vector<2x32xf32>
    %632 = arith.mulf %621, %545 : vector<2x32xf32>
    %633 = arith.addf %631, %632 : vector<2x32xf32>
    %634 = vector.shape_cast %601 : vector<2x1xi1> to vector<2x1xi1>
    %635 = vector.broadcast %634 : vector<2x1xi1> to vector<2x32xi1>
    %636 = arith.select %635, %633, %545 : vector<2x32xi1>, vector<2x32xf32>
    %cst_227 = arith.constant 0.000000e+00 : f32
    %637 = vector.shape_cast %601 : vector<2x1xi1> to vector<2x1xi1>
    %638 = vector.broadcast %637 : vector<2x1xi1> to vector<2x32xi1>
    %639 = vector.broadcast %cst_227 : f32 to vector<2x32xf32>
    %640 = arith.select %638, %636, %639 : vector<2x32xi1>, vector<2x32xf32>
    %c1_228 = arith.constant 1 : index
    %641 = arith.index_cast %554 : i32 to index
    %c0_229 = arith.constant 0 : index
    %c0_230 = arith.constant 0 : index
    %642 = vector.load %arg11[%c1_228, %641, %c0_229, %c0_230] : memref<2x8x2x32xf32, #tpu.memory_space<vmem>>, vector<1x1x2x32xf32>
    %643 = vector.shape_cast %642 : vector<1x1x2x32xf32> to vector<2x32xf32>
    %644 = vector.shape_cast %640 : vector<2x32xf32> to vector<1x1x2x32xf32>
    tpu.vector_store %arg11[%c1_228, %641, %c0_229, %c0_230], %644 {strides = array<i32>} : memref<2x8x2x32xf32, #tpu.memory_space<vmem>>, vector<1x1x2x32xf32>,
    %c6_i32 = arith.constant 6 : i32
    %c7_i32_231 = arith.constant 7 : i32
    %645 = arith.subi %c7_i32_231, %c6_i32 : i32
    %646 = vector.broadcast %c6_i32 : i32 to vector<2x1xi32>
    %647 = arith.cmpi slt, %646, %86 : vector<2x1xi32>
    %c0_232 = arith.constant 0 : index
    %648 = arith.index_cast %c6_i32 : i32 to index
    %c0_233 = arith.constant 0 : index
    %c0_234 = arith.constant 0 : index
    %649 = vector.load %arg10[%c0_232, %648, %c0_233, %c0_234] : memref<2x8x2x96xf32, #tpu.memory_space<vmem>>, vector<1x1x2x96xf32>
    %650 = vector.shape_cast %649 : vector<1x1x2x96xf32> to vector<2x96xf32>
    %cst_235 = arith.constant dense<0.000000e+00> : vector<2x96xf32>
    %651 = tpu.matmul %591, %88, %cst_235 {dimension_numbers = #tpu.dot_dimension_numbers<[1], [0], [0], [1], [0, 0, 1, 1], [], []>} : vector<2x32xf32>, vector<32x96xf32>, vector<2x96xf32> -> vector<2x96xf32>
    %652 = vector.extract_strided_slice %650 {offsets = [0, 0], sizes = [2, 32], strides = [1, 1]} : vector<2x96xf32> to vector<2x32xf32>
    %653 = vector.extract_strided_slice %651 {offsets = [0, 0], sizes = [2, 32], strides = [1, 1]} : vector<2x96xf32> to vector<2x32xf32>
    %654 = arith.addf %652, %653 : vector<2x32xf32>
    %655 = arith.negf %654 : vector<2x32xf32>
    %656 = math.exp %655 : vector<2x32xf32>
    %cst_236 = arith.constant 1.000000e+00 : f32
    %657 = vector.broadcast %cst_236 : f32 to vector<2x32xf32>
    %658 = arith.addf %657, %656 : vector<2x32xf32>
    %659 = arith.divf %657, %658 : vector<2x32xf32>
    %660 = vector.extract_strided_slice %650 {offsets = [0, 32], sizes = [2, 32], strides = [1, 1]} : vector<2x96xf32> to vector<2x32xf32>
    %661 = vector.extract_strided_slice %651 {offsets = [0, 32], sizes = [2, 32], strides = [1, 1]} : vector<2x96xf32> to vector<2x32xf32>
    %662 = arith.addf %660, %661 : vector<2x32xf32>
    %663 = arith.negf %662 : vector<2x32xf32>
    %664 = math.exp %663 : vector<2x32xf32>
    %cst_237 = arith.constant 1.000000e+00 : f32
    %665 = vector.broadcast %cst_237 : f32 to vector<2x32xf32>
    %666 = arith.addf %665, %664 : vector<2x32xf32>
    %667 = arith.divf %665, %666 : vector<2x32xf32>
    %668 = vector.extract_strided_slice %650 {offsets = [0, 64], sizes = [2, 32], strides = [1, 1]} : vector<2x96xf32> to vector<2x32xf32>
    %669 = vector.extract_strided_slice %651 {offsets = [0, 64], sizes = [2, 32], strides = [1, 1]} : vector<2x96xf32> to vector<2x32xf32>
    %670 = vector.broadcast %92 : vector<1x32xf32> to vector<2x32xf32>
    %671 = arith.addf %669, %670 : vector<2x32xf32>
    %672 = arith.mulf %659, %671 : vector<2x32xf32>
    %673 = arith.addf %668, %672 : vector<2x32xf32>
    %674 = math.tanh %673 : vector<2x32xf32>
    %cst_238 = arith.constant 1.000000e+00 : f32
    %675 = vector.broadcast %cst_238 : f32 to vector<2x32xf32>
    %676 = arith.subf %675, %667 : vector<2x32xf32>
    %677 = arith.mulf %676, %674 : vector<2x32xf32>
    %678 = arith.mulf %667, %591 : vector<2x32xf32>
    %679 = arith.addf %677, %678 : vector<2x32xf32>
    %680 = vector.shape_cast %647 : vector<2x1xi1> to vector<2x1xi1>
    %681 = vector.broadcast %680 : vector<2x1xi1> to vector<2x32xi1>
    %682 = arith.select %681, %679, %591 : vector<2x32xi1>, vector<2x32xf32>
    %cst_239 = arith.constant 0.000000e+00 : f32
    %683 = vector.shape_cast %647 : vector<2x1xi1> to vector<2x1xi1>
    %684 = vector.broadcast %683 : vector<2x1xi1> to vector<2x32xi1>
    %685 = vector.broadcast %cst_239 : f32 to vector<2x32xf32>
    %686 = arith.select %684, %682, %685 : vector<2x32xi1>, vector<2x32xf32>
    %c0_240 = arith.constant 0 : index
    %687 = arith.index_cast %c6_i32 : i32 to index
    %c0_241 = arith.constant 0 : index
    %c0_242 = arith.constant 0 : index
    %688 = vector.load %arg11[%c0_240, %687, %c0_241, %c0_242] : memref<2x8x2x32xf32, #tpu.memory_space<vmem>>, vector<1x1x2x32xf32>
    %689 = vector.shape_cast %688 : vector<1x1x2x32xf32> to vector<2x32xf32>
    %690 = vector.shape_cast %686 : vector<2x32xf32> to vector<1x1x2x32xf32>
    tpu.vector_store %arg11[%c0_240, %687, %c0_241, %c0_242], %690 {strides = array<i32>} : memref<2x8x2x32xf32, #tpu.memory_space<vmem>>, vector<1x1x2x32xf32>,
    %691 = vector.broadcast %645 : i32 to vector<2x1xi32>
    %692 = arith.cmpi slt, %691, %86 : vector<2x1xi32>
    %c1_243 = arith.constant 1 : index
    %693 = arith.index_cast %645 : i32 to index
    %c0_244 = arith.constant 0 : index
    %c0_245 = arith.constant 0 : index
    %694 = vector.load %arg10[%c1_243, %693, %c0_244, %c0_245] : memref<2x8x2x96xf32, #tpu.memory_space<vmem>>, vector<1x1x2x96xf32>
    %695 = vector.shape_cast %694 : vector<1x1x2x96xf32> to vector<2x96xf32>
    %cst_246 = arith.constant dense<0.000000e+00> : vector<2x96xf32>
    %696 = tpu.matmul %636, %90, %cst_246 {dimension_numbers = #tpu.dot_dimension_numbers<[1], [0], [0], [1], [0, 0, 1, 1], [], []>} : vector<2x32xf32>, vector<32x96xf32>, vector<2x96xf32> -> vector<2x96xf32>
    %697 = vector.extract_strided_slice %695 {offsets = [0, 0], sizes = [2, 32], strides = [1, 1]} : vector<2x96xf32> to vector<2x32xf32>
    %698 = vector.extract_strided_slice %696 {offsets = [0, 0], sizes = [2, 32], strides = [1, 1]} : vector<2x96xf32> to vector<2x32xf32>
    %699 = arith.addf %697, %698 : vector<2x32xf32>
    %700 = arith.negf %699 : vector<2x32xf32>
    %701 = math.exp %700 : vector<2x32xf32>
    %cst_247 = arith.constant 1.000000e+00 : f32
    %702 = vector.broadcast %cst_247 : f32 to vector<2x32xf32>
    %703 = arith.addf %702, %701 : vector<2x32xf32>
    %704 = arith.divf %702, %703 : vector<2x32xf32>
    %705 = vector.extract_strided_slice %695 {offsets = [0, 32], sizes = [2, 32], strides = [1, 1]} : vector<2x96xf32> to vector<2x32xf32>
    %706 = vector.extract_strided_slice %696 {offsets = [0, 32], sizes = [2, 32], strides = [1, 1]} : vector<2x96xf32> to vector<2x32xf32>
    %707 = arith.addf %705, %706 : vector<2x32xf32>
    %708 = arith.negf %707 : vector<2x32xf32>
    %709 = math.exp %708 : vector<2x32xf32>
    %cst_248 = arith.constant 1.000000e+00 : f32
    %710 = vector.broadcast %cst_248 : f32 to vector<2x32xf32>
    %711 = arith.addf %710, %709 : vector<2x32xf32>
    %712 = arith.divf %710, %711 : vector<2x32xf32>
    %713 = vector.extract_strided_slice %695 {offsets = [0, 64], sizes = [2, 32], strides = [1, 1]} : vector<2x96xf32> to vector<2x32xf32>
    %714 = vector.extract_strided_slice %696 {offsets = [0, 64], sizes = [2, 32], strides = [1, 1]} : vector<2x96xf32> to vector<2x32xf32>
    %715 = vector.broadcast %94 : vector<1x32xf32> to vector<2x32xf32>
    %716 = arith.addf %714, %715 : vector<2x32xf32>
    %717 = arith.mulf %704, %716 : vector<2x32xf32>
    %718 = arith.addf %713, %717 : vector<2x32xf32>
    %719 = math.tanh %718 : vector<2x32xf32>
    %cst_249 = arith.constant 1.000000e+00 : f32
    %720 = vector.broadcast %cst_249 : f32 to vector<2x32xf32>
    %721 = arith.subf %720, %712 : vector<2x32xf32>
    %722 = arith.mulf %721, %719 : vector<2x32xf32>
    %723 = arith.mulf %712, %636 : vector<2x32xf32>
    %724 = arith.addf %722, %723 : vector<2x32xf32>
    %725 = vector.shape_cast %692 : vector<2x1xi1> to vector<2x1xi1>
    %726 = vector.broadcast %725 : vector<2x1xi1> to vector<2x32xi1>
    %727 = arith.select %726, %724, %636 : vector<2x32xi1>, vector<2x32xf32>
    %cst_250 = arith.constant 0.000000e+00 : f32
    %728 = vector.shape_cast %692 : vector<2x1xi1> to vector<2x1xi1>
    %729 = vector.broadcast %728 : vector<2x1xi1> to vector<2x32xi1>
    %730 = vector.broadcast %cst_250 : f32 to vector<2x32xf32>
    %731 = arith.select %729, %727, %730 : vector<2x32xi1>, vector<2x32xf32>
    %c1_251 = arith.constant 1 : index
    %732 = arith.index_cast %645 : i32 to index
    %c0_252 = arith.constant 0 : index
    %c0_253 = arith.constant 0 : index
    %733 = vector.load %arg11[%c1_251, %732, %c0_252, %c0_253] : memref<2x8x2x32xf32, #tpu.memory_space<vmem>>, vector<1x1x2x32xf32>
    %734 = vector.shape_cast %733 : vector<1x1x2x32xf32> to vector<2x32xf32>
    %735 = vector.shape_cast %731 : vector<2x32xf32> to vector<1x1x2x32xf32>
    tpu.vector_store %arg11[%c1_251, %732, %c0_252, %c0_253], %735 {strides = array<i32>} : memref<2x8x2x32xf32, #tpu.memory_space<vmem>>, vector<1x1x2x32xf32>,
    %c7_i32_254 = arith.constant 7 : i32
    %c7_i32_255 = arith.constant 7 : i32
    %736 = arith.subi %c7_i32_255, %c7_i32_254 : i32
    %737 = vector.broadcast %c7_i32_254 : i32 to vector<2x1xi32>
    %738 = arith.cmpi slt, %737, %86 : vector<2x1xi32>
    %c0_256 = arith.constant 0 : index
    %739 = arith.index_cast %c7_i32_254 : i32 to index
    %c0_257 = arith.constant 0 : index
    %c0_258 = arith.constant 0 : index
    %740 = vector.load %arg10[%c0_256, %739, %c0_257, %c0_258] : memref<2x8x2x96xf32, #tpu.memory_space<vmem>>, vector<1x1x2x96xf32>
    %741 = vector.shape_cast %740 : vector<1x1x2x96xf32> to vector<2x96xf32>
    %cst_259 = arith.constant dense<0.000000e+00> : vector<2x96xf32>
    %742 = tpu.matmul %682, %88, %cst_259 {dimension_numbers = #tpu.dot_dimension_numbers<[1], [0], [0], [1], [0, 0, 1, 1], [], []>} : vector<2x32xf32>, vector<32x96xf32>, vector<2x96xf32> -> vector<2x96xf32>
    %743 = vector.extract_strided_slice %741 {offsets = [0, 0], sizes = [2, 32], strides = [1, 1]} : vector<2x96xf32> to vector<2x32xf32>
    %744 = vector.extract_strided_slice %742 {offsets = [0, 0], sizes = [2, 32], strides = [1, 1]} : vector<2x96xf32> to vector<2x32xf32>
    %745 = arith.addf %743, %744 : vector<2x32xf32>
    %746 = arith.negf %745 : vector<2x32xf32>
    %747 = math.exp %746 : vector<2x32xf32>
    %cst_260 = arith.constant 1.000000e+00 : f32
    %748 = vector.broadcast %cst_260 : f32 to vector<2x32xf32>
    %749 = arith.addf %748, %747 : vector<2x32xf32>
    %750 = arith.divf %748, %749 : vector<2x32xf32>
    %751 = vector.extract_strided_slice %741 {offsets = [0, 32], sizes = [2, 32], strides = [1, 1]} : vector<2x96xf32> to vector<2x32xf32>
    %752 = vector.extract_strided_slice %742 {offsets = [0, 32], sizes = [2, 32], strides = [1, 1]} : vector<2x96xf32> to vector<2x32xf32>
    %753 = arith.addf %751, %752 : vector<2x32xf32>
    %754 = arith.negf %753 : vector<2x32xf32>
    %755 = math.exp %754 : vector<2x32xf32>
    %cst_261 = arith.constant 1.000000e+00 : f32
    %756 = vector.broadcast %cst_261 : f32 to vector<2x32xf32>
    %757 = arith.addf %756, %755 : vector<2x32xf32>
    %758 = arith.divf %756, %757 : vector<2x32xf32>
    %759 = vector.extract_strided_slice %741 {offsets = [0, 64], sizes = [2, 32], strides = [1, 1]} : vector<2x96xf32> to vector<2x32xf32>
    %760 = vector.extract_strided_slice %742 {offsets = [0, 64], sizes = [2, 32], strides = [1, 1]} : vector<2x96xf32> to vector<2x32xf32>
    %761 = vector.broadcast %92 : vector<1x32xf32> to vector<2x32xf32>
    %762 = arith.addf %760, %761 : vector<2x32xf32>
    %763 = arith.mulf %750, %762 : vector<2x32xf32>
    %764 = arith.addf %759, %763 : vector<2x32xf32>
    %765 = math.tanh %764 : vector<2x32xf32>
    %cst_262 = arith.constant 1.000000e+00 : f32
    %766 = vector.broadcast %cst_262 : f32 to vector<2x32xf32>
    %767 = arith.subf %766, %758 : vector<2x32xf32>
    %768 = arith.mulf %767, %765 : vector<2x32xf32>
    %769 = arith.mulf %758, %682 : vector<2x32xf32>
    %770 = arith.addf %768, %769 : vector<2x32xf32>
    %771 = vector.shape_cast %738 : vector<2x1xi1> to vector<2x1xi1>
    %772 = vector.broadcast %771 : vector<2x1xi1> to vector<2x32xi1>
    %773 = arith.select %772, %770, %682 : vector<2x32xi1>, vector<2x32xf32>
    %cst_263 = arith.constant 0.000000e+00 : f32
    %774 = vector.shape_cast %738 : vector<2x1xi1> to vector<2x1xi1>
    %775 = vector.broadcast %774 : vector<2x1xi1> to vector<2x32xi1>
    %776 = vector.broadcast %cst_263 : f32 to vector<2x32xf32>
    %777 = arith.select %775, %773, %776 : vector<2x32xi1>, vector<2x32xf32>
    %c0_264 = arith.constant 0 : index
    %778 = arith.index_cast %c7_i32_254 : i32 to index
    %c0_265 = arith.constant 0 : index
    %c0_266 = arith.constant 0 : index
    %779 = vector.load %arg11[%c0_264, %778, %c0_265, %c0_266] : memref<2x8x2x32xf32, #tpu.memory_space<vmem>>, vector<1x1x2x32xf32>
    %780 = vector.shape_cast %779 : vector<1x1x2x32xf32> to vector<2x32xf32>
    %781 = vector.shape_cast %777 : vector<2x32xf32> to vector<1x1x2x32xf32>
    tpu.vector_store %arg11[%c0_264, %778, %c0_265, %c0_266], %781 {strides = array<i32>} : memref<2x8x2x32xf32, #tpu.memory_space<vmem>>, vector<1x1x2x32xf32>,
    %782 = vector.broadcast %736 : i32 to vector<2x1xi32>
    %783 = arith.cmpi slt, %782, %86 : vector<2x1xi32>
    %c1_267 = arith.constant 1 : index
    %784 = arith.index_cast %736 : i32 to index
    %c0_268 = arith.constant 0 : index
    %c0_269 = arith.constant 0 : index
    %785 = vector.load %arg10[%c1_267, %784, %c0_268, %c0_269] : memref<2x8x2x96xf32, #tpu.memory_space<vmem>>, vector<1x1x2x96xf32>
    %786 = vector.shape_cast %785 : vector<1x1x2x96xf32> to vector<2x96xf32>
    %cst_270 = arith.constant dense<0.000000e+00> : vector<2x96xf32>
    %787 = tpu.matmul %727, %90, %cst_270 {dimension_numbers = #tpu.dot_dimension_numbers<[1], [0], [0], [1], [0, 0, 1, 1], [], []>} : vector<2x32xf32>, vector<32x96xf32>, vector<2x96xf32> -> vector<2x96xf32>
    %788 = vector.extract_strided_slice %786 {offsets = [0, 0], sizes = [2, 32], strides = [1, 1]} : vector<2x96xf32> to vector<2x32xf32>
    %789 = vector.extract_strided_slice %787 {offsets = [0, 0], sizes = [2, 32], strides = [1, 1]} : vector<2x96xf32> to vector<2x32xf32>
    %790 = arith.addf %788, %789 : vector<2x32xf32>
    %791 = arith.negf %790 : vector<2x32xf32>
    %792 = math.exp %791 : vector<2x32xf32>
    %cst_271 = arith.constant 1.000000e+00 : f32
    %793 = vector.broadcast %cst_271 : f32 to vector<2x32xf32>
    %794 = arith.addf %793, %792 : vector<2x32xf32>
    %795 = arith.divf %793, %794 : vector<2x32xf32>
    %796 = vector.extract_strided_slice %786 {offsets = [0, 32], sizes = [2, 32], strides = [1, 1]} : vector<2x96xf32> to vector<2x32xf32>
    %797 = vector.extract_strided_slice %787 {offsets = [0, 32], sizes = [2, 32], strides = [1, 1]} : vector<2x96xf32> to vector<2x32xf32>
    %798 = arith.addf %796, %797 : vector<2x32xf32>
    %799 = arith.negf %798 : vector<2x32xf32>
    %800 = math.exp %799 : vector<2x32xf32>
    %cst_272 = arith.constant 1.000000e+00 : f32
    %801 = vector.broadcast %cst_272 : f32 to vector<2x32xf32>
    %802 = arith.addf %801, %800 : vector<2x32xf32>
    %803 = arith.divf %801, %802 : vector<2x32xf32>
    %804 = vector.extract_strided_slice %786 {offsets = [0, 64], sizes = [2, 32], strides = [1, 1]} : vector<2x96xf32> to vector<2x32xf32>
    %805 = vector.extract_strided_slice %787 {offsets = [0, 64], sizes = [2, 32], strides = [1, 1]} : vector<2x96xf32> to vector<2x32xf32>
    %806 = vector.broadcast %94 : vector<1x32xf32> to vector<2x32xf32>
    %807 = arith.addf %805, %806 : vector<2x32xf32>
    %808 = arith.mulf %795, %807 : vector<2x32xf32>
    %809 = arith.addf %804, %808 : vector<2x32xf32>
    %810 = math.tanh %809 : vector<2x32xf32>
    %cst_273 = arith.constant 1.000000e+00 : f32
    %811 = vector.broadcast %cst_273 : f32 to vector<2x32xf32>
    %812 = arith.subf %811, %803 : vector<2x32xf32>
    %813 = arith.mulf %812, %810 : vector<2x32xf32>
    %814 = arith.mulf %803, %727 : vector<2x32xf32>
    %815 = arith.addf %813, %814 : vector<2x32xf32>
    %816 = vector.shape_cast %783 : vector<2x1xi1> to vector<2x1xi1>
    %817 = vector.broadcast %816 : vector<2x1xi1> to vector<2x32xi1>
    %818 = arith.select %817, %815, %727 : vector<2x32xi1>, vector<2x32xf32>
    %cst_274 = arith.constant 0.000000e+00 : f32
    %819 = vector.shape_cast %783 : vector<2x1xi1> to vector<2x1xi1>
    %820 = vector.broadcast %819 : vector<2x1xi1> to vector<2x32xi1>
    %821 = vector.broadcast %cst_274 : f32 to vector<2x32xf32>
    %822 = arith.select %820, %818, %821 : vector<2x32xi1>, vector<2x32xf32>
    %c1_275 = arith.constant 1 : index
    %823 = arith.index_cast %736 : i32 to index
    %c0_276 = arith.constant 0 : index
    %c0_277 = arith.constant 0 : index
    %824 = vector.load %arg11[%c1_275, %823, %c0_276, %c0_277] : memref<2x8x2x32xf32, #tpu.memory_space<vmem>>, vector<1x1x2x32xf32>
    %825 = vector.shape_cast %824 : vector<1x1x2x32xf32> to vector<2x32xf32>
    %826 = vector.shape_cast %822 : vector<2x32xf32> to vector<1x1x2x32xf32>
    tpu.vector_store %arg11[%c1_275, %823, %c0_276, %c0_277], %826 {strides = array<i32>} : memref<2x8x2x32xf32, #tpu.memory_space<vmem>>, vector<1x1x2x32xf32>,
    %c8_i32 = arith.constant 8 : i32
    %c0_278 = arith.constant 0 : index
    %c0_279 = arith.constant 0 : index
    %c0_280 = arith.constant 0 : index
    %827 = vector.load %arg9[%c0_278, %c0_279, %c0_280] : memref<2x2x32xf32, #tpu.memory_space<vmem>>, vector<1x2x32xf32>
    %828 = vector.shape_cast %827 : vector<1x2x32xf32> to vector<2x32xf32>
    %829 = vector.shape_cast %773 : vector<2x32xf32> to vector<1x2x32xf32>
    tpu.vector_store %arg9[%c0_278, %c0_279, %c0_280], %829 {strides = array<i32>} : memref<2x2x32xf32, #tpu.memory_space<vmem>>, vector<1x2x32xf32>,
    %c1_281 = arith.constant 1 : index
    %c0_282 = arith.constant 0 : index
    %c0_283 = arith.constant 0 : index
    %830 = vector.load %arg9[%c1_281, %c0_282, %c0_283] : memref<2x2x32xf32, #tpu.memory_space<vmem>>, vector<1x2x32xf32>
    %831 = vector.shape_cast %830 : vector<1x2x32xf32> to vector<2x32xf32>
    %832 = vector.shape_cast %818 : vector<2x32xf32> to vector<1x2x32xf32>
    tpu.vector_store %arg9[%c1_281, %c0_282, %c0_283], %832 {strides = array<i32>} : memref<2x2x32xf32, #tpu.memory_space<vmem>>, vector<1x2x32xf32>,
    %c0_284 = arith.constant 0 : index
    %c0_285 = arith.constant 0 : index
    %c0_286 = arith.constant 0 : index
    %c0_287 = arith.constant 0 : index
    %833 = vector.load %arg11[%c0_284, %c0_285, %c0_286, %c0_287] : memref<2x8x2x32xf32, #tpu.memory_space<vmem>>, vector<1x8x2x32xf32>
    %834 = vector.shape_cast %833 : vector<1x8x2x32xf32> to vector<8x2x32xf32>
    %c1_288 = arith.constant 1 : index
    %c0_289 = arith.constant 0 : index
    %c0_290 = arith.constant 0 : index
    %c0_291 = arith.constant 0 : index
    %835 = vector.load %arg11[%c1_288, %c0_289, %c0_290, %c0_291] : memref<2x8x2x32xf32, #tpu.memory_space<vmem>>, vector<1x8x2x32xf32>
    %836 = vector.shape_cast %835 : vector<1x8x2x32xf32> to vector<8x2x32xf32>
    %837 = arith.addf %834, %836 : vector<8x2x32xf32>
    %c0_292 = arith.constant 0 : index
    %c0_293 = arith.constant 0 : index
    %c0_294 = arith.constant 0 : index
    %838 = vector.load %arg8[%c0_292, %c0_293, %c0_294] : memref<8x2x32xf32, #tpu.memory_space<vmem>>, vector<8x2x32xf32>
    tpu.vector_store %arg8[%c0_292, %c0_293, %c0_294], %837 {strides = array<i32>} : memref<8x2x32xf32, #tpu.memory_space<vmem>>, vector<8x2x32xf32>,
    return
  }
}

</mosaic_0001>

<llo_original>
// kernel: tpu_custom_call.1
$region0: #{tpu_custom_call.1}
  #allocation0 [shape = 'u32[]', space=smem, size = 0x4, offset = 0x4, fixed_abs, tag = 'smem constant byte address 0x4 - core index']
  #allocation1 [shape = 'u32[144,128]{1,0:T(1,128)}', space=vmem, size = 0x12000, scoped, tag = 'internal scratch']
  #allocation2 [shape = 'f32[2,8,2,96]{3,2,1,0:T(2,128)}', space=vmem, size = 0x4000, scoped, tag = 'scratch operand']
  #allocation3 [shape = 'f32[2,8,2,32]{3,2,1,0:T(2,128)}', space=vmem, size = 0x4000, scoped, tag = 'scratch operand']
  %s0 = inlined_call_operand.vmem [shape: s32[16,1], index: 0, kind: input, shape index: {}]
  %s1 = inlined_call_operand.vmem [shape: s32[2,1], index: 1, kind: input, shape index: {}]
  %s2 = inlined_call_operand.hbm [shape: f32[32,32], index: 2, kind: input, shape index: {}]
  %s3 = inlined_call_operand.vmem [shape: f32[2,2,32], index: 3, kind: input, shape index: {}]
  %s4 = inlined_call_operand.hbm [shape: f32[2,32,96], index: 4, kind: input, shape index: {}]
  %s5 = inlined_call_operand.hbm [shape: f32[2,32,96], index: 5, kind: input, shape index: {}]
  %s6 = inlined_call_operand.vmem [shape: f32[2,1,96], index: 6, kind: input, shape index: {}]
  %s7 = inlined_call_operand.vmem [shape: f32[2,1,32], index: 7, kind: input, shape index: {}]
  %s8 = inlined_call_operand.hbm [shape: f32[8,2,32], index: 8, kind: output, shape index: {0}]
  %s9 = inlined_call_operand.hbm [shape: f32[2,2,32], index: 9, kind: output, shape index: {1}]
  %10 = xla_tuple %s8, %s9
  %s11 = sld [smem:[#allocation0]]
  $region62: #{tpu_custom_call.1} parent=0
    _
  %s13 = ssub.s32 1, %s11
  %s14 = scalar_select 0, %s13, %s11
  $region1: #{tpu_custom_call.1} parent=0
    #allocation4 [shape = 'u8[16384]{0}', space=vmem, size = 0x4000, scoped, tag = 'input window, operand 2, single buffered']
    #allocation5 [shape = 's32[1]{0}', space=sflag, size = 0x4, scoped, tag = 'scoped memory for tpu_custom_call.1']
    #allocation6 [shape = 's32[1]{0}', space=sflag, size = 0x4, scoped, tag = 'scoped memory for tpu_custom_call.1']
    #allocation7 [shape = 'u8[32768]{0}', space=vmem, size = 0x8000, scoped, tag = 'input window, operand 4, single buffered']
    #allocation8 [shape = 's32[1]{0}', space=sflag, size = 0x4, scoped, tag = 'scoped memory for tpu_custom_call.1']
    #allocation9 [shape = 'u8[32768]{0}', space=vmem, size = 0x8000, scoped, tag = 'input window, operand 5, single buffered']
    #allocation10 [shape = 'u8[8192]{0}', space=vmem, size = 0x2000, scoped, tag = 'output window, operand 0, single buffered']
    #allocation11 [shape = 'u8[2048]{0}', space=vmem, size = 0x800, scoped, tag = 'output window, operand 1, single buffered']
    #allocation12 [shape = 's32[1]{0}', space=sflag, size = 0x4, scoped, tag = 'scoped memory for tpu_custom_call.1']
    %15 = vsyncpa [#allocation5], 0
    %16 = vsyncpa [#allocation8], 0
    %17 = vsyncpa [#allocation6], 0
    %18 = vsyncpa [#allocation12], 0
    // Predicated region
    $region2: #{tpu_custom_call.1} parent=1 // pred_check
      _
    $region3: #{tpu_custom_call.1} parent=1 // pred_check_branch
      %20 = sbr.rel (0) target = $region5
    $region4: #{tpu_custom_call.1} parent=1 // pred_region
      _
    $region5: #{tpu_custom_call.1} parent=1 // pred_fallthru
      _
    // Predicated region
    $region6: #{tpu_custom_call.1} parent=1 // pred_check
      _
    $region7: #{tpu_custom_call.1} parent=1 // pred_check_branch
      %22 = sbr.rel (0) target = $region9
    $region8: #{tpu_custom_call.1} parent=1 // pred_region
      _
    $region9: #{tpu_custom_call.1} parent=1 // pred_fallthru
      _
    // Predicated region
    $region10: #{tpu_custom_call.1} parent=1 // pred_check
      _
    $region11: #{tpu_custom_call.1} parent=1 // pred_check_branch
      %24 = sbr.rel (0) target = $region13
    $region12: #{tpu_custom_call.1} parent=1 // pred_region
      %s26 = ssub.s32 512, 512
      %27 = vsyncadd [#allocation5], %s26
      %s28 = sshll.u32 [#allocation4], 4
      %s29 = int_to_ptr.vmem [resolvable:$true] %s28
      %34 = dma.hbm_to_vmem [thread:$0]  %s2, 512, %s29, [#allocation5], 128, 128, 8
    $region13: #{tpu_custom_call.1} parent=1 // pred_fallthru
      _
    // Predicated region
    $region14: #{tpu_custom_call.1} parent=1 // pred_check
      _
    $region15: #{tpu_custom_call.1} parent=1 // pred_check_branch
      %36 = sbr.rel (0) target = $region17
    $region16: #{tpu_custom_call.1} parent=1 // pred_region
      _
    $region17: #{tpu_custom_call.1} parent=1 // pred_fallthru
      _
    // Predicated region
    $region18: #{tpu_custom_call.1} parent=1 // pred_check
      _
    $region19: #{tpu_custom_call.1} parent=1 // pred_check_branch
      %38 = sbr.rel (0) target = $region21
    $region20: #{tpu_custom_call.1} parent=1 // pred_region
      %s40 = ssub.s32 1024, 1024
      %41 = vsyncadd [#allocation8], %s40
      %s42 = sshll.u32 [#allocation7], 4
      %s43 = int_to_ptr.vmem [resolvable:$true] %s42
      %48 = dma.hbm_to_vmem [thread:$0]  %s4, 1024, %s43, [#allocation8], 128, 128, 8
    $region21: #{tpu_custom_call.1} parent=1 // pred_fallthru
      _
    // Predicated region
    $region22: #{tpu_custom_call.1} parent=1 // pred_check
      _
    $region23: #{tpu_custom_call.1} parent=1 // pred_check_branch
      %50 = sbr.rel (0) target = $region25
    $region24: #{tpu_custom_call.1} parent=1 // pred_region
      %s52 = ssub.s32 1024, 1024
      %53 = vsyncadd [#allocation8], %s52
      %s54 = sshll.u32 [#allocation9], 4
      %s55 = int_to_ptr.vmem [resolvable:$true] %s54
      %60 = dma.hbm_to_vmem [thread:$0]  %s5, 1024, %s55, [#allocation8], 128, 128, 8
    $region25: #{tpu_custom_call.1} parent=1 // pred_fallthru
      _
    // Predicated region
    $region26: #{tpu_custom_call.1} parent=1 // pred_check
      _
    $region27: #{tpu_custom_call.1} parent=1 // pred_check_branch
      %62 = sbr.rel (0) target = $region29
    $region28: #{tpu_custom_call.1} parent=1 // pred_region
      _
    $region29: #{tpu_custom_call.1} parent=1 // pred_fallthru
      _
    // Predicated region
    $region30: #{tpu_custom_call.1} parent=1 // pred_check
      _
    $region31: #{tpu_custom_call.1} parent=1 // pred_check_branch
      %64 = sbr.rel (0) target = $region33
    $region32: #{tpu_custom_call.1} parent=1 // pred_region
      _
    $region33: #{tpu_custom_call.1} parent=1 // pred_fallthru
      _
    // Predicated region
    $region34: #{tpu_custom_call.1} parent=1 // pred_check
      _
    $region35: #{tpu_custom_call.1} parent=1 // pred_check_branch
      %66 = sbr.rel (0) target = $region37
    $region36: #{tpu_custom_call.1} parent=1 // pred_region
      %67 = dma.done [#allocation5], 512
    $region37: #{tpu_custom_call.1} parent=1 // pred_fallthru
      _
    // Predicated region
    $region38: #{tpu_custom_call.1} parent=1 // pred_check
      _
    $region39: #{tpu_custom_call.1} parent=1 // pred_check_branch
      %69 = sbr.rel (0) target = $region41
    $region40: #{tpu_custom_call.1} parent=1 // pred_region
      %70 = dma.done [#allocation8], 1024
    $region41: #{tpu_custom_call.1} parent=1 // pred_fallthru
      _
    // Predicated region
    $region42: #{tpu_custom_call.1} parent=1 // pred_check
      _
    $region43: #{tpu_custom_call.1} parent=1 // pred_check_branch
      %72 = sbr.rel (0) target = $region45
    $region44: #{tpu_custom_call.1} parent=1 // pred_region
      %73 = dma.done [#allocation8], 1024
    $region45: #{tpu_custom_call.1} parent=1 // pred_fallthru
      _
    %v74 = vld [vmem:[%s0] sm:$0xff]
    %v75 = vld [vmem:[%s0 + $0x8] sm:$0xff]
    %v76 = vlaneseq
    %v77 = vand.u32 %v76, 127
    %78 = vset.pattern.permute.xlu0 0
    %79 = vperm.xlu0 %78, %v74
    %v80 = vpop.permute.xlu0 %79
    %81 = vset.pattern.permute.xlu0 0
    %82 = vperm.xlu0 %81, %v75
    %v83 = vpop.permute.xlu0 %82
    %vm84 = vcmp.eq.s32.totalorder %v80, %v77
    %vm85 = vcmp.eq.s32.totalorder %v83, %v77
    %v86 = vsel %vm84, 1, 0
    %v87 = vsel %vm85, 1, 0
    %v88 = vcvt.s32.f32 %v86
    %v89 = vcvt.s32.f32 %v87
    %v90 = vld [vmem:[#allocation4] sm:$0xff]
    %v91 = vld [vmem:[#allocation4 + $0x8] sm:$0xff]
    %v92 = vld [vmem:[#allocation4 + $0x10] sm:$0xff]
    %v93 = vld [vmem:[#allocation4 + $0x18] sm:$0xff]
    %vm94 = vcmask 261120
    %v96 = vsel %vm94, %v88, 0
    %v99 = vsel %vm94, %v89, 0
    %101 = vmatprep.subr.mxu0 0.0
    %102 = vmatpush1.msra.mxu0 %v90
    %103 = vmatprep.subr.mxu0 0.0
    %104 = vmatpush1.msra.mxu0 %v91
    %105 = vmatprep.subr.mxu0 0.0
    %106 = vmatpush1.msra.mxu0 %v92
    %107 = vmatprep.subr.mxu0 0.0
    %108 = vmatpush1.msra.mxu0 %v93
    %109 = vmatprep.subr.mxu0 0.0
    %110 = vmatpush1.msra.mxu0 0.0
    %111 = vmatprep.subr.mxu0 0.0
    %112 = vmatpush1.msra.mxu0 0.0
    %113 = vmatprep.subr.mxu0 0.0
    %114 = vmatpush1.msra.mxu0 0.0
    %115 = vmatprep.subr.mxu0 0.0
    %116 = vmatpush1.msra.mxu0 0.0
    %117 = vmatprep.subr.mxu0 0.0
    %118 = vmatpush1.msra.mxu0 0.0
    %119 = vmatprep.subr.mxu0 0.0
    %120 = vmatpush1.msra.mxu0 0.0
    %121 = vmatprep.subr.mxu0 0.0
    %122 = vmatpush1.msra.mxu0 0.0
    %123 = vmatprep.subr.mxu0 0.0
    %124 = vmatpush1.msra.mxu0 0.0
    %125 = vmatprep.subr.mxu0 0.0
    %126 = vmatpush1.msra.mxu0 0.0
    %127 = vmatprep.subr.mxu0 0.0
    %128 = vmatpush1.msra.mxu0 0.0
    %129 = vmatprep.subr.mxu0 0.0
    %130 = vmatpush1.msra.mxu0 0.0
    %131 = vmatprep.subr.mxu0 0.0
    %132 = vmatpush1.msra.mxu0 0.0
    %133 = vmatprep.subr.mxu0 0.0
    %134 = vmatpush1.msra.mxu0 0.0
    %135 = vmatprep.subr.mxu0 0.0
    %136 = vmatpush1.msra.mxu0 0.0
    %137 = vmatprep.subr.mxu0 0.0
    %138 = vmatpush1.msra.mxu0 0.0
    %139 = vmatprep.subr.mxu0 0.0
    %140 = vmatpush1.msra.mxu0 0.0
    %141 = vmatprep.subr.mxu0 0.0
    %142 = vmatpush1.msra.mxu0 0.0
    %143 = vmatprep.subr.mxu0 0.0
    %144 = vmatpush1.msra.mxu0 0.0
    %145 = vmatprep.subr.mxu0 0.0
    %146 = vmatpush1.msra.mxu0 0.0
    %147 = vmatprep.subr.mxu0 0.0
    %148 = vmatpush1.msra.mxu0 0.0
    %149 = vmatprep.subr.mxu0 0.0
    %150 = vmatpush1.msra.mxu0 0.0
    %151 = vmatprep.subr.mxu0 0.0
    %152 = vmatpush1.msra.mxu0 0.0
    %153 = vmatprep.subr.mxu0 0.0
    %154 = vmatpush1.msra.mxu0 0.0
    %155 = vmatprep.subr.mxu0 0.0
    %156 = vmatpush1.msra.mxu0 0.0
    %157 = vmatprep.subr.mxu0 0.0
    %158 = vmatpush1.msra.mxu0 0.0
    %159 = vmatprep.subr.mxu0 0.0
    %160 = vmatpush1.msra.mxu0 0.0
    %161 = vmatprep.subr.mxu0 0.0
    %162 = vmatpush1.msra.mxu0 0.0
    %163 = vmatprep.subr.mxu0 0.0
    %164 = vmatpush1.msra.mxu0 0.0
    %165 = vmatprep.mubr.f32.mxu0 0.0
    %166 = vmatmul.mubr.f32.gmra.mrb[0].mxu0 %v96
    %v167 = vpop.f32.mrb[0].mxu0
    %v168 = vadd.f32 0.0, %v167
    %v169 = vpop.f32.mrb[0].mxu0
    %170 = vmatprep.mubr.f32.mxu0 0.0
    %171 = vmatmul.mubr.f32.gmra.mrb[0].mxu0 %v99
    %v172 = vpop.f32.mrb[0].mxu0
    %v173 = vadd.f32 0.0, %v172
    %v174 = vpop.f32.mrb[0].mxu0
    %175 = vdwg.mxu0
    %v176 = vld [vmem:[#allocation7] sm:$0xff]
    %v177 = vld [vmem:[#allocation7 + $0x8] sm:$0xff]
    %v178 = vld [vmem:[#allocation7 + $0x10] sm:$0xff]
    %v179 = vld [vmem:[#allocation7 + $0x18] sm:$0xff]
    %v180 = vld [vmem:[%s6] sm:$0x1]
    %v182 = vlaneseq
    %v183 = vshrl.u32 %v182, 7
    %v184 = vsub.s32 0, %v183
    %v185 = vrot.slane %v180, %v184
    %v188 = vsel %vm94, %v168, 0
    %v191 = vsel %vm94, %v173, 0
    %193 = vmatprep.subr.mxu0 0.0
    %194 = vmatpush1.msra.mxu0 %v176
    %195 = vmatprep.subr.mxu0 0.0
    %196 = vmatpush1.msra.mxu0 %v177
    %197 = vmatprep.subr.mxu0 0.0
    %198 = vmatpush1.msra.mxu0 %v178
    %199 = vmatprep.subr.mxu0 0.0
    %200 = vmatpush1.msra.mxu0 %v179
    %201 = vmatprep.subr.mxu0 0.0
    %202 = vmatpush1.msra.mxu0 0.0
    %203 = vmatprep.subr.mxu0 0.0
    %204 = vmatpush1.msra.mxu0 0.0
    %205 = vmatprep.subr.mxu0 0.0
    %206 = vmatpush1.msra.mxu0 0.0
    %207 = vmatprep.subr.mxu0 0.0
    %208 = vmatpush1.msra.mxu0 0.0
    %209 = vmatprep.subr.mxu0 0.0
    %210 = vmatpush1.msra.mxu0 0.0
    %211 = vmatprep.subr.mxu0 0.0
    %212 = vmatpush1.msra.mxu0 0.0
    %213 = vmatprep.subr.mxu0 0.0
    %214 = vmatpush1.msra.mxu0 0.0
    %215 = vmatprep.subr.mxu0 0.0
    %216 = vmatpush1.msra.mxu0 0.0
    %217 = vmatprep.subr.mxu0 0.0
    %218 = vmatpush1.msra.mxu0 0.0
    %219 = vmatprep.subr.mxu0 0.0
    %220 = vmatpush1.msra.mxu0 0.0
    %221 = vmatprep.subr.mxu0 0.0
    %222 = vmatpush1.msra.mxu0 0.0
    %223 = vmatprep.subr.mxu0 0.0
    %224 = vmatpush1.msra.mxu0 0.0
    %225 = vmatprep.subr.mxu0 0.0
    %226 = vmatpush1.msra.mxu0 0.0
    %227 = vmatprep.subr.mxu0 0.0
    %228 = vmatpush1.msra.mxu0 0.0
    %229 = vmatprep.subr.mxu0 0.0
    %230 = vmatpush1.msra.mxu0 0.0
    %231 = vmatprep.subr.mxu0 0.0
    %232 = vmatpush1.msra.mxu0 0.0
    %233 = vmatprep.subr.mxu0 0.0
    %234 = vmatpush1.msra.mxu0 0.0
    %235 = vmatprep.subr.mxu0 0.0
    %236 = vmatpush1.msra.mxu0 0.0
    %237 = vmatprep.subr.mxu0 0.0
    %238 = vmatpush1.msra.mxu0 0.0
    %239 = vmatprep.subr.mxu0 0.0
    %240 = vmatpush1.msra.mxu0 0.0
    %241 = vmatprep.subr.mxu0 0.0
    %242 = vmatpush1.msra.mxu0 0.0
    %243 = vmatprep.subr.mxu0 0.0
    %244 = vmatpush1.msra.mxu0 0.0
    %245 = vmatprep.subr.mxu0 0.0
    %246 = vmatpush1.msra.mxu0 0.0
    %247 = vmatprep.subr.mxu0 0.0
    %248 = vmatpush1.msra.mxu0 0.0
    %249 = vmatprep.subr.mxu0 0.0
    %250 = vmatpush1.msra.mxu0 0.0
    %251 = vmatprep.subr.mxu0 0.0
    %252 = vmatpush1.msra.mxu0 0.0
    %253 = vmatprep.subr.mxu0 0.0
    %254 = vmatpush1.msra.mxu0 0.0
    %255 = vmatprep.subr.mxu0 0.0
    %256 = vmatpush1.msra.mxu0 0.0
    %257 = vmatprep.mubr.f32.mxu0 0.0
    %258 = vmatmul.mubr.f32.gmra.mrb[0].mxu0 %v188
    %v259 = vpop.f32.mrb[0].mxu0
    %v260 = vadd.f32 %v185, %v259
    %v261 = vpop.f32.mrb[0].mxu0
    %262 = vmatprep.mubr.f32.mxu0 0.0
    %263 = vmatmul.mubr.f32.gmra.mrb[0].mxu0 %v191
    %v264 = vpop.f32.mrb[0].mxu0
    %v265 = vadd.f32 %v185, %v264
    %v266 = vpop.f32.mrb[0].mxu0
    %267 = vdwg.mxu0
    %vm268 = vcmask 779264
    %269 = vst.msk [vmem:[#allocation2] sm:$0x3] %vm268, %v260
    %s270 = scalar_lea.vmem [#allocation2], 2
    %vm271 = vcmask 781314
    %272 = vst.msk [vmem:[%s270 - $0x2] sm:$0xc] %vm271, %v260
    %s273 = scalar_lea.vmem [#allocation2], 4
    %vm274 = vcmask 783364
    %275 = vst.msk [vmem:[%s273 - $0x4] sm:$0x30] %vm274, %v260
    %s276 = scalar_lea.vmem [#allocation2], 6
    %vm277 = vcmask 785414
    %278 = vst.msk [vmem:[%s276 - $0x6] sm:$0xc0] %vm277, %v260
    %s279 = scalar_lea.vmem [#allocation2], 8
    %280 = vst.msk [vmem:[%s279] sm:$0x3] %vm268, %v265
    %s281 = scalar_lea.vmem [#allocation2], 10
    %282 = vst.msk [vmem:[%s281 - $0x2] sm:$0xc] %vm271, %v265
    %s283 = scalar_lea.vmem [#allocation2], 12
    %284 = vst.msk [vmem:[%s283 - $0x4] sm:$0x30] %vm274, %v265
    %s285 = scalar_lea.vmem [#allocation2], 14
    %286 = vst.msk [vmem:[%s285 - $0x6] sm:$0xc0] %vm277, %v265
    %s287 = scalar_lea.vmem [#allocation7], 32
    %v288 = vld [vmem:[%s287] sm:$0xff]
    %v289 = vld [vmem:[%s287 + $0x8] sm:$0xff]
    %v290 = vld [vmem:[%s287 + $0x10] sm:$0xff]
    %v291 = vld [vmem:[%s287 + $0x18] sm:$0xff]
    %s292 = scalar_lea.vmem %s6, 1
    %v293 = vld [vmem:[%s292] sm:$0x1]
    %v295 = vlaneseq
    %v296 = vshrl.u32 %v295, 7
    %v297 = vsub.s32 0, %v296
    %v298 = vrot.slane %v293, %v297
    %300 = vmatprep.subr.mxu0 0.0
    %301 = vmatpush1.msra.mxu0 %v288
    %302 = vmatprep.subr.mxu0 0.0
    %303 = vmatpush1.msra.mxu0 %v289
    %304 = vmatprep.subr.mxu0 0.0
    %305 = vmatpush1.msra.mxu0 %v290
    %306 = vmatprep.subr.mxu0 0.0
    %307 = vmatpush1.msra.mxu0 %v291
    %308 = vmatprep.subr.mxu0 0.0
    %309 = vmatpush1.msra.mxu0 0.0
    %310 = vmatprep.subr.mxu0 0.0
    %311 = vmatpush1.msra.mxu0 0.0
    %312 = vmatprep.subr.mxu0 0.0
    %313 = vmatpush1.msra.mxu0 0.0
    %314 = vmatprep.subr.mxu0 0.0
    %315 = vmatpush1.msra.mxu0 0.0
    %316 = vmatprep.subr.mxu0 0.0
    %317 = vmatpush1.msra.mxu0 0.0
    %318 = vmatprep.subr.mxu0 0.0
    %319 = vmatpush1.msra.mxu0 0.0
    %320 = vmatprep.subr.mxu0 0.0
    %321 = vmatpush1.msra.mxu0 0.0
    %322 = vmatprep.subr.mxu0 0.0
    %323 = vmatpush1.msra.mxu0 0.0
    %324 = vmatprep.subr.mxu0 0.0
    %325 = vmatpush1.msra.mxu0 0.0
    %326 = vmatprep.subr.mxu0 0.0
    %327 = vmatpush1.msra.mxu0 0.0
    %328 = vmatprep.subr.mxu0 0.0
    %329 = vmatpush1.msra.mxu0 0.0
    %330 = vmatprep.subr.mxu0 0.0
    %331 = vmatpush1.msra.mxu0 0.0
    %332 = vmatprep.subr.mxu0 0.0
    %333 = vmatpush1.msra.mxu0 0.0
    %334 = vmatprep.subr.mxu0 0.0
    %335 = vmatpush1.msra.mxu0 0.0
    %336 = vmatprep.subr.mxu0 0.0
    %337 = vmatpush1.msra.mxu0 0.0
    %338 = vmatprep.subr.mxu0 0.0
    %339 = vmatpush1.msra.mxu0 0.0
    %340 = vmatprep.subr.mxu0 0.0
    %341 = vmatpush1.msra.mxu0 0.0
    %342 = vmatprep.subr.mxu0 0.0
    %343 = vmatpush1.msra.mxu0 0.0
    %344 = vmatprep.subr.mxu0 0.0
    %345 = vmatpush1.msra.mxu0 0.0
    %346 = vmatprep.subr.mxu0 0.0
    %347 = vmatpush1.msra.mxu0 0.0
    %348 = vmatprep.subr.mxu0 0.0
    %349 = vmatpush1.msra.mxu0 0.0
    %350 = vmatprep.subr.mxu0 0.0
    %351 = vmatpush1.msra.mxu0 0.0
    %352 = vmatprep.subr.mxu0 0.0
    %353 = vmatpush1.msra.mxu0 0.0
    %354 = vmatprep.subr.mxu0 0.0
    %355 = vmatpush1.msra.mxu0 0.0
    %356 = vmatprep.subr.mxu0 0.0
    %357 = vmatpush1.msra.mxu0 0.0
    %358 = vmatprep.subr.mxu0 0.0
    %359 = vmatpush1.msra.mxu0 0.0
    %360 = vmatprep.subr.mxu0 0.0
    %361 = vmatpush1.msra.mxu0 0.0
    %362 = vmatprep.subr.mxu0 0.0
    %363 = vmatpush1.msra.mxu0 0.0
    %364 = vmatprep.mubr.f32.mxu0 0.0
    %365 = vmatmul.mubr.f32.gmra.mrb[0].mxu0 %v188
    %v366 = vpop.f32.mrb[0].mxu0
    %v367 = vadd.f32 %v298, %v366
    %v368 = vpop.f32.mrb[0].mxu0
    %369 = vmatprep.mubr.f32.mxu0 0.0
    %370 = vmatmul.mubr.f32.gmra.mrb[0].mxu0 %v191
    %v371 = vpop.f32.mrb[0].mxu0
    %v372 = vadd.f32 %v298, %v371
    %v373 = vpop.f32.mrb[0].mxu0
    %374 = vdwg.mxu0
    %s375 = scalar_lea.vmem [#allocation2], 16
    %376 = vst.msk [vmem:[%s375] sm:$0x3] %vm268, %v367
    %s377 = scalar_lea.vmem [#allocation2], 18
    %378 = vst.msk [vmem:[%s377 - $0x2] sm:$0xc] %vm271, %v367
    %s379 = scalar_lea.vmem [#allocation2], 20
    %380 = vst.msk [vmem:[%s379 - $0x4] sm:$0x30] %vm274, %v367
    %s381 = scalar_lea.vmem [#allocation2], 22
    %382 = vst.msk [vmem:[%s381 - $0x6] sm:$0xc0] %vm277, %v367
    %s383 = scalar_lea.vmem [#allocation2], 24
    %384 = vst.msk [vmem:[%s383] sm:$0x3] %vm268, %v372
    %s385 = scalar_lea.vmem [#allocation2], 26
    %386 = vst.msk [vmem:[%s385 - $0x2] sm:$0xc] %vm271, %v372
    %s387 = scalar_lea.vmem [#allocation2], 28
    %388 = vst.msk [vmem:[%s387 - $0x4] sm:$0x30] %vm274, %v372
    %s389 = scalar_lea.vmem [#allocation2], 30
    %390 = vst.msk [vmem:[%s389 - $0x6] sm:$0xc0] %vm277, %v372
    %v391 = vld [vmem:[%s1] sm:$0x3]
    %v392 = vld [vmem:[#allocation9] sm:$0xff]
    %v393 = vld [vmem:[#allocation9 + $0x8] sm:$0xff]
    %v394 = vld [vmem:[#allocation9 + $0x10] sm:$0xff]
    %v395 = vld [vmem:[#allocation9 + $0x18] sm:$0xff]
    %s396 = scalar_lea.vmem [#allocation9], 32
    %v397 = vld [vmem:[%s396] sm:$0xff]
    %v398 = vld [vmem:[%s396 + $0x8] sm:$0xff]
    %v399 = vld [vmem:[%s396 + $0x10] sm:$0xff]
    %v400 = vld [vmem:[%s396 + $0x18] sm:$0xff]
    %v401 = vld [vmem:[%s7] sm:$0x1]
    %s402 = scalar_lea.vmem %s7, 1
    %v403 = vld [vmem:[%s402] sm:$0x1]
    %v404 = vld [vmem:[%s3] sm:$0x3]
    %s405 = scalar_lea.vmem %s3, 2
    %v406 = vld [vmem:[%s405] sm:$0x3]
    %vm407 = vcmp.gt.s32.totalorder %v391, 0
    %v408 = vld [vmem:[#allocation2] sm:$0x3]
    %v410 = vsel %vm94, %v404, 0
    %412 = vmatprep.subr.mxu0 0.0
    %413 = vmatpush1.msra.mxu0 %v392
    %414 = vmatprep.subr.mxu0 0.0
    %415 = vmatpush1.msra.mxu0 %v393
    %416 = vmatprep.subr.mxu0 0.0
    %417 = vmatpush1.msra.mxu0 %v394
    %418 = vmatprep.subr.mxu0 0.0
    %419 = vmatpush1.msra.mxu0 %v395
    %420 = vmatprep.subr.mxu0 0.0
    %421 = vmatpush1.msra.mxu0 0.0
    %422 = vmatprep.subr.mxu0 0.0
    %423 = vmatpush1.msra.mxu0 0.0
    %424 = vmatprep.subr.mxu0 0.0
    %425 = vmatpush1.msra.mxu0 0.0
    %426 = vmatprep.subr.mxu0 0.0
    %427 = vmatpush1.msra.mxu0 0.0
    %428 = vmatprep.subr.mxu0 0.0
    %429 = vmatpush1.msra.mxu0 0.0
    %430 = vmatprep.subr.mxu0 0.0
    %431 = vmatpush1.msra.mxu0 0.0
    %432 = vmatprep.subr.mxu0 0.0
    %433 = vmatpush1.msra.mxu0 0.0
    %434 = vmatprep.subr.mxu0 0.0
    %435 = vmatpush1.msra.mxu0 0.0
    %436 = vmatprep.subr.mxu0 0.0
    %437 = vmatpush1.msra.mxu0 0.0
    %438 = vmatprep.subr.mxu0 0.0
    %439 = vmatpush1.msra.mxu0 0.0
    %440 = vmatprep.subr.mxu0 0.0
    %441 = vmatpush1.msra.mxu0 0.0
    %442 = vmatprep.subr.mxu0 0.0
    %443 = vmatpush1.msra.mxu0 0.0
    %444 = vmatprep.subr.mxu0 0.0
    %445 = vmatpush1.msra.mxu0 0.0
    %446 = vmatprep.subr.mxu0 0.0
    %447 = vmatpush1.msra.mxu0 0.0
    %448 = vmatprep.subr.mxu0 0.0
    %449 = vmatpush1.msra.mxu0 0.0
    %450 = vmatprep.subr.mxu0 0.0
    %451 = vmatpush1.msra.mxu0 0.0
    %452 = vmatprep.subr.mxu0 0.0
    %453 = vmatpush1.msra.mxu0 0.0
    %454 = vmatprep.subr.mxu0 0.0
    %455 = vmatpush1.msra.mxu0 0.0
    %456 = vmatprep.subr.mxu0 0.0
    %457 = vmatpush1.msra.mxu0 0.0
    %458 = vmatprep.subr.mxu0 0.0
    %459 = vmatpush1.msra.mxu0 0.0
    %460 = vmatprep.subr.mxu0 0.0
    %461 = vmatpush1.msra.mxu0 0.0
    %462 = vmatprep.subr.mxu0 0.0
    %463 = vmatpush1.msra.mxu0 0.0
    %464 = vmatprep.subr.mxu0 0.0
    %465 = vmatpush1.msra.mxu0 0.0
    %466 = vmatprep.subr.mxu0 0.0
    %467 = vmatpush1.msra.mxu0 0.0
    %468 = vmatprep.subr.mxu0 0.0
    %469 = vmatpush1.msra.mxu0 0.0
    %470 = vmatprep.subr.mxu0 0.0
    %471 = vmatpush1.msra.mxu0 0.0
    %472 = vmatprep.subr.mxu0 0.0
    %473 = vmatpush1.msra.mxu0 0.0
    %474 = vmatprep.subr.mxu0 0.0
    %475 = vmatpush1.msra.mxu0 0.0
    %476 = vmatprep.mubr.f32.mxu0 0.0
    %477 = vmatmul.mubr.f32.gmra.mrb[0].mxu0 %v410
    %v478 = vpop.f32.mrb[0].mxu0
    %v479 = vadd.f32 0.0, %v478
    %v480 = vpop.f32.mrb[0].mxu0
    %481 = vdwg.mxu0
    %v482 = vadd.f32 %v408, %v479
    %v483 = vxor.u32 %v482, 2147483648
    %v484 = vmul.f32 %v483, 1.442695
    %v485 = vpow.pop %v484
    %v486 = vadd.f32 %v485, 1.0
    %v487 = vrcp.pop %v486
    %v488 = vmul.f32 1.0, %v487
    %v490 = vlaneseq
    %v491 = vshrl.u32 %v490, 7
    %v492 = vsub.s32 0, %v491
    %v493 = vrot.slane %v401, %v492
    %494 = vrot.lane.b32.xlu0 %v493, 64
    %v495 = vpop.permute.xlu0 %494
    %v497 = vadd.f32 %v479, %v495
    %499 = vrot.lane.b32.xlu0 %v497, 64
    %v500 = vpop.permute.xlu0 %499
    %v502 = vmul.f32 %v488, %v500
    %504 = vrot.lane.b32.xlu0 %v502, 64
    %v505 = vpop.permute.xlu0 %504
    %v507 = vadd.f32 %v408, %v505
    %v508 = vtanh.pop %v507
    %v509 = vsub.f32 1.0, %v488
    %511 = vrot.lane.b32.xlu0 %v508, 96
    %v512 = vpop.permute.xlu0 %511
    %v514 = vmul.f32 %v509, %v512
    %515 = vrot.lane.b32.xlu0 %v404, 32
    %v516 = vpop.permute.xlu0 %515
    %v518 = vmul.f32 %v488, %v516
    %v519 = vadd.f32 %v514, %v518
    %v520 = vsel %vm407, 1, 0
    %521 = vset.pattern.permute.xlu0 0
    %522 = vperm.xlu0 %521, %v520
    %v523 = vpop.permute.xlu0 %522
    %vm524 = vcmp.eq.s32.totalorder %v523, 1
    %v525 = vsel %vm524, %v519, %v516
    %v526 = vsel %vm524, %v519, 0.0
    %528 = vrot.lane.b32.xlu0 %v526, 96
    %v529 = vpop.permute.xlu0 %528
    %vm531 = vcmask 254976
    %532 = vst.msk [vmem:[#allocation3] sm:$0x3] %vm531, %v529
    %vm533 = vcmp.gt.s32.totalorder %v391, 7
    %v534 = vld [vmem:[%s389] sm:$0x3]
    %v536 = vsel %vm94, %v406, 0
    %538 = vmatprep.subr.mxu0 0.0
    %539 = vmatpush1.msra.mxu0 %v397
    %540 = vmatprep.subr.mxu0 0.0
    %541 = vmatpush1.msra.mxu0 %v398
    %542 = vmatprep.subr.mxu0 0.0
    %543 = vmatpush1.msra.mxu0 %v399
    %544 = vmatprep.subr.mxu0 0.0
    %545 = vmatpush1.msra.mxu0 %v400
    %546 = vmatprep.subr.mxu0 0.0
    %547 = vmatpush1.msra.mxu0 0.0
    %548 = vmatprep.subr.mxu0 0.0
    %549 = vmatpush1.msra.mxu0 0.0
    %550 = vmatprep.subr.mxu0 0.0
    %551 = vmatpush1.msra.mxu0 0.0
    %552 = vmatprep.subr.mxu0 0.0
    %553 = vmatpush1.msra.mxu0 0.0
    %554 = vmatprep.subr.mxu0 0.0
    %555 = vmatpush1.msra.mxu0 0.0
    %556 = vmatprep.subr.mxu0 0.0
    %557 = vmatpush1.msra.mxu0 0.0
    %558 = vmatprep.subr.mxu0 0.0
    %559 = vmatpush1.msra.mxu0 0.0
    %560 = vmatprep.subr.mxu0 0.0
    %561 = vmatpush1.msra.mxu0 0.0
    %562 = vmatprep.subr.mxu0 0.0
    %563 = vmatpush1.msra.mxu0 0.0
    %564 = vmatprep.subr.mxu0 0.0
    %565 = vmatpush1.msra.mxu0 0.0
    %566 = vmatprep.subr.mxu0 0.0
    %567 = vmatpush1.msra.mxu0 0.0
    %568 = vmatprep.subr.mxu0 0.0
    %569 = vmatpush1.msra.mxu0 0.0
    %570 = vmatprep.subr.mxu0 0.0
    %571 = vmatpush1.msra.mxu0 0.0
    %572 = vmatprep.subr.mxu0 0.0
    %573 = vmatpush1.msra.mxu0 0.0
    %574 = vmatprep.subr.mxu0 0.0
    %575 = vmatpush1.msra.mxu0 0.0
    %576 = vmatprep.subr.mxu0 0.0
    %577 = vmatpush1.msra.mxu0 0.0
    %578 = vmatprep.subr.mxu0 0.0
    %579 = vmatpush1.msra.mxu0 0.0
    %580 = vmatprep.subr.mxu0 0.0
    %581 = vmatpush1.msra.mxu0 0.0
    %582 = vmatprep.subr.mxu0 0.0
    %583 = vmatpush1.msra.mxu0 0.0
    %584 = vmatprep.subr.mxu0 0.0
    %585 = vmatpush1.msra.mxu0 0.0
    %586 = vmatprep.subr.mxu0 0.0
    %587 = vmatpush1.msra.mxu0 0.0
    %588 = vmatprep.subr.mxu0 0.0
    %589 = vmatpush1.msra.mxu0 0.0
    %590 = vmatprep.subr.mxu0 0.0
    %591 = vmatpush1.msra.mxu0 0.0
    %592 = vmatprep.subr.mxu0 0.0
    %593 = vmatpush1.msra.mxu0 0.0
    %594 = vmatprep.subr.mxu0 0.0
    %595 = vmatpush1.msra.mxu0 0.0
    %596 = vmatprep.subr.mxu0 0.0
    %597 = vmatpush1.msra.mxu0 0.0
    %598 = vmatprep.subr.mxu0 0.0
    %599 = vmatpush1.msra.mxu0 0.0
    %600 = vmatprep.subr.mxu0 0.0
    %601 = vmatpush1.msra.mxu0 0.0
    %602 = vmatprep.mubr.f32.mxu0 0.0
    %603 = vmatmul.mubr.f32.gmra.mrb[0].mxu0 %v536
    %v604 = vpop.f32.mrb[0].mxu0
    %v605 = vadd.f32 0.0, %v604
    %v606 = vpop.f32.mrb[0].mxu0
    %607 = vdwg.mxu0
    %v608 = vadd.f32 %v534, %v605
    %v609 = vxor.u32 %v608, 2147483648
    %v610 = vmul.f32 %v609, 1.442695
    %v611 = vpow.pop %v610
    %v612 = vadd.f32 %v611, 1.0
    %v613 = vrcp.pop %v612
    %v614 = vmul.f32 1.0, %v613
    %v616 = vlaneseq
    %v617 = vshrl.u32 %v616, 7
    %v618 = vsub.s32 0, %v617
    %v619 = vrot.slane %v403, %v618
    %620 = vrot.lane.b32.xlu0 %v619, 64
    %v621 = vpop.permute.xlu0 %620
    %v623 = vadd.f32 %v605, %v621
    %625 = vrot.lane.b32.xlu0 %v623, 64
    %v626 = vpop.permute.xlu0 %625
    %v628 = vmul.f32 %v614, %v626
    %630 = vrot.lane.b32.xlu0 %v628, 64
    %v631 = vpop.permute.xlu0 %630
    %v633 = vadd.f32 %v534, %v631
    %v634 = vtanh.pop %v633
    %v635 = vsub.f32 1.0, %v614
    %637 = vrot.lane.b32.xlu0 %v634, 96
    %v638 = vpop.permute.xlu0 %637
    %v640 = vmul.f32 %v635, %v638
    %641 = vrot.lane.b32.xlu0 %v406, 32
    %v642 = vpop.permute.xlu0 %641
    %v644 = vmul.f32 %v614, %v642
    %v645 = vadd.f32 %v640, %v644
    %v646 = vsel %vm533, 1, 0
    %647 = vset.pattern.permute.xlu0 0
    %648 = vperm.xlu0 %647, %v646
    %v649 = vpop.permute.xlu0 %648
    %vm650 = vcmp.eq.s32.totalorder %v649, 1
    %v651 = vsel %vm650, %v645, %v642
    %v652 = vsel %vm650, %v645, 0.0
    %654 = vrot.lane.b32.xlu0 %v652, 96
    %v655 = vpop.permute.xlu0 %654
    %s657 = scalar_lea.vmem [#allocation3], 30
    %658 = vst.msk [vmem:[%s657] sm:$0x3] %vm531, %v655
    %vm659 = vcmp.gt.s32.totalorder %v391, 1
    %v660 = vld [vmem:[%s270] sm:$0x3]
    %662 = vrot.lane.b32.xlu0 %v525, 96
    %v663 = vpop.permute.xlu0 %662
    %v664 = vsel %vm94, %v663, 0
    %666 = vmatprep.subr.mxu0 0.0
    %667 = vmatpush1.msra.mxu0 %v392
    %668 = vmatprep.subr.mxu0 0.0
    %669 = vmatpush1.msra.mxu0 %v393
    %670 = vmatprep.subr.mxu0 0.0
    %671 = vmatpush1.msra.mxu0 %v394
    %672 = vmatprep.subr.mxu0 0.0
    %673 = vmatpush1.msra.mxu0 %v395
    %674 = vmatprep.subr.mxu0 0.0
    %675 = vmatpush1.msra.mxu0 0.0
    %676 = vmatprep.subr.mxu0 0.0
    %677 = vmatpush1.msra.mxu0 0.0
    %678 = vmatprep.subr.mxu0 0.0
    %679 = vmatpush1.msra.mxu0 0.0
    %680 = vmatprep.subr.mxu0 0.0
    %681 = vmatpush1.msra.mxu0 0.0
    %682 = vmatprep.subr.mxu0 0.0
    %683 = vmatpush1.msra.mxu0 0.0
    %684 = vmatprep.subr.mxu0 0.0
    %685 = vmatpush1.msra.mxu0 0.0
    %686 = vmatprep.subr.mxu0 0.0
    %687 = vmatpush1.msra.mxu0 0.0
    %688 = vmatprep.subr.mxu0 0.0
    %689 = vmatpush1.msra.mxu0 0.0
    %690 = vmatprep.subr.mxu0 0.0
    %691 = vmatpush1.msra.mxu0 0.0
    %692 = vmatprep.subr.mxu0 0.0
    %693 = vmatpush1.msra.mxu0 0.0
    %694 = vmatprep.subr.mxu0 0.0
    %695 = vmatpush1.msra.mxu0 0.0
    %696 = vmatprep.subr.mxu0 0.0
    %697 = vmatpush1.msra.mxu0 0.0
    %698 = vmatprep.subr.mxu0 0.0
    %699 = vmatpush1.msra.mxu0 0.0
    %700 = vmatprep.subr.mxu0 0.0
    %701 = vmatpush1.msra.mxu0 0.0
    %702 = vmatprep.subr.mxu0 0.0
    %703 = vmatpush1.msra.mxu0 0.0
    %704 = vmatprep.subr.mxu0 0.0
    %705 = vmatpush1.msra.mxu0 0.0
    %706 = vmatprep.subr.mxu0 0.0
    %707 = vmatpush1.msra.mxu0 0.0
    %708 = vmatprep.subr.mxu0 0.0
    %709 = vmatpush1.msra.mxu0 0.0
    %710 = vmatprep.subr.mxu0 0.0
    %711 = vmatpush1.msra.mxu0 0.0
    %712 = vmatprep.subr.mxu0 0.0
    %713 = vmatpush1.msra.mxu0 0.0
    %714 = vmatprep.subr.mxu0 0.0
    %715 = vmatpush1.msra.mxu0 0.0
    %716 = vmatprep.subr.mxu0 0.0
    %717 = vmatpush1.msra.mxu0 0.0
    %718 = vmatprep.subr.mxu0 0.0
    %719 = vmatpush1.msra.mxu0 0.0
    %720 = vmatprep.subr.mxu0 0.0
    %721 = vmatpush1.msra.mxu0 0.0
    %722 = vmatprep.subr.mxu0 0.0
    %723 = vmatpush1.msra.mxu0 0.0
    %724 = vmatprep.subr.mxu0 0.0
    %725 = vmatpush1.msra.mxu0 0.0
    %726 = vmatprep.subr.mxu0 0.0
    %727 = vmatpush1.msra.mxu0 0.0
    %728 = vmatprep.subr.mxu0 0.0
    %729 = vmatpush1.msra.mxu0 0.0
    %730 = vmatprep.mubr.f32.mxu0 0.0
    %731 = vmatmul.mubr.f32.gmra.mrb[0].mxu0 %v664
    %v732 = vpop.f32.mrb[0].mxu0
    %v733 = vadd.f32 0.0, %v732
    %v734 = vpop.f32.mrb[0].mxu0
    %735 = vdwg.mxu0
    %v736 = vadd.f32 %v660, %v733
    %v737 = vxor.u32 %v736, 2147483648
    %v738 = vmul.f32 %v737, 1.442695
    %v739 = vpow.pop %v738
    %v740 = vadd.f32 %v739, 1.0
    %v741 = vrcp.pop %v740
    %v742 = vmul.f32 1.0, %v741
    %v743 = vadd.f32 %v733, %v495
    %745 = vrot.lane.b32.xlu0 %v743, 64
    %v746 = vpop.permute.xlu0 %745
    %v748 = vmul.f32 %v742, %v746
    %750 = vrot.lane.b32.xlu0 %v748, 64
    %v751 = vpop.permute.xlu0 %750
    %v753 = vadd.f32 %v660, %v751
    %v754 = vtanh.pop %v753
    %v755 = vsub.f32 1.0, %v742
    %757 = vrot.lane.b32.xlu0 %v754, 96
    %v758 = vpop.permute.xlu0 %757
    %v760 = vmul.f32 %v755, %v758
    %v761 = vmul.f32 %v742, %v525
    %v762 = vadd.f32 %v760, %v761
    %v763 = vsel %vm659, 1, 0
    %764 = vset.pattern.permute.xlu0 0
    %765 = vperm.xlu0 %764, %v763
    %v766 = vpop.permute.xlu0 %765
    %vm767 = vcmp.eq.s32.totalorder %v766, 1
    %v768 = vsel %vm767, %v762, %v525
    %v769 = vsel %vm767, %v762, 0.0
    %771 = vrot.lane.b32.xlu0 %v769, 96
    %v772 = vpop.permute.xlu0 %771
    %s774 = scalar_lea.vmem [#allocation3], 2
    %775 = vst.msk [vmem:[%s774] sm:$0x3] %vm531, %v772
    %vm776 = vcmp.gt.s32.totalorder %v391, 6
    %v777 = vld [vmem:[%s387] sm:$0x3]
    %779 = vrot.lane.b32.xlu0 %v651, 96
    %v780 = vpop.permute.xlu0 %779
    %v781 = vsel %vm94, %v780, 0
    %783 = vmatprep.subr.mxu0 0.0
    %784 = vmatpush1.msra.mxu0 %v397
    %785 = vmatprep.subr.mxu0 0.0
    %786 = vmatpush1.msra.mxu0 %v398
    %787 = vmatprep.subr.mxu0 0.0
    %788 = vmatpush1.msra.mxu0 %v399
    %789 = vmatprep.subr.mxu0 0.0
    %790 = vmatpush1.msra.mxu0 %v400
    %791 = vmatprep.subr.mxu0 0.0
    %792 = vmatpush1.msra.mxu0 0.0
    %793 = vmatprep.subr.mxu0 0.0
    %794 = vmatpush1.msra.mxu0 0.0
    %795 = vmatprep.subr.mxu0 0.0
    %796 = vmatpush1.msra.mxu0 0.0
    %797 = vmatprep.subr.mxu0 0.0
    %798 = vmatpush1.msra.mxu0 0.0
    %799 = vmatprep.subr.mxu0 0.0
    %800 = vmatpush1.msra.mxu0 0.0
    %801 = vmatprep.subr.mxu0 0.0
    %802 = vmatpush1.msra.mxu0 0.0
    %803 = vmatprep.subr.mxu0 0.0
    %804 = vmatpush1.msra.mxu0 0.0
    %805 = vmatprep.subr.mxu0 0.0
    %806 = vmatpush1.msra.mxu0 0.0
    %807 = vmatprep.subr.mxu0 0.0
    %808 = vmatpush1.msra.mxu0 0.0
    %809 = vmatprep.subr.mxu0 0.0
    %810 = vmatpush1.msra.mxu0 0.0
    %811 = vmatprep.subr.mxu0 0.0
    %812 = vmatpush1.msra.mxu0 0.0
    %813 = vmatprep.subr.mxu0 0.0
    %814 = vmatpush1.msra.mxu0 0.0
    %815 = vmatprep.subr.mxu0 0.0
    %816 = vmatpush1.msra.mxu0 0.0
    %817 = vmatprep.subr.mxu0 0.0
    %818 = vmatpush1.msra.mxu0 0.0
    %819 = vmatprep.subr.mxu0 0.0
    %820 = vmatpush1.msra.mxu0 0.0
    %821 = vmatprep.subr.mxu0 0.0
    %822 = vmatpush1.msra.mxu0 0.0
    %823 = vmatprep.subr.mxu0 0.0
    %824 = vmatpush1.msra.mxu0 0.0
    %825 = vmatprep.subr.mxu0 0.0
    %826 = vmatpush1.msra.mxu0 0.0
    %827 = vmatprep.subr.mxu0 0.0
    %828 = vmatpush1.msra.mxu0 0.0
    %829 = vmatprep.subr.mxu0 0.0
    %830 = vmatpush1.msra.mxu0 0.0
    %831 = vmatprep.subr.mxu0 0.0
    %832 = vmatpush1.msra.mxu0 0.0
    %833 = vmatprep.subr.mxu0 0.0
    %834 = vmatpush1.msra.mxu0 0.0
    %835 = vmatprep.subr.mxu0 0.0
    %836 = vmatpush1.msra.mxu0 0.0
    %837 = vmatprep.subr.mxu0 0.0
    %838 = vmatpush1.msra.mxu0 0.0
    %839 = vmatprep.subr.mxu0 0.0
    %840 = vmatpush1.msra.mxu0 0.0
    %841 = vmatprep.subr.mxu0 0.0
    %842 = vmatpush1.msra.mxu0 0.0
    %843 = vmatprep.subr.mxu0 0.0
    %844 = vmatpush1.msra.mxu0 0.0
    %845 = vmatprep.subr.mxu0 0.0
    %846 = vmatpush1.msra.mxu0 0.0
    %847 = vmatprep.mubr.f32.mxu0 0.0
    %848 = vmatmul.mubr.f32.gmra.mrb[0].mxu0 %v781
    %v849 = vpop.f32.mrb[0].mxu0
    %v850 = vadd.f32 0.0, %v849
    %v851 = vpop.f32.mrb[0].mxu0
    %852 = vdwg.mxu0
    %v853 = vadd.f32 %v777, %v850
    %v854 = vxor.u32 %v853, 2147483648
    %v855 = vmul.f32 %v854, 1.442695
    %v856 = vpow.pop %v855
    %v857 = vadd.f32 %v856, 1.0
    %v858 = vrcp.pop %v857
    %v859 = vmul.f32 1.0, %v858
    %v860 = vadd.f32 %v850, %v621
    %862 = vrot.lane.b32.xlu0 %v860, 64
    %v863 = vpop.permute.xlu0 %862
    %v865 = vmul.f32 %v859, %v863
    %867 = vrot.lane.b32.xlu0 %v865, 64
    %v868 = vpop.permute.xlu0 %867
    %v870 = vadd.f32 %v777, %v868
    %v871 = vtanh.pop %v870
    %v872 = vsub.f32 1.0, %v859
    %874 = vrot.lane.b32.xlu0 %v871, 96
    %v875 = vpop.permute.xlu0 %874
    %v877 = vmul.f32 %v872, %v875
    %v878 = vmul.f32 %v859, %v651
    %v879 = vadd.f32 %v877, %v878
    %v880 = vsel %vm776, 1, 0
    %881 = vset.pattern.permute.xlu0 0
    %882 = vperm.xlu0 %881, %v880
    %v883 = vpop.permute.xlu0 %882
    %vm884 = vcmp.eq.s32.totalorder %v883, 1
    %v885 = vsel %vm884, %v879, %v651
    %v886 = vsel %vm884, %v879, 0.0
    %888 = vrot.lane.b32.xlu0 %v886, 96
    %v889 = vpop.permute.xlu0 %888
    %s891 = scalar_lea.vmem [#allocation3], 28
    %892 = vst.msk [vmem:[%s891] sm:$0x3] %vm531, %v889
    %vm893 = vcmp.gt.s32.totalorder %v391, 2
    %v894 = vld [vmem:[%s273] sm:$0x3]
    %896 = vrot.lane.b32.xlu0 %v768, 96
    %v897 = vpop.permute.xlu0 %896
    %v898 = vsel %vm94, %v897, 0
    %900 = vmatprep.subr.mxu0 0.0
    %901 = vmatpush1.msra.mxu0 %v392
    %902 = vmatprep.subr.mxu0 0.0
    %903 = vmatpush1.msra.mxu0 %v393
    %904 = vmatprep.subr.mxu0 0.0
    %905 = vmatpush1.msra.mxu0 %v394
    %906 = vmatprep.subr.mxu0 0.0
    %907 = vmatpush1.msra.mxu0 %v395
    %908 = vmatprep.subr.mxu0 0.0
    %909 = vmatpush1.msra.mxu0 0.0
    %910 = vmatprep.subr.mxu0 0.0
    %911 = vmatpush1.msra.mxu0 0.0
    %912 = vmatprep.subr.mxu0 0.0
    %913 = vmatpush1.msra.mxu0 0.0
    %914 = vmatprep.subr.mxu0 0.0
    %915 = vmatpush1.msra.mxu0 0.0
    %916 = vmatprep.subr.mxu0 0.0
    %917 = vmatpush1.msra.mxu0 0.0
    %918 = vmatprep.subr.mxu0 0.0
    %919 = vmatpush1.msra.mxu0 0.0
    %920 = vmatprep.subr.mxu0 0.0
    %921 = vmatpush1.msra.mxu0 0.0
    %922 = vmatprep.subr.mxu0 0.0
    %923 = vmatpush1.msra.mxu0 0.0
    %924 = vmatprep.subr.mxu0 0.0
    %925 = vmatpush1.msra.mxu0 0.0
    %926 = vmatprep.subr.mxu0 0.0
    %927 = vmatpush1.msra.mxu0 0.0
    %928 = vmatprep.subr.mxu0 0.0
    %929 = vmatpush1.msra.mxu0 0.0
    %930 = vmatprep.subr.mxu0 0.0
    %931 = vmatpush1.msra.mxu0 0.0
    %932 = vmatprep.subr.mxu0 0.0
    %933 = vmatpush1.msra.mxu0 0.0
    %934 = vmatprep.subr.mxu0 0.0
    %935 = vmatpush1.msra.mxu0 0.0
    %936 = vmatprep.subr.mxu0 0.0
    %937 = vmatpush1.msra.mxu0 0.0
    %938 = vmatprep.subr.mxu0 0.0
    %939 = vmatpush1.msra.mxu0 0.0
    %940 = vmatprep.subr.mxu0 0.0
    %941 = vmatpush1.msra.mxu0 0.0
    %942 = vmatprep.subr.mxu0 0.0
    %943 = vmatpush1.msra.mxu0 0.0
    %944 = vmatprep.subr.mxu0 0.0
    %945 = vmatpush1.msra.mxu0 0.0
    %946 = vmatprep.subr.mxu0 0.0
    %947 = vmatpush1.msra.mxu0 0.0
    %948 = vmatprep.subr.mxu0 0.0
    %949 = vmatpush1.msra.mxu0 0.0
    %950 = vmatprep.subr.mxu0 0.0
    %951 = vmatpush1.msra.mxu0 0.0
    %952 = vmatprep.subr.mxu0 0.0
    %953 = vmatpush1.msra.mxu0 0.0
    %954 = vmatprep.subr.mxu0 0.0
    %955 = vmatpush1.msra.mxu0 0.0
    %956 = vmatprep.subr.mxu0 0.0
    %957 = vmatpush1.msra.mxu0 0.0
    %958 = vmatprep.subr.mxu0 0.0
    %959 = vmatpush1.msra.mxu0 0.0
    %960 = vmatprep.subr.mxu0 0.0
    %961 = vmatpush1.msra.mxu0 0.0
    %962 = vmatprep.subr.mxu0 0.0
    %963 = vmatpush1.msra.mxu0 0.0
    %964 = vmatprep.mubr.f32.mxu0 0.0
    %965 = vmatmul.mubr.f32.gmra.mrb[0].mxu0 %v898
    %v966 = vpop.f32.mrb[0].mxu0
    %v967 = vadd.f32 0.0, %v966
    %v968 = vpop.f32.mrb[0].mxu0
    %969 = vdwg.mxu0
    %v970 = vadd.f32 %v894, %v967
    %v971 = vxor.u32 %v970, 2147483648
    %v972 = vmul.f32 %v971, 1.442695
    %v973 = vpow.pop %v972
    %v974 = vadd.f32 %v973, 1.0
    %v975 = vrcp.pop %v974
    %v976 = vmul.f32 1.0, %v975
    %v977 = vadd.f32 %v967, %v495
    %979 = vrot.lane.b32.xlu0 %v977, 64
    %v980 = vpop.permute.xlu0 %979
    %v982 = vmul.f32 %v976, %v980
    %984 = vrot.lane.b32.xlu0 %v982, 64
    %v985 = vpop.permute.xlu0 %984
    %v987 = vadd.f32 %v894, %v985
    %v988 = vtanh.pop %v987
    %v989 = vsub.f32 1.0, %v976
    %991 = vrot.lane.b32.xlu0 %v988, 96
    %v992 = vpop.permute.xlu0 %991
    %v994 = vmul.f32 %v989, %v992
    %v995 = vmul.f32 %v976, %v768
    %v996 = vadd.f32 %v994, %v995
    %v997 = vsel %vm893, 1, 0
    %998 = vset.pattern.permute.xlu0 0
    %999 = vperm.xlu0 %998, %v997
    %v1000 = vpop.permute.xlu0 %999
    %vm1001 = vcmp.eq.s32.totalorder %v1000, 1
    %v1002 = vsel %vm1001, %v996, %v768
    %v1003 = vsel %vm1001, %v996, 0.0
    %1005 = vrot.lane.b32.xlu0 %v1003, 96
    %v1006 = vpop.permute.xlu0 %1005
    %s1008 = scalar_lea.vmem [#allocation3], 4
    %1009 = vst.msk [vmem:[%s1008] sm:$0x3] %vm531, %v1006
    %vm1010 = vcmp.gt.s32.totalorder %v391, 5
    %v1011 = vld [vmem:[%s385] sm:$0x3]
    %1013 = vrot.lane.b32.xlu0 %v885, 96
    %v1014 = vpop.permute.xlu0 %1013
    %v1015 = vsel %vm94, %v1014, 0
    %1017 = vmatprep.subr.mxu0 0.0
    %1018 = vmatpush1.msra.mxu0 %v397
    %1019 = vmatprep.subr.mxu0 0.0
    %1020 = vmatpush1.msra.mxu0 %v398
    %1021 = vmatprep.subr.mxu0 0.0
    %1022 = vmatpush1.msra.mxu0 %v399
    %1023 = vmatprep.subr.mxu0 0.0
    %1024 = vmatpush1.msra.mxu0 %v400
    %1025 = vmatprep.subr.mxu0 0.0
    %1026 = vmatpush1.msra.mxu0 0.0
    %1027 = vmatprep.subr.mxu0 0.0
    %1028 = vmatpush1.msra.mxu0 0.0
    %1029 = vmatprep.subr.mxu0 0.0
    %1030 = vmatpush1.msra.mxu0 0.0
    %1031 = vmatprep.subr.mxu0 0.0
    %1032 = vmatpush1.msra.mxu0 0.0
    %1033 = vmatprep.subr.mxu0 0.0
    %1034 = vmatpush1.msra.mxu0 0.0
    %1035 = vmatprep.subr.mxu0 0.0
    %1036 = vmatpush1.msra.mxu0 0.0
    %1037 = vmatprep.subr.mxu0 0.0
    %1038 = vmatpush1.msra.mxu0 0.0
    %1039 = vmatprep.subr.mxu0 0.0
    %1040 = vmatpush1.msra.mxu0 0.0
    %1041 = vmatprep.subr.mxu0 0.0
    %1042 = vmatpush1.msra.mxu0 0.0
    %1043 = vmatprep.subr.mxu0 0.0
    %1044 = vmatpush1.msra.mxu0 0.0
    %1045 = vmatprep.subr.mxu0 0.0
    %1046 = vmatpush1.msra.mxu0 0.0
    %1047 = vmatprep.subr.mxu0 0.0
    %1048 = vmatpush1.msra.mxu0 0.0
    %1049 = vmatprep.subr.mxu0 0.0
    %1050 = vmatpush1.msra.mxu0 0.0
    %1051 = vmatprep.subr.mxu0 0.0
    %1052 = vmatpush1.msra.mxu0 0.0
    %1053 = vmatprep.subr.mxu0 0.0
    %1054 = vmatpush1.msra.mxu0 0.0
    %1055 = vmatprep.subr.mxu0 0.0
    %1056 = vmatpush1.msra.mxu0 0.0
    %1057 = vmatprep.subr.mxu0 0.0
    %1058 = vmatpush1.msra.mxu0 0.0
    %1059 = vmatprep.subr.mxu0 0.0
    %1060 = vmatpush1.msra.mxu0 0.0
    %1061 = vmatprep.subr.mxu0 0.0
    %1062 = vmatpush1.msra.mxu0 0.0
    %1063 = vmatprep.subr.mxu0 0.0
    %1064 = vmatpush1.msra.mxu0 0.0
    %1065 = vmatprep.subr.mxu0 0.0
    %1066 = vmatpush1.msra.mxu0 0.0
    %1067 = vmatprep.subr.mxu0 0.0
    %1068 = vmatpush1.msra.mxu0 0.0
    %1069 = vmatprep.subr.mxu0 0.0
    %1070 = vmatpush1.msra.mxu0 0.0
    %1071 = vmatprep.subr.mxu0 0.0
    %1072 = vmatpush1.msra.mxu0 0.0
    %1073 = vmatprep.subr.mxu0 0.0
    %1074 = vmatpush1.msra.mxu0 0.0
    %1075 = vmatprep.subr.mxu0 0.0
    %1076 = vmatpush1.msra.mxu0 0.0
    %1077 = vmatprep.subr.mxu0 0.0
    %1078 = vmatpush1.msra.mxu0 0.0
    %1079 = vmatprep.subr.mxu0 0.0
    %1080 = vmatpush1.msra.mxu0 0.0
    %1081 = vmatprep.mubr.f32.mxu0 0.0
    %1082 = vmatmul.mubr.f32.gmra.mrb[0].mxu0 %v1015
    %v1083 = vpop.f32.mrb[0].mxu0
    %v1084 = vadd.f32 0.0, %v1083
    %v1085 = vpop.f32.mrb[0].mxu0
    %1086 = vdwg.mxu0
    %v1087 = vadd.f32 %v1011, %v1084
    %v1088 = vxor.u32 %v1087, 2147483648
    %v1089 = vmul.f32 %v1088, 1.442695
    %v1090 = vpow.pop %v1089
    %v1091 = vadd.f32 %v1090, 1.0
    %v1092 = vrcp.pop %v1091
    %v1093 = vmul.f32 1.0, %v1092
    %v1094 = vadd.f32 %v1084, %v621
    %1096 = vrot.lane.b32.xlu0 %v1094, 64
    %v1097 = vpop.permute.xlu0 %1096
    %v1099 = vmul.f32 %v1093, %v1097
    %1101 = vrot.lane.b32.xlu0 %v1099, 64
    %v1102 = vpop.permute.xlu0 %1101
    %v1104 = vadd.f32 %v1011, %v1102
    %v1105 = vtanh.pop %v1104
    %v1106 = vsub.f32 1.0, %v1093
    %1108 = vrot.lane.b32.xlu0 %v1105, 96
    %v1109 = vpop.permute.xlu0 %1108
    %v1111 = vmul.f32 %v1106, %v1109
    %v1112 = vmul.f32 %v1093, %v885
    %v1113 = vadd.f32 %v1111, %v1112
    %v1114 = vsel %vm1010, 1, 0
    %1115 = vset.pattern.permute.xlu0 0
    %1116 = vperm.xlu0 %1115, %v1114
    %v1117 = vpop.permute.xlu0 %1116
    %vm1118 = vcmp.eq.s32.totalorder %v1117, 1
    %v1119 = vsel %vm1118, %v1113, %v885
    %v1120 = vsel %vm1118, %v1113, 0.0
    %1122 = vrot.lane.b32.xlu0 %v1120, 96
    %v1123 = vpop.permute.xlu0 %1122
    %s1125 = scalar_lea.vmem [#allocation3], 26
    %1126 = vst.msk [vmem:[%s1125] sm:$0x3] %vm531, %v1123
    %vm1127 = vcmp.gt.s32.totalorder %v391, 3
    %v1128 = vld [vmem:[%s276] sm:$0x3]
    %1130 = vrot.lane.b32.xlu0 %v1002, 96
    %v1131 = vpop.permute.xlu0 %1130
    %v1132 = vsel %vm94, %v1131, 0
    %1134 = vmatprep.subr.mxu0 0.0
    %1135 = vmatpush1.msra.mxu0 %v392
    %1136 = vmatprep.subr.mxu0 0.0
    %1137 = vmatpush1.msra.mxu0 %v393
    %1138 = vmatprep.subr.mxu0 0.0
    %1139 = vmatpush1.msra.mxu0 %v394
    %1140 = vmatprep.subr.mxu0 0.0
    %1141 = vmatpush1.msra.mxu0 %v395
    %1142 = vmatprep.subr.mxu0 0.0
    %1143 = vmatpush1.msra.mxu0 0.0
    %1144 = vmatprep.subr.mxu0 0.0
    %1145 = vmatpush1.msra.mxu0 0.0
    %1146 = vmatprep.subr.mxu0 0.0
    %1147 = vmatpush1.msra.mxu0 0.0
    %1148 = vmatprep.subr.mxu0 0.0
    %1149 = vmatpush1.msra.mxu0 0.0
    %1150 = vmatprep.subr.mxu0 0.0
    %1151 = vmatpush1.msra.mxu0 0.0
    %1152 = vmatprep.subr.mxu0 0.0
    %1153 = vmatpush1.msra.mxu0 0.0
    %1154 = vmatprep.subr.mxu0 0.0
    %1155 = vmatpush1.msra.mxu0 0.0
    %1156 = vmatprep.subr.mxu0 0.0
    %1157 = vmatpush1.msra.mxu0 0.0
    %1158 = vmatprep.subr.mxu0 0.0
    %1159 = vmatpush1.msra.mxu0 0.0
    %1160 = vmatprep.subr.mxu0 0.0
    %1161 = vmatpush1.msra.mxu0 0.0
    %1162 = vmatprep.subr.mxu0 0.0
    %1163 = vmatpush1.msra.mxu0 0.0
    %1164 = vmatprep.subr.mxu0 0.0
    %1165 = vmatpush1.msra.mxu0 0.0
    %1166 = vmatprep.subr.mxu0 0.0
    %1167 = vmatpush1.msra.mxu0 0.0
    %1168 = vmatprep.subr.mxu0 0.0
    %1169 = vmatpush1.msra.mxu0 0.0
    %1170 = vmatprep.subr.mxu0 0.0
    %1171 = vmatpush1.msra.mxu0 0.0
    %1172 = vmatprep.subr.mxu0 0.0
    %1173 = vmatpush1.msra.mxu0 0.0
    %1174 = vmatprep.subr.mxu0 0.0
    %1175 = vmatpush1.msra.mxu0 0.0
    %1176 = vmatprep.subr.mxu0 0.0
    %1177 = vmatpush1.msra.mxu0 0.0
    %1178 = vmatprep.subr.mxu0 0.0
    %1179 = vmatpush1.msra.mxu0 0.0
    %1180 = vmatprep.subr.mxu0 0.0
    %1181 = vmatpush1.msra.mxu0 0.0
    %1182 = vmatprep.subr.mxu0 0.0
    %1183 = vmatpush1.msra.mxu0 0.0
    %1184 = vmatprep.subr.mxu0 0.0
    %1185 = vmatpush1.msra.mxu0 0.0
    %1186 = vmatprep.subr.mxu0 0.0
    %1187 = vmatpush1.msra.mxu0 0.0
    %1188 = vmatprep.subr.mxu0 0.0
    %1189 = vmatpush1.msra.mxu0 0.0
    %1190 = vmatprep.subr.mxu0 0.0
    %1191 = vmatpush1.msra.mxu0 0.0
    %1192 = vmatprep.subr.mxu0 0.0
    %1193 = vmatpush1.msra.mxu0 0.0
    %1194 = vmatprep.subr.mxu0 0.0
    %1195 = vmatpush1.msra.mxu0 0.0
    %1196 = vmatprep.subr.mxu0 0.0
    %1197 = vmatpush1.msra.mxu0 0.0
    %1198 = vmatprep.mubr.f32.mxu0 0.0
    %1199 = vmatmul.mubr.f32.gmra.mrb[0].mxu0 %v1132
    %v1200 = vpop.f32.mrb[0].mxu0
    %v1201 = vadd.f32 0.0, %v1200
    %v1202 = vpop.f32.mrb[0].mxu0
    %1203 = vdwg.mxu0
    %v1204 = vadd.f32 %v1128, %v1201
    %v1205 = vxor.u32 %v1204, 2147483648
    %v1206 = vmul.f32 %v1205, 1.442695
    %v1207 = vpow.pop %v1206
    %v1208 = vadd.f32 %v1207, 1.0
    %v1209 = vrcp.pop %v1208
    %v1210 = vmul.f32 1.0, %v1209
    %v1211 = vadd.f32 %v1201, %v495
    %1213 = vrot.lane.b32.xlu0 %v1211, 64
    %v1214 = vpop.permute.xlu0 %1213
    %v1216 = vmul.f32 %v1210, %v1214
    %1218 = vrot.lane.b32.xlu0 %v1216, 64
    %v1219 = vpop.permute.xlu0 %1218
    %v1221 = vadd.f32 %v1128, %v1219
    %v1222 = vtanh.pop %v1221
    %v1223 = vsub.f32 1.0, %v1210
    %1225 = vrot.lane.b32.xlu0 %v1222, 96
    %v1226 = vpop.permute.xlu0 %1225
    %v1228 = vmul.f32 %v1223, %v1226
    %v1229 = vmul.f32 %v1210, %v1002
    %v1230 = vadd.f32 %v1228, %v1229
    %v1231 = vsel %vm1127, 1, 0
    %1232 = vset.pattern.permute.xlu0 0
    %1233 = vperm.xlu0 %1232, %v1231
    %v1234 = vpop.permute.xlu0 %1233
    %vm1235 = vcmp.eq.s32.totalorder %v1234, 1
    %v1236 = vsel %vm1235, %v1230, %v1002
    %v1237 = vsel %vm1235, %v1230, 0.0
    %1239 = vrot.lane.b32.xlu0 %v1237, 96
    %v1240 = vpop.permute.xlu0 %1239
    %s1242 = scalar_lea.vmem [#allocation3], 6
    %1243 = vst.msk [vmem:[%s1242] sm:$0x3] %vm531, %v1240
    %vm1244 = vcmp.gt.s32.totalorder %v391, 4
    %v1245 = vld [vmem:[%s383] sm:$0x3]
    %1247 = vrot.lane.b32.xlu0 %v1119, 96
    %v1248 = vpop.permute.xlu0 %1247
    %v1249 = vsel %vm94, %v1248, 0
    %1251 = vmatprep.subr.mxu0 0.0
    %1252 = vmatpush1.msra.mxu0 %v397
    %1253 = vmatprep.subr.mxu0 0.0
    %1254 = vmatpush1.msra.mxu0 %v398
    %1255 = vmatprep.subr.mxu0 0.0
    %1256 = vmatpush1.msra.mxu0 %v399
    %1257 = vmatprep.subr.mxu0 0.0
    %1258 = vmatpush1.msra.mxu0 %v400
    %1259 = vmatprep.subr.mxu0 0.0
    %1260 = vmatpush1.msra.mxu0 0.0
    %1261 = vmatprep.subr.mxu0 0.0
    %1262 = vmatpush1.msra.mxu0 0.0
    %1263 = vmatprep.subr.mxu0 0.0
    %1264 = vmatpush1.msra.mxu0 0.0
    %1265 = vmatprep.subr.mxu0 0.0
    %1266 = vmatpush1.msra.mxu0 0.0
    %1267 = vmatprep.subr.mxu0 0.0
    %1268 = vmatpush1.msra.mxu0 0.0
    %1269 = vmatprep.subr.mxu0 0.0
    %1270 = vmatpush1.msra.mxu0 0.0
    %1271 = vmatprep.subr.mxu0 0.0
    %1272 = vmatpush1.msra.mxu0 0.0
    %1273 = vmatprep.subr.mxu0 0.0
    %1274 = vmatpush1.msra.mxu0 0.0
    %1275 = vmatprep.subr.mxu0 0.0
    %1276 = vmatpush1.msra.mxu0 0.0
    %1277 = vmatprep.subr.mxu0 0.0
    %1278 = vmatpush1.msra.mxu0 0.0
    %1279 = vmatprep.subr.mxu0 0.0
    %1280 = vmatpush1.msra.mxu0 0.0
    %1281 = vmatprep.subr.mxu0 0.0
    %1282 = vmatpush1.msra.mxu0 0.0
    %1283 = vmatprep.subr.mxu0 0.0
    %1284 = vmatpush1.msra.mxu0 0.0
    %1285 = vmatprep.subr.mxu0 0.0
    %1286 = vmatpush1.msra.mxu0 0.0
    %1287 = vmatprep.subr.mxu0 0.0
    %1288 = vmatpush1.msra.mxu0 0.0
    %1289 = vmatprep.subr.mxu0 0.0
    %1290 = vmatpush1.msra.mxu0 0.0
    %1291 = vmatprep.subr.mxu0 0.0
    %1292 = vmatpush1.msra.mxu0 0.0
    %1293 = vmatprep.subr.mxu0 0.0
    %1294 = vmatpush1.msra.mxu0 0.0
    %1295 = vmatprep.subr.mxu0 0.0
    %1296 = vmatpush1.msra.mxu0 0.0
    %1297 = vmatprep.subr.mxu0 0.0
    %1298 = vmatpush1.msra.mxu0 0.0
    %1299 = vmatprep.subr.mxu0 0.0
    %1300 = vmatpush1.msra.mxu0 0.0
    %1301 = vmatprep.subr.mxu0 0.0
    %1302 = vmatpush1.msra.mxu0 0.0
    %1303 = vmatprep.subr.mxu0 0.0
    %1304 = vmatpush1.msra.mxu0 0.0
    %1305 = vmatprep.subr.mxu0 0.0
    %1306 = vmatpush1.msra.mxu0 0.0
    %1307 = vmatprep.subr.mxu0 0.0
    %1308 = vmatpush1.msra.mxu0 0.0
    %1309 = vmatprep.subr.mxu0 0.0
    %1310 = vmatpush1.msra.mxu0 0.0
    %1311 = vmatprep.subr.mxu0 0.0
    %1312 = vmatpush1.msra.mxu0 0.0
    %1313 = vmatprep.subr.mxu0 0.0
    %1314 = vmatpush1.msra.mxu0 0.0
    %1315 = vmatprep.mubr.f32.mxu0 0.0
    %1316 = vmatmul.mubr.f32.gmra.mrb[0].mxu0 %v1249
    %v1317 = vpop.f32.mrb[0].mxu0
    %v1318 = vadd.f32 0.0, %v1317
    %v1319 = vpop.f32.mrb[0].mxu0
    %1320 = vdwg.mxu0
    %v1321 = vadd.f32 %v1245, %v1318
    %v1322 = vxor.u32 %v1321, 2147483648
    %v1323 = vmul.f32 %v1322, 1.442695
    %v1324 = vpow.pop %v1323
    %v1325 = vadd.f32 %v1324, 1.0
    %v1326 = vrcp.pop %v1325
    %v1327 = vmul.f32 1.0, %v1326
    %v1328 = vadd.f32 %v1318, %v621
    %1330 = vrot.lane.b32.xlu0 %v1328, 64
    %v1331 = vpop.permute.xlu0 %1330
    %v1333 = vmul.f32 %v1327, %v1331
    %1335 = vrot.lane.b32.xlu0 %v1333, 64
    %v1336 = vpop.permute.xlu0 %1335
    %v1338 = vadd.f32 %v1245, %v1336
    %v1339 = vtanh.pop %v1338
    %v1340 = vsub.f32 1.0, %v1327
    %1342 = vrot.lane.b32.xlu0 %v1339, 96
    %v1343 = vpop.permute.xlu0 %1342
    %v1345 = vmul.f32 %v1340, %v1343
    %v1346 = vmul.f32 %v1327, %v1119
    %v1347 = vadd.f32 %v1345, %v1346
    %v1348 = vsel %vm1244, 1, 0
    %1349 = vset.pattern.permute.xlu0 0
    %1350 = vperm.xlu0 %1349, %v1348
    %v1351 = vpop.permute.xlu0 %1350
    %vm1352 = vcmp.eq.s32.totalorder %v1351, 1
    %v1353 = vsel %vm1352, %v1347, %v1119
    %v1354 = vsel %vm1352, %v1347, 0.0
    %1356 = vrot.lane.b32.xlu0 %v1354, 96
    %v1357 = vpop.permute.xlu0 %1356
    %s1359 = scalar_lea.vmem [#allocation3], 24
    %1360 = vst.msk [vmem:[%s1359] sm:$0x3] %vm531, %v1357
    %v1361 = vld [vmem:[%s279] sm:$0x3]
    %1363 = vrot.lane.b32.xlu0 %v1236, 96
    %v1364 = vpop.permute.xlu0 %1363
    %v1365 = vsel %vm94, %v1364, 0
    %1367 = vmatprep.subr.mxu0 0.0
    %1368 = vmatpush1.msra.mxu0 %v392
    %1369 = vmatprep.subr.mxu0 0.0
    %1370 = vmatpush1.msra.mxu0 %v393
    %1371 = vmatprep.subr.mxu0 0.0
    %1372 = vmatpush1.msra.mxu0 %v394
    %1373 = vmatprep.subr.mxu0 0.0
    %1374 = vmatpush1.msra.mxu0 %v395
    %1375 = vmatprep.subr.mxu0 0.0
    %1376 = vmatpush1.msra.mxu0 0.0
    %1377 = vmatprep.subr.mxu0 0.0
    %1378 = vmatpush1.msra.mxu0 0.0
    %1379 = vmatprep.subr.mxu0 0.0
    %1380 = vmatpush1.msra.mxu0 0.0
    %1381 = vmatprep.subr.mxu0 0.0
    %1382 = vmatpush1.msra.mxu0 0.0
    %1383 = vmatprep.subr.mxu0 0.0
    %1384 = vmatpush1.msra.mxu0 0.0
    %1385 = vmatprep.subr.mxu0 0.0
    %1386 = vmatpush1.msra.mxu0 0.0
    %1387 = vmatprep.subr.mxu0 0.0
    %1388 = vmatpush1.msra.mxu0 0.0
    %1389 = vmatprep.subr.mxu0 0.0
    %1390 = vmatpush1.msra.mxu0 0.0
    %1391 = vmatprep.subr.mxu0 0.0
    %1392 = vmatpush1.msra.mxu0 0.0
    %1393 = vmatprep.subr.mxu0 0.0
    %1394 = vmatpush1.msra.mxu0 0.0
    %1395 = vmatprep.subr.mxu0 0.0
    %1396 = vmatpush1.msra.mxu0 0.0
    %1397 = vmatprep.subr.mxu0 0.0
    %1398 = vmatpush1.msra.mxu0 0.0
    %1399 = vmatprep.subr.mxu0 0.0
    %1400 = vmatpush1.msra.mxu0 0.0
    %1401 = vmatprep.subr.mxu0 0.0
    %1402 = vmatpush1.msra.mxu0 0.0
    %1403 = vmatprep.subr.mxu0 0.0
    %1404 = vmatpush1.msra.mxu0 0.0
    %1405 = vmatprep.subr.mxu0 0.0
    %1406 = vmatpush1.msra.mxu0 0.0
    %1407 = vmatprep.subr.mxu0 0.0
    %1408 = vmatpush1.msra.mxu0 0.0
    %1409 = vmatprep.subr.mxu0 0.0
    %1410 = vmatpush1.msra.mxu0 0.0
    %1411 = vmatprep.subr.mxu0 0.0
    %1412 = vmatpush1.msra.mxu0 0.0
    %1413 = vmatprep.subr.mxu0 0.0
    %1414 = vmatpush1.msra.mxu0 0.0
    %1415 = vmatprep.subr.mxu0 0.0
    %1416 = vmatpush1.msra.mxu0 0.0
    %1417 = vmatprep.subr.mxu0 0.0
    %1418 = vmatpush1.msra.mxu0 0.0
    %1419 = vmatprep.subr.mxu0 0.0
    %1420 = vmatpush1.msra.mxu0 0.0
    %1421 = vmatprep.subr.mxu0 0.0
    %1422 = vmatpush1.msra.mxu0 0.0
    %1423 = vmatprep.subr.mxu0 0.0
    %1424 = vmatpush1.msra.mxu0 0.0
    %1425 = vmatprep.subr.mxu0 0.0
    %1426 = vmatpush1.msra.mxu0 0.0
    %1427 = vmatprep.subr.mxu0 0.0
    %1428 = vmatpush1.msra.mxu0 0.0
    %1429 = vmatprep.subr.mxu0 0.0
    %1430 = vmatpush1.msra.mxu0 0.0
    %1431 = vmatprep.mubr.f32.mxu0 0.0
    %1432 = vmatmul.mubr.f32.gmra.mrb[0].mxu0 %v1365
    %v1433 = vpop.f32.mrb[0].mxu0
    %v1434 = vadd.f32 0.0, %v1433
    %v1435 = vpop.f32.mrb[0].mxu0
    %1436 = vdwg.mxu0
    %v1437 = vadd.f32 %v1361, %v1434
    %v1438 = vxor.u32 %v1437, 2147483648
    %v1439 = vmul.f32 %v1438, 1.442695
    %v1440 = vpow.pop %v1439
    %v1441 = vadd.f32 %v1440, 1.0
    %v1442 = vrcp.pop %v1441
    %v1443 = vmul.f32 1.0, %v1442
    %v1444 = vadd.f32 %v1434, %v495
    %1446 = vrot.lane.b32.xlu0 %v1444, 64
    %v1447 = vpop.permute.xlu0 %1446
    %v1449 = vmul.f32 %v1443, %v1447
    %1451 = vrot.lane.b32.xlu0 %v1449, 64
    %v1452 = vpop.permute.xlu0 %1451
    %v1454 = vadd.f32 %v1361, %v1452
    %v1455 = vtanh.pop %v1454
    %v1456 = vsub.f32 1.0, %v1443
    %1458 = vrot.lane.b32.xlu0 %v1455, 96
    %v1459 = vpop.permute.xlu0 %1458
    %v1461 = vmul.f32 %v1456, %v1459
    %v1462 = vmul.f32 %v1443, %v1236
    %v1463 = vadd.f32 %v1461, %v1462
    %v1464 = vsel %vm1352, %v1463, %v1236
    %v1465 = vsel %vm1352, %v1463, 0.0
    %1467 = vrot.lane.b32.xlu0 %v1465, 96
    %v1468 = vpop.permute.xlu0 %1467
    %s1470 = scalar_lea.vmem [#allocation3], 8
    %1471 = vst.msk [vmem:[%s1470] sm:$0x3] %vm531, %v1468
    %v1472 = vld [vmem:[%s381] sm:$0x3]
    %1474 = vrot.lane.b32.xlu0 %v1353, 96
    %v1475 = vpop.permute.xlu0 %1474
    %v1476 = vsel %vm94, %v1475, 0
    %1478 = vmatprep.subr.mxu0 0.0
    %1479 = vmatpush1.msra.mxu0 %v397
    %1480 = vmatprep.subr.mxu0 0.0
    %1481 = vmatpush1.msra.mxu0 %v398
    %1482 = vmatprep.subr.mxu0 0.0
    %1483 = vmatpush1.msra.mxu0 %v399
    %1484 = vmatprep.subr.mxu0 0.0
    %1485 = vmatpush1.msra.mxu0 %v400
    %1486 = vmatprep.subr.mxu0 0.0
    %1487 = vmatpush1.msra.mxu0 0.0
    %1488 = vmatprep.subr.mxu0 0.0
    %1489 = vmatpush1.msra.mxu0 0.0
    %1490 = vmatprep.subr.mxu0 0.0
    %1491 = vmatpush1.msra.mxu0 0.0
    %1492 = vmatprep.subr.mxu0 0.0
    %1493 = vmatpush1.msra.mxu0 0.0
    %1494 = vmatprep.subr.mxu0 0.0
    %1495 = vmatpush1.msra.mxu0 0.0
    %1496 = vmatprep.subr.mxu0 0.0
    %1497 = vmatpush1.msra.mxu0 0.0
    %1498 = vmatprep.subr.mxu0 0.0
    %1499 = vmatpush1.msra.mxu0 0.0
    %1500 = vmatprep.subr.mxu0 0.0
    %1501 = vmatpush1.msra.mxu0 0.0
    %1502 = vmatprep.subr.mxu0 0.0
    %1503 = vmatpush1.msra.mxu0 0.0
    %1504 = vmatprep.subr.mxu0 0.0
    %1505 = vmatpush1.msra.mxu0 0.0
    %1506 = vmatprep.subr.mxu0 0.0
    %1507 = vmatpush1.msra.mxu0 0.0
    %1508 = vmatprep.subr.mxu0 0.0
    %1509 = vmatpush1.msra.mxu0 0.0
    %1510 = vmatprep.subr.mxu0 0.0
    %1511 = vmatpush1.msra.mxu0 0.0
    %1512 = vmatprep.subr.mxu0 0.0
    %1513 = vmatpush1.msra.mxu0 0.0
    %1514 = vmatprep.subr.mxu0 0.0
    %1515 = vmatpush1.msra.mxu0 0.0
    %1516 = vmatprep.subr.mxu0 0.0
    %1517 = vmatpush1.msra.mxu0 0.0
    %1518 = vmatprep.subr.mxu0 0.0
    %1519 = vmatpush1.msra.mxu0 0.0
    %1520 = vmatprep.subr.mxu0 0.0
    %1521 = vmatpush1.msra.mxu0 0.0
    %1522 = vmatprep.subr.mxu0 0.0
    %1523 = vmatpush1.msra.mxu0 0.0
    %1524 = vmatprep.subr.mxu0 0.0
    %1525 = vmatpush1.msra.mxu0 0.0
    %1526 = vmatprep.subr.mxu0 0.0
    %1527 = vmatpush1.msra.mxu0 0.0
    %1528 = vmatprep.subr.mxu0 0.0
    %1529 = vmatpush1.msra.mxu0 0.0
    %1530 = vmatprep.subr.mxu0 0.0
    %1531 = vmatpush1.msra.mxu0 0.0
    %1532 = vmatprep.subr.mxu0 0.0
    %1533 = vmatpush1.msra.mxu0 0.0
    %1534 = vmatprep.subr.mxu0 0.0
    %1535 = vmatpush1.msra.mxu0 0.0
    %1536 = vmatprep.subr.mxu0 0.0
    %1537 = vmatpush1.msra.mxu0 0.0
    %1538 = vmatprep.subr.mxu0 0.0
    %1539 = vmatpush1.msra.mxu0 0.0
    %1540 = vmatprep.subr.mxu0 0.0
    %1541 = vmatpush1.msra.mxu0 0.0
    %1542 = vmatprep.mubr.f32.mxu0 0.0
    %1543 = vmatmul.mubr.f32.gmra.mrb[0].mxu0 %v1476
    %v1544 = vpop.f32.mrb[0].mxu0
    %v1545 = vadd.f32 0.0, %v1544
    %v1546 = vpop.f32.mrb[0].mxu0
    %1547 = vdwg.mxu0
    %v1548 = vadd.f32 %v1472, %v1545
    %v1549 = vxor.u32 %v1548, 2147483648
    %v1550 = vmul.f32 %v1549, 1.442695
    %v1551 = vpow.pop %v1550
    %v1552 = vadd.f32 %v1551, 1.0
    %v1553 = vrcp.pop %v1552
    %v1554 = vmul.f32 1.0, %v1553
    %v1555 = vadd.f32 %v1545, %v621
    %1557 = vrot.lane.b32.xlu0 %v1555, 64
    %v1558 = vpop.permute.xlu0 %1557
    %v1560 = vmul.f32 %v1554, %v1558
    %1562 = vrot.lane.b32.xlu0 %v1560, 64
    %v1563 = vpop.permute.xlu0 %1562
    %v1565 = vadd.f32 %v1472, %v1563
    %v1566 = vtanh.pop %v1565
    %v1567 = vsub.f32 1.0, %v1554
    %1569 = vrot.lane.b32.xlu0 %v1566, 96
    %v1570 = vpop.permute.xlu0 %1569
    %v1572 = vmul.f32 %v1567, %v1570
    %v1573 = vmul.f32 %v1554, %v1353
    %v1574 = vadd.f32 %v1572, %v1573
    %v1575 = vsel %vm1235, %v1574, %v1353
    %v1576 = vsel %vm1235, %v1574, 0.0
    %1578 = vrot.lane.b32.xlu0 %v1576, 96
    %v1579 = vpop.permute.xlu0 %1578
    %s1581 = scalar_lea.vmem [#allocation3], 22
    %1582 = vst.msk [vmem:[%s1581] sm:$0x3] %vm531, %v1579
    %v1583 = vld [vmem:[%s281] sm:$0x3]
    %1585 = vrot.lane.b32.xlu0 %v1464, 96
    %v1586 = vpop.permute.xlu0 %1585
    %v1587 = vsel %vm94, %v1586, 0
    %1589 = vmatprep.subr.mxu0 0.0
    %1590 = vmatpush1.msra.mxu0 %v392
    %1591 = vmatprep.subr.mxu0 0.0
    %1592 = vmatpush1.msra.mxu0 %v393
    %1593 = vmatprep.subr.mxu0 0.0
    %1594 = vmatpush1.msra.mxu0 %v394
    %1595 = vmatprep.subr.mxu0 0.0
    %1596 = vmatpush1.msra.mxu0 %v395
    %1597 = vmatprep.subr.mxu0 0.0
    %1598 = vmatpush1.msra.mxu0 0.0
    %1599 = vmatprep.subr.mxu0 0.0
    %1600 = vmatpush1.msra.mxu0 0.0
    %1601 = vmatprep.subr.mxu0 0.0
    %1602 = vmatpush1.msra.mxu0 0.0
    %1603 = vmatprep.subr.mxu0 0.0
    %1604 = vmatpush1.msra.mxu0 0.0
    %1605 = vmatprep.subr.mxu0 0.0
    %1606 = vmatpush1.msra.mxu0 0.0
    %1607 = vmatprep.subr.mxu0 0.0
    %1608 = vmatpush1.msra.mxu0 0.0
    %1609 = vmatprep.subr.mxu0 0.0
    %1610 = vmatpush1.msra.mxu0 0.0
    %1611 = vmatprep.subr.mxu0 0.0
    %1612 = vmatpush1.msra.mxu0 0.0
    %1613 = vmatprep.subr.mxu0 0.0
    %1614 = vmatpush1.msra.mxu0 0.0
    %1615 = vmatprep.subr.mxu0 0.0
    %1616 = vmatpush1.msra.mxu0 0.0
    %1617 = vmatprep.subr.mxu0 0.0
    %1618 = vmatpush1.msra.mxu0 0.0
    %1619 = vmatprep.subr.mxu0 0.0
    %1620 = vmatpush1.msra.mxu0 0.0
    %1621 = vmatprep.subr.mxu0 0.0
    %1622 = vmatpush1.msra.mxu0 0.0
    %1623 = vmatprep.subr.mxu0 0.0
    %1624 = vmatpush1.msra.mxu0 0.0
    %1625 = vmatprep.subr.mxu0 0.0
    %1626 = vmatpush1.msra.mxu0 0.0
    %1627 = vmatprep.subr.mxu0 0.0
    %1628 = vmatpush1.msra.mxu0 0.0
    %1629 = vmatprep.subr.mxu0 0.0
    %1630 = vmatpush1.msra.mxu0 0.0
    %1631 = vmatprep.subr.mxu0 0.0
    %1632 = vmatpush1.msra.mxu0 0.0
    %1633 = vmatprep.subr.mxu0 0.0
    %1634 = vmatpush1.msra.mxu0 0.0
    %1635 = vmatprep.subr.mxu0 0.0
    %1636 = vmatpush1.msra.mxu0 0.0
    %1637 = vmatprep.subr.mxu0 0.0
    %1638 = vmatpush1.msra.mxu0 0.0
    %1639 = vmatprep.subr.mxu0 0.0
    %1640 = vmatpush1.msra.mxu0 0.0
    %1641 = vmatprep.subr.mxu0 0.0
    %1642 = vmatpush1.msra.mxu0 0.0
    %1643 = vmatprep.subr.mxu0 0.0
    %1644 = vmatpush1.msra.mxu0 0.0
    %1645 = vmatprep.subr.mxu0 0.0
    %1646 = vmatpush1.msra.mxu0 0.0
    %1647 = vmatprep.subr.mxu0 0.0
    %1648 = vmatpush1.msra.mxu0 0.0
    %1649 = vmatprep.subr.mxu0 0.0
    %1650 = vmatpush1.msra.mxu0 0.0
    %1651 = vmatprep.subr.mxu0 0.0
    %1652 = vmatpush1.msra.mxu0 0.0
    %1653 = vmatprep.mubr.f32.mxu0 0.0
    %1654 = vmatmul.mubr.f32.gmra.mrb[0].mxu0 %v1587
    %v1655 = vpop.f32.mrb[0].mxu0
    %v1656 = vadd.f32 0.0, %v1655
    %v1657 = vpop.f32.mrb[0].mxu0
    %1658 = vdwg.mxu0
    %v1659 = vadd.f32 %v1583, %v1656
    %v1660 = vxor.u32 %v1659, 2147483648
    %v1661 = vmul.f32 %v1660, 1.442695
    %v1662 = vpow.pop %v1661
    %v1663 = vadd.f32 %v1662, 1.0
    %v1664 = vrcp.pop %v1663
    %v1665 = vmul.f32 1.0, %v1664
    %v1666 = vadd.f32 %v1656, %v495
    %1668 = vrot.lane.b32.xlu0 %v1666, 64
    %v1669 = vpop.permute.xlu0 %1668
    %v1671 = vmul.f32 %v1665, %v1669
    %1673 = vrot.lane.b32.xlu0 %v1671, 64
    %v1674 = vpop.permute.xlu0 %1673
    %v1676 = vadd.f32 %v1583, %v1674
    %v1677 = vtanh.pop %v1676
    %v1678 = vsub.f32 1.0, %v1665
    %1680 = vrot.lane.b32.xlu0 %v1677, 96
    %v1681 = vpop.permute.xlu0 %1680
    %v1683 = vmul.f32 %v1678, %v1681
    %v1684 = vmul.f32 %v1665, %v1464
    %v1685 = vadd.f32 %v1683, %v1684
    %v1686 = vsel %vm1118, %v1685, %v1464
    %v1687 = vsel %vm1118, %v1685, 0.0
    %1689 = vrot.lane.b32.xlu0 %v1687, 96
    %v1690 = vpop.permute.xlu0 %1689
    %s1692 = scalar_lea.vmem [#allocation3], 10
    %1693 = vst.msk [vmem:[%s1692] sm:$0x3] %vm531, %v1690
    %v1694 = vld [vmem:[%s379] sm:$0x3]
    %1696 = vrot.lane.b32.xlu0 %v1575, 96
    %v1697 = vpop.permute.xlu0 %1696
    %v1698 = vsel %vm94, %v1697, 0
    %1700 = vmatprep.subr.mxu0 0.0
    %1701 = vmatpush1.msra.mxu0 %v397
    %1702 = vmatprep.subr.mxu0 0.0
    %1703 = vmatpush1.msra.mxu0 %v398
    %1704 = vmatprep.subr.mxu0 0.0
    %1705 = vmatpush1.msra.mxu0 %v399
    %1706 = vmatprep.subr.mxu0 0.0
    %1707 = vmatpush1.msra.mxu0 %v400
    %1708 = vmatprep.subr.mxu0 0.0
    %1709 = vmatpush1.msra.mxu0 0.0
    %1710 = vmatprep.subr.mxu0 0.0
    %1711 = vmatpush1.msra.mxu0 0.0
    %1712 = vmatprep.subr.mxu0 0.0
    %1713 = vmatpush1.msra.mxu0 0.0
    %1714 = vmatprep.subr.mxu0 0.0
    %1715 = vmatpush1.msra.mxu0 0.0
    %1716 = vmatprep.subr.mxu0 0.0
    %1717 = vmatpush1.msra.mxu0 0.0
    %1718 = vmatprep.subr.mxu0 0.0
    %1719 = vmatpush1.msra.mxu0 0.0
    %1720 = vmatprep.subr.mxu0 0.0
    %1721 = vmatpush1.msra.mxu0 0.0
    %1722 = vmatprep.subr.mxu0 0.0
    %1723 = vmatpush1.msra.mxu0 0.0
    %1724 = vmatprep.subr.mxu0 0.0
    %1725 = vmatpush1.msra.mxu0 0.0
    %1726 = vmatprep.subr.mxu0 0.0
    %1727 = vmatpush1.msra.mxu0 0.0
    %1728 = vmatprep.subr.mxu0 0.0
    %1729 = vmatpush1.msra.mxu0 0.0
    %1730 = vmatprep.subr.mxu0 0.0
    %1731 = vmatpush1.msra.mxu0 0.0
    %1732 = vmatprep.subr.mxu0 0.0
    %1733 = vmatpush1.msra.mxu0 0.0
    %1734 = vmatprep.subr.mxu0 0.0
    %1735 = vmatpush1.msra.mxu0 0.0
    %1736 = vmatprep.subr.mxu0 0.0
    %1737 = vmatpush1.msra.mxu0 0.0
    %1738 = vmatprep.subr.mxu0 0.0
    %1739 = vmatpush1.msra.mxu0 0.0
    %1740 = vmatprep.subr.mxu0 0.0
    %1741 = vmatpush1.msra.mxu0 0.0
    %1742 = vmatprep.subr.mxu0 0.0
    %1743 = vmatpush1.msra.mxu0 0.0
    %1744 = vmatprep.subr.mxu0 0.0
    %1745 = vmatpush1.msra.mxu0 0.0
    %1746 = vmatprep.subr.mxu0 0.0
    %1747 = vmatpush1.msra.mxu0 0.0
    %1748 = vmatprep.subr.mxu0 0.0
    %1749 = vmatpush1.msra.mxu0 0.0
    %1750 = vmatprep.subr.mxu0 0.0
    %1751 = vmatpush1.msra.mxu0 0.0
    %1752 = vmatprep.subr.mxu0 0.0
    %1753 = vmatpush1.msra.mxu0 0.0
    %1754 = vmatprep.subr.mxu0 0.0
    %1755 = vmatpush1.msra.mxu0 0.0
    %1756 = vmatprep.subr.mxu0 0.0
    %1757 = vmatpush1.msra.mxu0 0.0
    %1758 = vmatprep.subr.mxu0 0.0
    %1759 = vmatpush1.msra.mxu0 0.0
    %1760 = vmatprep.subr.mxu0 0.0
    %1761 = vmatpush1.msra.mxu0 0.0
    %1762 = vmatprep.subr.mxu0 0.0
    %1763 = vmatpush1.msra.mxu0 0.0
    %1764 = vmatprep.mubr.f32.mxu0 0.0
    %1765 = vmatmul.mubr.f32.gmra.mrb[0].mxu0 %v1698
    %v1766 = vpop.f32.mrb[0].mxu0
    %v1767 = vadd.f32 0.0, %v1766
    %v1768 = vpop.f32.mrb[0].mxu0
    %1769 = vdwg.mxu0
    %v1770 = vadd.f32 %v1694, %v1767
    %v1771 = vxor.u32 %v1770, 2147483648
    %v1772 = vmul.f32 %v1771, 1.442695
    %v1773 = vpow.pop %v1772
    %v1774 = vadd.f32 %v1773, 1.0
    %v1775 = vrcp.pop %v1774
    %v1776 = vmul.f32 1.0, %v1775
    %v1777 = vadd.f32 %v1767, %v621
    %1779 = vrot.lane.b32.xlu0 %v1777, 64
    %v1780 = vpop.permute.xlu0 %1779
    %v1782 = vmul.f32 %v1776, %v1780
    %1784 = vrot.lane.b32.xlu0 %v1782, 64
    %v1785 = vpop.permute.xlu0 %1784
    %v1787 = vadd.f32 %v1694, %v1785
    %v1788 = vtanh.pop %v1787
    %v1789 = vsub.f32 1.0, %v1776
    %1791 = vrot.lane.b32.xlu0 %v1788, 96
    %v1792 = vpop.permute.xlu0 %1791
    %v1794 = vmul.f32 %v1789, %v1792
    %v1795 = vmul.f32 %v1776, %v1575
    %v1796 = vadd.f32 %v1794, %v1795
    %v1797 = vsel %vm1001, %v1796, %v1575
    %v1798 = vsel %vm1001, %v1796, 0.0
    %1800 = vrot.lane.b32.xlu0 %v1798, 96
    %v1801 = vpop.permute.xlu0 %1800
    %s1803 = scalar_lea.vmem [#allocation3], 20
    %1804 = vst.msk [vmem:[%s1803] sm:$0x3] %vm531, %v1801
    %v1805 = vld [vmem:[%s283] sm:$0x3]
    %1807 = vrot.lane.b32.xlu0 %v1686, 96
    %v1808 = vpop.permute.xlu0 %1807
    %v1809 = vsel %vm94, %v1808, 0
    %1811 = vmatprep.subr.mxu0 0.0
    %1812 = vmatpush1.msra.mxu0 %v392
    %1813 = vmatprep.subr.mxu0 0.0
    %1814 = vmatpush1.msra.mxu0 %v393
    %1815 = vmatprep.subr.mxu0 0.0
    %1816 = vmatpush1.msra.mxu0 %v394
    %1817 = vmatprep.subr.mxu0 0.0
    %1818 = vmatpush1.msra.mxu0 %v395
    %1819 = vmatprep.subr.mxu0 0.0
    %1820 = vmatpush1.msra.mxu0 0.0
    %1821 = vmatprep.subr.mxu0 0.0
    %1822 = vmatpush1.msra.mxu0 0.0
    %1823 = vmatprep.subr.mxu0 0.0
    %1824 = vmatpush1.msra.mxu0 0.0
    %1825 = vmatprep.subr.mxu0 0.0
    %1826 = vmatpush1.msra.mxu0 0.0
    %1827 = vmatprep.subr.mxu0 0.0
    %1828 = vmatpush1.msra.mxu0 0.0
    %1829 = vmatprep.subr.mxu0 0.0
    %1830 = vmatpush1.msra.mxu0 0.0
    %1831 = vmatprep.subr.mxu0 0.0
    %1832 = vmatpush1.msra.mxu0 0.0
    %1833 = vmatprep.subr.mxu0 0.0
    %1834 = vmatpush1.msra.mxu0 0.0
    %1835 = vmatprep.subr.mxu0 0.0
    %1836 = vmatpush1.msra.mxu0 0.0
    %1837 = vmatprep.subr.mxu0 0.0
    %1838 = vmatpush1.msra.mxu0 0.0
    %1839 = vmatprep.subr.mxu0 0.0
    %1840 = vmatpush1.msra.mxu0 0.0
    %1841 = vmatprep.subr.mxu0 0.0
    %1842 = vmatpush1.msra.mxu0 0.0
    %1843 = vmatprep.subr.mxu0 0.0
    %1844 = vmatpush1.msra.mxu0 0.0
    %1845 = vmatprep.subr.mxu0 0.0
    %1846 = vmatpush1.msra.mxu0 0.0
    %1847 = vmatprep.subr.mxu0 0.0
    %1848 = vmatpush1.msra.mxu0 0.0
    %1849 = vmatprep.subr.mxu0 0.0
    %1850 = vmatpush1.msra.mxu0 0.0
    %1851 = vmatprep.subr.mxu0 0.0
    %1852 = vmatpush1.msra.mxu0 0.0
    %1853 = vmatprep.subr.mxu0 0.0
    %1854 = vmatpush1.msra.mxu0 0.0
    %1855 = vmatprep.subr.mxu0 0.0
    %1856 = vmatpush1.msra.mxu0 0.0
    %1857 = vmatprep.subr.mxu0 0.0
    %1858 = vmatpush1.msra.mxu0 0.0
    %1859 = vmatprep.subr.mxu0 0.0
    %1860 = vmatpush1.msra.mxu0 0.0
    %1861 = vmatprep.subr.mxu0 0.0
    %1862 = vmatpush1.msra.mxu0 0.0
    %1863 = vmatprep.subr.mxu0 0.0
    %1864 = vmatpush1.msra.mxu0 0.0
    %1865 = vmatprep.subr.mxu0 0.0
    %1866 = vmatpush1.msra.mxu0 0.0
    %1867 = vmatprep.subr.mxu0 0.0
    %1868 = vmatpush1.msra.mxu0 0.0
    %1869 = vmatprep.subr.mxu0 0.0
    %1870 = vmatpush1.msra.mxu0 0.0
    %1871 = vmatprep.subr.mxu0 0.0
    %1872 = vmatpush1.msra.mxu0 0.0
    %1873 = vmatprep.subr.mxu0 0.0
    %1874 = vmatpush1.msra.mxu0 0.0
    %1875 = vmatprep.mubr.f32.mxu0 0.0
    %1876 = vmatmul.mubr.f32.gmra.mrb[0].mxu0 %v1809
    %v1877 = vpop.f32.mrb[0].mxu0
    %v1878 = vadd.f32 0.0, %v1877
    %v1879 = vpop.f32.mrb[0].mxu0
    %1880 = vdwg.mxu0
    %v1881 = vadd.f32 %v1805, %v1878
    %v1882 = vxor.u32 %v1881, 2147483648
    %v1883 = vmul.f32 %v1882, 1.442695
    %v1884 = vpow.pop %v1883
    %v1885 = vadd.f32 %v1884, 1.0
    %v1886 = vrcp.pop %v1885
    %v1887 = vmul.f32 1.0, %v1886
    %v1888 = vadd.f32 %v1878, %v495
    %1890 = vrot.lane.b32.xlu0 %v1888, 64
    %v1891 = vpop.permute.xlu0 %1890
    %v1893 = vmul.f32 %v1887, %v1891
    %1895 = vrot.lane.b32.xlu0 %v1893, 64
    %v1896 = vpop.permute.xlu0 %1895
    %v1898 = vadd.f32 %v1805, %v1896
    %v1899 = vtanh.pop %v1898
    %v1900 = vsub.f32 1.0, %v1887
    %1902 = vrot.lane.b32.xlu0 %v1899, 96
    %v1903 = vpop.permute.xlu0 %1902
    %v1905 = vmul.f32 %v1900, %v1903
    %v1906 = vmul.f32 %v1887, %v1686
    %v1907 = vadd.f32 %v1905, %v1906
    %v1908 = vsel %vm884, %v1907, %v1686
    %v1909 = vsel %vm884, %v1907, 0.0
    %1911 = vrot.lane.b32.xlu0 %v1909, 96
    %v1912 = vpop.permute.xlu0 %1911
    %s1914 = scalar_lea.vmem [#allocation3], 12
    %1915 = vst.msk [vmem:[%s1914] sm:$0x3] %vm531, %v1912
    %v1916 = vld [vmem:[%s377] sm:$0x3]
    %1918 = vrot.lane.b32.xlu0 %v1797, 96
    %v1919 = vpop.permute.xlu0 %1918
    %v1920 = vsel %vm94, %v1919, 0
    %1922 = vmatprep.subr.mxu0 0.0
    %1923 = vmatpush1.msra.mxu0 %v397
    %1924 = vmatprep.subr.mxu0 0.0
    %1925 = vmatpush1.msra.mxu0 %v398
    %1926 = vmatprep.subr.mxu0 0.0
    %1927 = vmatpush1.msra.mxu0 %v399
    %1928 = vmatprep.subr.mxu0 0.0
    %1929 = vmatpush1.msra.mxu0 %v400
    %1930 = vmatprep.subr.mxu0 0.0
    %1931 = vmatpush1.msra.mxu0 0.0
    %1932 = vmatprep.subr.mxu0 0.0
    %1933 = vmatpush1.msra.mxu0 0.0
    %1934 = vmatprep.subr.mxu0 0.0
    %1935 = vmatpush1.msra.mxu0 0.0
    %1936 = vmatprep.subr.mxu0 0.0
    %1937 = vmatpush1.msra.mxu0 0.0
    %1938 = vmatprep.subr.mxu0 0.0
    %1939 = vmatpush1.msra.mxu0 0.0
    %1940 = vmatprep.subr.mxu0 0.0
    %1941 = vmatpush1.msra.mxu0 0.0
    %1942 = vmatprep.subr.mxu0 0.0
    %1943 = vmatpush1.msra.mxu0 0.0
    %1944 = vmatprep.subr.mxu0 0.0
    %1945 = vmatpush1.msra.mxu0 0.0
    %1946 = vmatprep.subr.mxu0 0.0
    %1947 = vmatpush1.msra.mxu0 0.0
    %1948 = vmatprep.subr.mxu0 0.0
    %1949 = vmatpush1.msra.mxu0 0.0
    %1950 = vmatprep.subr.mxu0 0.0
    %1951 = vmatpush1.msra.mxu0 0.0
    %1952 = vmatprep.subr.mxu0 0.0
    %1953 = vmatpush1.msra.mxu0 0.0
    %1954 = vmatprep.subr.mxu0 0.0
    %1955 = vmatpush1.msra.mxu0 0.0
    %1956 = vmatprep.subr.mxu0 0.0
    %1957 = vmatpush1.msra.mxu0 0.0
    %1958 = vmatprep.subr.mxu0 0.0
    %1959 = vmatpush1.msra.mxu0 0.0
    %1960 = vmatprep.subr.mxu0 0.0
    %1961 = vmatpush1.msra.mxu0 0.0
    %1962 = vmatprep.subr.mxu0 0.0
    %1963 = vmatpush1.msra.mxu0 0.0
    %1964 = vmatprep.subr.mxu0 0.0
    %1965 = vmatpush1.msra.mxu0 0.0
    %1966 = vmatprep.subr.mxu0 0.0
    %1967 = vmatpush1.msra.mxu0 0.0
    %1968 = vmatprep.subr.mxu0 0.0
    %1969 = vmatpush1.msra.mxu0 0.0
    %1970 = vmatprep.subr.mxu0 0.0
    %1971 = vmatpush1.msra.mxu0 0.0
    %1972 = vmatprep.subr.mxu0 0.0
    %1973 = vmatpush1.msra.mxu0 0.0
    %1974 = vmatprep.subr.mxu0 0.0
    %1975 = vmatpush1.msra.mxu0 0.0
    %1976 = vmatprep.subr.mxu0 0.0
    %1977 = vmatpush1.msra.mxu0 0.0
    %1978 = vmatprep.subr.mxu0 0.0
    %1979 = vmatpush1.msra.mxu0 0.0
    %1980 = vmatprep.subr.mxu0 0.0
    %1981 = vmatpush1.msra.mxu0 0.0
    %1982 = vmatprep.subr.mxu0 0.0
    %1983 = vmatpush1.msra.mxu0 0.0
    %1984 = vmatprep.subr.mxu0 0.0
    %1985 = vmatpush1.msra.mxu0 0.0
    %1986 = vmatprep.mubr.f32.mxu0 0.0
    %1987 = vmatmul.mubr.f32.gmra.mrb[0].mxu0 %v1920
    %v1988 = vpop.f32.mrb[0].mxu0
    %v1989 = vadd.f32 0.0, %v1988
    %v1990 = vpop.f32.mrb[0].mxu0
    %1991 = vdwg.mxu0
    %v1992 = vadd.f32 %v1916, %v1989
    %v1993 = vxor.u32 %v1992, 2147483648
    %v1994 = vmul.f32 %v1993, 1.442695
    %v1995 = vpow.pop %v1994
    %v1996 = vadd.f32 %v1995, 1.0
    %v1997 = vrcp.pop %v1996
    %v1998 = vmul.f32 1.0, %v1997
    %v1999 = vadd.f32 %v1989, %v621
    %2001 = vrot.lane.b32.xlu0 %v1999, 64
    %v2002 = vpop.permute.xlu0 %2001
    %v2004 = vmul.f32 %v1998, %v2002
    %2006 = vrot.lane.b32.xlu0 %v2004, 64
    %v2007 = vpop.permute.xlu0 %2006
    %v2009 = vadd.f32 %v1916, %v2007
    %v2010 = vtanh.pop %v2009
    %v2011 = vsub.f32 1.0, %v1998
    %2013 = vrot.lane.b32.xlu0 %v2010, 96
    %v2014 = vpop.permute.xlu0 %2013
    %v2016 = vmul.f32 %v2011, %v2014
    %v2017 = vmul.f32 %v1998, %v1797
    %v2018 = vadd.f32 %v2016, %v2017
    %v2019 = vsel %vm767, %v2018, %v1797
    %v2020 = vsel %vm767, %v2018, 0.0
    %2022 = vrot.lane.b32.xlu0 %v2020, 96
    %v2023 = vpop.permute.xlu0 %2022
    %s2025 = scalar_lea.vmem [#allocation3], 18
    %2026 = vst.msk [vmem:[%s2025] sm:$0x3] %vm531, %v2023
    %v2027 = vld [vmem:[%s285] sm:$0x3]
    %2029 = vrot.lane.b32.xlu0 %v1908, 96
    %v2030 = vpop.permute.xlu0 %2029
    %v2031 = vsel %vm94, %v2030, 0
    %2033 = vmatprep.subr.mxu0 0.0
    %2034 = vmatpush1.msra.mxu0 %v392
    %2035 = vmatprep.subr.mxu0 0.0
    %2036 = vmatpush1.msra.mxu0 %v393
    %2037 = vmatprep.subr.mxu0 0.0
    %2038 = vmatpush1.msra.mxu0 %v394
    %2039 = vmatprep.subr.mxu0 0.0
    %2040 = vmatpush1.msra.mxu0 %v395
    %2041 = vmatprep.subr.mxu0 0.0
    %2042 = vmatpush1.msra.mxu0 0.0
    %2043 = vmatprep.subr.mxu0 0.0
    %2044 = vmatpush1.msra.mxu0 0.0
    %2045 = vmatprep.subr.mxu0 0.0
    %2046 = vmatpush1.msra.mxu0 0.0
    %2047 = vmatprep.subr.mxu0 0.0
    %2048 = vmatpush1.msra.mxu0 0.0
    %2049 = vmatprep.subr.mxu0 0.0
    %2050 = vmatpush1.msra.mxu0 0.0
    %2051 = vmatprep.subr.mxu0 0.0
    %2052 = vmatpush1.msra.mxu0 0.0
    %2053 = vmatprep.subr.mxu0 0.0
    %2054 = vmatpush1.msra.mxu0 0.0
    %2055 = vmatprep.subr.mxu0 0.0
    %2056 = vmatpush1.msra.mxu0 0.0
    %2057 = vmatprep.subr.mxu0 0.0
    %2058 = vmatpush1.msra.mxu0 0.0
    %2059 = vmatprep.subr.mxu0 0.0
    %2060 = vmatpush1.msra.mxu0 0.0
    %2061 = vmatprep.subr.mxu0 0.0
    %2062 = vmatpush1.msra.mxu0 0.0
    %2063 = vmatprep.subr.mxu0 0.0
    %2064 = vmatpush1.msra.mxu0 0.0
    %2065 = vmatprep.subr.mxu0 0.0
    %2066 = vmatpush1.msra.mxu0 0.0
    %2067 = vmatprep.subr.mxu0 0.0
    %2068 = vmatpush1.msra.mxu0 0.0
    %2069 = vmatprep.subr.mxu0 0.0
    %2070 = vmatpush1.msra.mxu0 0.0
    %2071 = vmatprep.subr.mxu0 0.0
    %2072 = vmatpush1.msra.mxu0 0.0
    %2073 = vmatprep.subr.mxu0 0.0
    %2074 = vmatpush1.msra.mxu0 0.0
    %2075 = vmatprep.subr.mxu0 0.0
    %2076 = vmatpush1.msra.mxu0 0.0
    %2077 = vmatprep.subr.mxu0 0.0
    %2078 = vmatpush1.msra.mxu0 0.0
    %2079 = vmatprep.subr.mxu0 0.0
    %2080 = vmatpush1.msra.mxu0 0.0
    %2081 = vmatprep.subr.mxu0 0.0
    %2082 = vmatpush1.msra.mxu0 0.0
    %2083 = vmatprep.subr.mxu0 0.0
    %2084 = vmatpush1.msra.mxu0 0.0
    %2085 = vmatprep.subr.mxu0 0.0
    %2086 = vmatpush1.msra.mxu0 0.0
    %2087 = vmatprep.subr.mxu0 0.0
    %2088 = vmatpush1.msra.mxu0 0.0
    %2089 = vmatprep.subr.mxu0 0.0
    %2090 = vmatpush1.msra.mxu0 0.0
    %2091 = vmatprep.subr.mxu0 0.0
    %2092 = vmatpush1.msra.mxu0 0.0
    %2093 = vmatprep.subr.mxu0 0.0
    %2094 = vmatpush1.msra.mxu0 0.0
    %2095 = vmatprep.subr.mxu0 0.0
    %2096 = vmatpush1.msra.mxu0 0.0
    %2097 = vmatprep.mubr.f32.mxu0 0.0
    %2098 = vmatmul.mubr.f32.gmra.mrb[0].mxu0 %v2031
    %v2099 = vpop.f32.mrb[0].mxu0
    %v2100 = vadd.f32 0.0, %v2099
    %v2101 = vpop.f32.mrb[0].mxu0
    %2102 = vdwg.mxu0
    %v2103 = vadd.f32 %v2027, %v2100
    %v2104 = vxor.u32 %v2103, 2147483648
    %v2105 = vmul.f32 %v2104, 1.442695
    %v2106 = vpow.pop %v2105
    %v2107 = vadd.f32 %v2106, 1.0
    %v2108 = vrcp.pop %v2107
    %v2109 = vmul.f32 1.0, %v2108
    %v2110 = vadd.f32 %v2100, %v495
    %2112 = vrot.lane.b32.xlu0 %v2110, 64
    %v2113 = vpop.permute.xlu0 %2112
    %v2115 = vmul.f32 %v2109, %v2113
    %2117 = vrot.lane.b32.xlu0 %v2115, 64
    %v2118 = vpop.permute.xlu0 %2117
    %v2120 = vadd.f32 %v2027, %v2118
    %v2121 = vtanh.pop %v2120
    %v2122 = vsub.f32 1.0, %v2109
    %2124 = vrot.lane.b32.xlu0 %v2121, 96
    %v2125 = vpop.permute.xlu0 %2124
    %v2127 = vmul.f32 %v2122, %v2125
    %v2128 = vmul.f32 %v2109, %v1908
    %v2129 = vadd.f32 %v2127, %v2128
    %v2130 = vsel %vm650, %v2129, %v1908
    %v2131 = vsel %vm650, %v2129, 0.0
    %2133 = vrot.lane.b32.xlu0 %v2131, 96
    %v2134 = vpop.permute.xlu0 %2133
    %s2136 = scalar_lea.vmem [#allocation3], 14
    %2137 = vst.msk [vmem:[%s2136] sm:$0x3] %vm531, %v2134
    %v2138 = vld [vmem:[%s375] sm:$0x3]
    %2140 = vrot.lane.b32.xlu0 %v2019, 96
    %v2141 = vpop.permute.xlu0 %2140
    %v2142 = vsel %vm94, %v2141, 0
    %2144 = vmatprep.subr.mxu0 0.0
    %2145 = vmatpush1.msra.mxu0 %v397
    %2146 = vmatprep.subr.mxu0 0.0
    %2147 = vmatpush1.msra.mxu0 %v398
    %2148 = vmatprep.subr.mxu0 0.0
    %2149 = vmatpush1.msra.mxu0 %v399
    %2150 = vmatprep.subr.mxu0 0.0
    %2151 = vmatpush1.msra.mxu0 %v400
    %2152 = vmatprep.subr.mxu0 0.0
    %2153 = vmatpush1.msra.mxu0 0.0
    %2154 = vmatprep.subr.mxu0 0.0
    %2155 = vmatpush1.msra.mxu0 0.0
    %2156 = vmatprep.subr.mxu0 0.0
    %2157 = vmatpush1.msra.mxu0 0.0
    %2158 = vmatprep.subr.mxu0 0.0
    %2159 = vmatpush1.msra.mxu0 0.0
    %2160 = vmatprep.subr.mxu0 0.0
    %2161 = vmatpush1.msra.mxu0 0.0
    %2162 = vmatprep.subr.mxu0 0.0
    %2163 = vmatpush1.msra.mxu0 0.0
    %2164 = vmatprep.subr.mxu0 0.0
    %2165 = vmatpush1.msra.mxu0 0.0
    %2166 = vmatprep.subr.mxu0 0.0
    %2167 = vmatpush1.msra.mxu0 0.0
    %2168 = vmatprep.subr.mxu0 0.0
    %2169 = vmatpush1.msra.mxu0 0.0
    %2170 = vmatprep.subr.mxu0 0.0
    %2171 = vmatpush1.msra.mxu0 0.0
    %2172 = vmatprep.subr.mxu0 0.0
    %2173 = vmatpush1.msra.mxu0 0.0
    %2174 = vmatprep.subr.mxu0 0.0
    %2175 = vmatpush1.msra.mxu0 0.0
    %2176 = vmatprep.subr.mxu0 0.0
    %2177 = vmatpush1.msra.mxu0 0.0
    %2178 = vmatprep.subr.mxu0 0.0
    %2179 = vmatpush1.msra.mxu0 0.0
    %2180 = vmatprep.subr.mxu0 0.0
    %2181 = vmatpush1.msra.mxu0 0.0
    %2182 = vmatprep.subr.mxu0 0.0
    %2183 = vmatpush1.msra.mxu0 0.0
    %2184 = vmatprep.subr.mxu0 0.0
    %2185 = vmatpush1.msra.mxu0 0.0
    %2186 = vmatprep.subr.mxu0 0.0
    %2187 = vmatpush1.msra.mxu0 0.0
    %2188 = vmatprep.subr.mxu0 0.0
    %2189 = vmatpush1.msra.mxu0 0.0
    %2190 = vmatprep.subr.mxu0 0.0
    %2191 = vmatpush1.msra.mxu0 0.0
    %2192 = vmatprep.subr.mxu0 0.0
    %2193 = vmatpush1.msra.mxu0 0.0
    %2194 = vmatprep.subr.mxu0 0.0
    %2195 = vmatpush1.msra.mxu0 0.0
    %2196 = vmatprep.subr.mxu0 0.0
    %2197 = vmatpush1.msra.mxu0 0.0
    %2198 = vmatprep.subr.mxu0 0.0
    %2199 = vmatpush1.msra.mxu0 0.0
    %2200 = vmatprep.subr.mxu0 0.0
    %2201 = vmatpush1.msra.mxu0 0.0
    %2202 = vmatprep.subr.mxu0 0.0
    %2203 = vmatpush1.msra.mxu0 0.0
    %2204 = vmatprep.subr.mxu0 0.0
    %2205 = vmatpush1.msra.mxu0 0.0
    %2206 = vmatprep.subr.mxu0 0.0
    %2207 = vmatpush1.msra.mxu0 0.0
    %2208 = vmatprep.mubr.f32.mxu0 0.0
    %2209 = vmatmul.mubr.f32.gmra.mrb[0].mxu0 %v2142
    %v2210 = vpop.f32.mrb[0].mxu0
    %v2211 = vadd.f32 0.0, %v2210
    %v2212 = vpop.f32.mrb[0].mxu0
    %2213 = vdwg.mxu0
    %v2214 = vadd.f32 %v2138, %v2211
    %v2215 = vxor.u32 %v2214, 2147483648
    %v2216 = vmul.f32 %v2215, 1.442695
    %v2217 = vpow.pop %v2216
    %v2218 = vadd.f32 %v2217, 1.0
    %v2219 = vrcp.pop %v2218
    %v2220 = vmul.f32 1.0, %v2219
    %v2221 = vadd.f32 %v2211, %v621
    %2223 = vrot.lane.b32.xlu0 %v2221, 64
    %v2224 = vpop.permute.xlu0 %2223
    %v2226 = vmul.f32 %v2220, %v2224
    %2228 = vrot.lane.b32.xlu0 %v2226, 64
    %v2229 = vpop.permute.xlu0 %2228
    %v2231 = vadd.f32 %v2138, %v2229
    %v2232 = vtanh.pop %v2231
    %v2233 = vsub.f32 1.0, %v2220
    %2235 = vrot.lane.b32.xlu0 %v2232, 96
    %v2236 = vpop.permute.xlu0 %2235
    %v2238 = vmul.f32 %v2233, %v2236
    %v2239 = vmul.f32 %v2220, %v2019
    %v2240 = vadd.f32 %v2238, %v2239
    %v2241 = vsel %vm524, %v2240, %v2019
    %v2242 = vsel %vm524, %v2240, 0.0
    %2244 = vrot.lane.b32.xlu0 %v2242, 96
    %v2245 = vpop.permute.xlu0 %2244
    %s2247 = scalar_lea.vmem [#allocation3], 16
    %2248 = vst.msk [vmem:[%s2247] sm:$0x3] %vm531, %v2245
    %2250 = vrot.lane.b32.xlu0 %v2130, 96
    %v2251 = vpop.permute.xlu0 %2250
    %2253 = vst.msk [vmem:[#allocation11] sm:$0x3] %vm531, %v2251
    %2255 = vrot.lane.b32.xlu0 %v2241, 96
    %v2256 = vpop.permute.xlu0 %2255
    %s2258 = scalar_lea.vmem [#allocation11], 2
    %2259 = vst.msk [vmem:[%s2258] sm:$0x3] %vm531, %v2256
    %v2260 = vld [vmem:[#allocation3] sm:$0x3]
    %v2261 = vld [vmem:[#allocation3 + $0x2] sm:$0x3]
    %v2262 = vld [vmem:[#allocation3 + $0x4] sm:$0x3]
    %v2263 = vld [vmem:[#allocation3 + $0x6] sm:$0x3]
    %v2264 = vld [vmem:[#allocation3 + $0x8] sm:$0x3]
    %v2265 = vld [vmem:[#allocation3 + $0xa] sm:$0x3]
    %v2266 = vld [vmem:[#allocation3 + $0xc] sm:$0x3]
    %v2267 = vld [vmem:[#allocation3 + $0xe] sm:$0x3]
    %v2268 = vld [vmem:[%s2247] sm:$0x3]
    %v2269 = vld [vmem:[%s2247 + $0x2] sm:$0x3]
    %v2270 = vld [vmem:[%s2247 + $0x4] sm:$0x3]
    %v2271 = vld [vmem:[%s2247 + $0x6] sm:$0x3]
    %v2272 = vld [vmem:[%s2247 + $0x8] sm:$0x3]
    %v2273 = vld [vmem:[%s2247 + $0xa] sm:$0x3]
    %v2274 = vld [vmem:[%s2247 + $0xc] sm:$0x3]
    %v2275 = vld [vmem:[%s2247 + $0xe] sm:$0x3]
    %v2276 = vadd.f32 %v2260, %v2268
    %v2277 = vadd.f32 %v2261, %v2269
    %v2278 = vadd.f32 %v2262, %v2270
    %v2279 = vadd.f32 %v2263, %v2271
    %v2280 = vadd.f32 %v2264, %v2272
    %v2281 = vadd.f32 %v2265, %v2273
    %v2282 = vadd.f32 %v2266, %v2274
    %v2283 = vadd.f32 %v2267, %v2275
    %2284 = vst.msk [vmem:[#allocation10] sm:$0x3] %vm531, %v2276
    %2285 = vst.msk [vmem:[#allocation10 + $0x2] sm:$0x3] %vm531, %v2277
    %2286 = vst.msk [vmem:[#allocation10 + $0x4] sm:$0x3] %vm531, %v2278
    %2287 = vst.msk [vmem:[#allocation10 + $0x6] sm:$0x3] %vm531, %v2279
    %2288 = vst.msk [vmem:[#allocation10 + $0x8] sm:$0x3] %vm531, %v2280
    %2289 = vst.msk [vmem:[#allocation10 + $0xa] sm:$0x3] %vm531, %v2281
    %2290 = vst.msk [vmem:[#allocation10 + $0xc] sm:$0x3] %vm531, %v2282
    %2291 = vst.msk [vmem:[#allocation10 + $0xe] sm:$0x3] %vm531, %v2283
    // Predicated region
    $region46: #{tpu_custom_call.1} parent=1 // pred_check
      _
    $region47: #{tpu_custom_call.1} parent=1 // pred_check_branch
      %2293 = sbr.rel (0) target = $region49
    $region48: #{tpu_custom_call.1} parent=1 // pred_region
      %s2295 = ssub.s32 256, 256
      %2296 = vsyncadd [#allocation6], %s2295
      %s2297 = sshll.u32 [#allocation10], 4
      %s2298 = int_to_ptr.vmem [resolvable:$true] %s2297
      %2303 = dma.vmem_to_hbm [thread:$0]  %s2298, 256, %s8, [#allocation6], 32, 32, 2
    $region49: #{tpu_custom_call.1} parent=1 // pred_fallthru
      _
    // Predicated region
    $region50: #{tpu_custom_call.1} parent=1 // pred_check
      _
    $region51: #{tpu_custom_call.1} parent=1 // pred_check_branch
      %2305 = sbr.rel (0) target = $region53
    $region52: #{tpu_custom_call.1} parent=1 // pred_region
      %s2307 = ssub.s32 64, 64
      %2308 = vsyncadd [#allocation12], %s2307
      %s2309 = sshll.u32 [#allocation11], 4
      %s2310 = int_to_ptr.vmem [resolvable:$true] %s2309
      %2315 = dma.vmem_to_hbm [thread:$0]  %s2310, 64, %s9, [#allocation12], 32, 32, 2
    $region53: #{tpu_custom_call.1} parent=1 // pred_fallthru
      _
    // Predicated region
    $region54: #{tpu_custom_call.1} parent=1 // pred_check
      _
    $region55: #{tpu_custom_call.1} parent=1 // pred_check_branch
      %2317 = sbr.rel (0) target = $region57
    $region56: #{tpu_custom_call.1} parent=1 // pred_region
      %2318 = dma.done [#allocation6], 256
    $region57: #{tpu_custom_call.1} parent=1 // pred_fallthru
      _
    // Predicated region
    $region58: #{tpu_custom_call.1} parent=1 // pred_check
      _
    $region59: #{tpu_custom_call.1} parent=1 // pred_check_branch
      %2320 = sbr.rel (0) target = $region61
    $region60: #{tpu_custom_call.1} parent=1 // pred_region
      %2321 = dma.done [#allocation12], 64
    $region61: #{tpu_custom_call.1} parent=1 // pred_fallthru
      _
    %2322 = vsyncpa [#allocation5], 1
    %2323 = vsyncpa [#allocation8], 1
    %2324 = vsyncpa [#allocation6], 1
    %2325 = vsyncpa [#allocation12], 1

</llo_original>
